<compile_context>
chip_gen: v7x
topology: tpu7x:2x2x1
jax: 0.10.0
libtpu: 0.0.40
codegen_flags: <defaults>
</compile_context>

<pallas_src>
import functools

import jax
import jax.numpy as jnp
from jax.experimental import pallas as pl
from jax.experimental.pallas import tpu as pltpu


def _round_up(x, m):
    return (x + m - 1) // m * m


def _silu(x):
    return x * jax.nn.sigmoid(x)


def _gelu_exact(x):
    # PyTorch nn.GELU() default: 0.5*x*(1+erf(x/sqrt(2)))
    return 0.5 * x * (1.0 + jax.lax.erf(x * 0.7071067811865476))


def _gelu_tanh(x):
    # tanh approximation — routes the transcendental to the EUP slot.
    c = 0.7978845608028654
    return 0.5 * x * (1.0 + jnp.tanh(c * (x + 0.044715 * x * x * x)))


def _layer_norm(x, g, b, eps=1e-5):
    # Single-pass stats: the two cross-lane reductions are independent.
    mu = jnp.mean(x, axis=-1, keepdims=True)
    ms = jnp.mean(x * x, axis=-1, keepdims=True)
    var = jnp.maximum(ms - mu * mu, 0.0)
    return (x - mu) * jax.lax.rsqrt(var + eps) * g + b


def _dot(x, w):
    # Cast the activation to the weight dtype (bf16 = MXU-native on v6e/v7x),
    # always accumulate in f32.
    return jnp.dot(x.astype(w.dtype), w, preferred_element_type=jnp.float32)


def _flow_kernel(z_ref, t_ref,
                 wt1_ref, bt1_ref, wt2_ref, bt2_ref,
                 wa_ref, wm1t_ref, ba_ref, g1_ref, be1_ref,
                 wm2_ref, bm2_ref, g2_ref, be2_ref,
                 wb_ref, bb_ref,
                 out_ref, *, approx_gelu):
    gelu = _gelu_tanh if approx_gelu else _gelu_exact

    z = z_ref[...]                                   # [TB, pd_pad]  (f32 or bf16)
    t = t_ref[...].astype(jnp.float32)               # [TB, 1]

    # time_embed: Linear(1,32) -> SiLU -> Linear(32,64)
    # (K=1 matmul expressed as a broadcast outer product; stays on the VPU.)
    h = _silu(t * wt1_ref[...] + bt1_ref[...])       # [TB, 32]
    t_emb = _dot(h, wt2_ref[...]) + bt2_ref[...]     # [TB, 64]

    # low_rank_proj folded into main_net layer 1:
    #   x = z @ (wlr @ wm1z) + t_emb @ wm1t + (blr @ wm1z + bm1)
    x = _dot(z, wa_ref[...]) + _dot(t_emb, wm1t_ref[...]) + ba_ref[...]   # [TB, H]
    x = gelu(_layer_norm(x, g1_ref[...], be1_ref[...]))
    # Dropout(0.1): identity at inference.

    x = _dot(x, wm2_ref[...]) + bm2_ref[...]                              # [TB, H]
    x = gelu(_layer_norm(x, g2_ref[...], be2_ref[...]))
    # Dropout(0.1): identity at inference.

    # main_net layer 3 folded with inv_proj:
    #   out = x @ (wm3 @ winv) + (bm3 @ winv + binv)
    out_ref[...] = (_dot(x, wb_ref[...]) + bb_ref[...]).astype(out_ref.dtype)


WEIGHT_ORDER = ["wt1", "bt1", "wt2", "bt2",
                "wa", "wm1t", "ba", "g1", "be1",
                "wm2", "bm2", "g2", "be2",
                "wb", "bb"]


def flow_matching_forward(z, t, params, *, tb=512, approx_gelu=False,
                          io_dtype=None):
    """z: [B, param_dim], t: [B, 1] -> [B, param_dim].

    `params` is the folded (and lane-padded) parameter dict from fold_params().
    tb:        requested batch tile; capped so the grid has >= 2 blocks (v7x TCs).
    io_dtype:  dtype of the z/out HBM traffic (jnp.bfloat16 halves it); internal
               accumulation / LN / GELU stay f32.
    """
    if z.ndim == 1:
        z = z[None, :]
    if t.ndim == 1:
        t = t[:, None]
    B, param_dim = z.shape
    hidden = params["wm2"].shape[0]
    pd_pad = params["wa"].shape[0]                 # lane-aligned param_dim
    assert pd_pad >= param_dim and pd_pad % 128 == 0, (pd_pad, param_dim)
    io_dtype = jnp.dtype(io_dtype) if io_dtype is not None else jnp.dtype(jnp.float32)

    # Batch tile: multiple of 8 (sublane); cap so n_blocks >= 2 whenever B > 8 so
    # the "parallel" batch axis actually spreads over both v7x TensorCores.
    tb = max(8, min(int(tb), _round_up(max(pl.cdiv(B, 2), 1), 8)))
    n_blocks = pl.cdiv(B, tb)
    B_pad = n_blocks * tb

    z = z.astype(io_dtype)
    t = t.astype(jnp.float32)
    if B_pad != B or pd_pad != param_dim:
        z = jnp.pad(z, ((0, B_pad - B), (0, pd_pad - param_dim)))
    if B_pad != B:
        t = jnp.pad(t, ((0, B_pad - B), (0, 0)))

    flat = [params[k] for k in WEIGHT_ORDER]

    row_spec = pl.BlockSpec((tb, pd_pad), lambda i: (i, 0))
    t_spec = pl.BlockSpec((tb, 1), lambda i: (i, 0))

    # VMEM budget: resident weights (single-buffered) + double-buffered z/out/t
    # tiles + f32 intermediates + headroom.  Default scoped VMEM (16/32 MiB) is
    # otherwise the first thing large param_dim runs into.
    weight_bytes = sum(int(w.size) * w.dtype.itemsize for w in flat)
    step_io_bytes = tb * pd_pad * io_dtype.itemsize * 2 + tb * 4
    act_bytes = 4 * tb * (3 * hidden + 64 + 32 + pd_pad)
    vmem_needed = weight_bytes + 2 * step_io_bytes + act_bytes + (8 << 20)
    vmem_limit = int(min(max(vmem_needed, 32 << 20), 100 << 20))

    flops = 2 * B_pad * (32 + 32 * 64 + pd_pad * hidden + 64 * hidden
                         + hidden * hidden + hidden * pd_pad)
    cost = pl.CostEstimate(
        flops=int(flops),
        transcendentals=int(B_pad * (32 + 2 * hidden + 2)),
        bytes_accessed=int(weight_bytes
                           + B_pad * (2 * pd_pad * io_dtype.itemsize + 4)),
    )

    def run(single_buffer_weights):
        if single_buffer_weights:
            # Constant index_map -> fetched once; one VMEM buffer is enough.
            w_specs = [pl.BlockSpec(w.shape, lambda i: (0, 0),
                                    pipeline_mode=pl.Buffered(1)) for w in flat]
        else:
            w_specs = [pl.BlockSpec(w.shape, lambda i: (0, 0)) for w in flat]
        return pl.pallas_call(
            functools.partial(_flow_kernel, approx_gelu=approx_gelu),
            out_shape=jax.ShapeDtypeStruct((B_pad, pd_pad), io_dtype),
            grid=(n_blocks,),
            in_specs=[row_spec, t_spec] + w_specs,
            out_specs=row_spec,
            compiler_params=pltpu.CompilerParams(
                dimension_semantics=("parallel",),
                vmem_limit_bytes=vmem_limit),
            cost_estimate=cost,
        )(z, t, *flat)

    try:
        out = run(True)
    except Exception:
        # Fallback for JAX builds where Buffered(1) pipeline_mode is unsupported.
        out = run(False)

    if B_pad != B or pd_pad != param_dim:
        out = out[:B, :param_dim]
    return out


# ----------------------------------------------------------------------------
# Parameter construction (mirrors the PyTorch module) + offline folding.
# ----------------------------------------------------------------------------

def init_params(key, param_dim, hidden_dim, rank):
    """Raw params mirroring _init_weights: xavier_normal(gain=0.02), zero bias.
    Linear weights stored transposed as [in_features, out_features]."""
    def xavier(k, fan_in, fan_out, gain=0.02):
        std = gain * (2.0 / (fan_in + fan_out)) ** 0.5
        return jax.random.normal(k, (fan_in, fan_out), jnp.float32) * std

    ks = jax.random.split(key, 7)
    p = {}
    p["wt1"] = xavier(ks[0], 1, 32);   p["bt1"] = jnp.zeros((1, 32), jnp.float32)
    p["wt2"] = xavier(ks[1], 32, 64);  p["bt2"] = jnp.zeros((1, 64), jnp.float32)
    p["wlr"] = xavier(ks[2], param_dim, rank)
    p["blr"] = jnp.zeros((1, rank), jnp.float32)
    wm1 = xavier(ks[3], rank + 64, hidden_dim)
    p["wm1z"] = wm1[:rank, :]
    p["wm1t"] = wm1[rank:, :]
    p["bm1"] = jnp.zeros((1, hidden_dim), jnp.float32)
    p["g1"] = jnp.ones((1, hidden_dim), jnp.float32)
    p["be1"] = jnp.zeros((1, hidden_dim), jnp.float32)
    p["wm2"] = xavier(ks[4], hidden_dim, hidden_dim)
    p["bm2"] = jnp.zeros((1, hidden_dim), jnp.float32)
    p["g2"] = jnp.ones((1, hidden_dim), jnp.float32)
    p["be2"] = jnp.zeros((1, hidden_dim), jnp.float32)
    p["wm3"] = xavier(ks[5], hidden_dim, rank)
    p["bm3"] = jnp.zeros((1, rank), jnp.float32)
    p["winv"] = xavier(ks[6], rank, param_dim)
    p["binv"] = jnp.zeros((1, param_dim), jnp.float32)
    return p


def fold_params(p, matmul_dtype=jnp.bfloat16, lane_align=128):
    """Fold the rank bottlenecks offline (f32 math), lane-pad param_dim to a
    multiple of `lane_align`, then cast matmul operands to `matmul_dtype`
    (default bf16 = MXU-native + half the DMA/VMEM).  Biases and LayerNorm
    params stay f32."""
    wa = jnp.dot(p["wlr"], p["wm1z"], preferred_element_type=jnp.float32)
    ba = jnp.dot(p["blr"], p["wm1z"], preferred_element_type=jnp.float32) + p["bm1"]
    wb = jnp.dot(p["wm3"], p["winv"], preferred_element_type=jnp.float32)
    bb = jnp.dot(p["bm3"], p["winv"], preferred_element_type=jnp.float32) + p["binv"]

    param_dim = wa.shape[0]
    pd_pad = _round_up(param_dim, lane_align)
    if pd_pad != param_dim:
        # Zero-padded rows/cols: padded z lanes are zero in the wrapper, padded
        # output lanes are sliced off -> numerically identical.
        wa = jnp.pad(wa, ((0, pd_pad - param_dim), (0, 0)))
        wb = jnp.pad(wb, ((0, 0), (0, pd_pad - param_dim)))
        bb = jnp.pad(bb, ((0, 0), (0, pd_pad - param_dim)))

    return {
        "wt1": p["wt1"], "bt1": p["bt1"],                 # elementwise use, f32
        "wt2": p["wt2"].astype(matmul_dtype), "bt2": p["bt2"],
        "wa": wa.astype(matmul_dtype), "wm1t": p["wm1t"].astype(matmul_dtype),
        "ba": ba, "g1": p["g1"], "be1": p["be1"],
        "wm2": p["wm2"].astype(matmul_dtype), "bm2": p["bm2"],
        "g2": p["g2"], "be2": p["be2"],
        "wb": wb.astype(matmul_dtype), "bb": bb,
    }


def reference_forward(z, t, p):
    """Pure-JAX f32 reference mirroring the PyTorch forward (eval mode, unfolded)."""
    h = _silu(t @ p["wt1"] + p["bt1"])
    t_emb = h @ p["wt2"] + p["bt2"]
    zp = z @ p["wlr"] + p["blr"]
    x = jnp.concatenate([zp, t_emb], axis=-1)
    wm1 = jnp.concatenate([p["wm1z"], p["wm1t"]], axis=0)
    x = x @ wm1 + p["bm1"]
    mu = jnp.mean(x, -1, keepdims=True)
    x = (x - mu) * jax.lax.rsqrt(jnp.mean((x - mu) ** 2, -1, keepdims=True) + 1e-5) \
        * p["g1"] + p["be1"]
    x = _gelu_exact(x)
    x = x @ p["wm2"] + p["bm2"]
    mu = jnp.mean(x, -1, keepdims=True)
    x = (x - mu) * jax.lax.rsqrt(jnp.mean((x - mu) ** 2, -1, keepdims=True) + 1e-5) \
        * p["g2"] + p["be2"]
    x = _gelu_exact(x)
    x = x @ p["wm3"] + p["bm3"]
    return x @ p["winv"] + p["binv"]


if __name__ == "__main__":
    # Small shapes consistent with forward(z: [B, param_dim], t: [B, 1]).
    B, param_dim, hidden_dim, rank = 256, 256, 128, 64

    key = jax.random.PRNGKey(0)
    kz, kt, kp = jax.random.split(key, 3)
    z = jax.random.normal(kz, (B, param_dim), jnp.float32)
    t = jax.random.uniform(kt, (B, 1), jnp.float32)
    raw = init_params(kp, param_dim, hidden_dim, rank)
    ref = reference_forward(z, t, raw)

    # 1) Strict f32 path, exact-erf GELU: check vs the PyTorch-equivalent reference.
    p_f32 = fold_params(raw, matmul_dtype=jnp.float32)
    out = flow_matching_forward(z, t, p_f32)
    jax.block_until_ready(out)
    assert out.shape == (B, param_dim), out.shape
    err = float(jnp.max(jnp.abs(out - ref)))
    assert err < 2e-5, err

    # 2) Default fast path: bf16 weights + bf16 z/out I/O + tanh-GELU (loose check).
    p_bf16 = fold_params(raw)
    out_fast = flow_matching_forward(z, t, p_bf16, approx_gelu=True,
                                     io_dtype=jnp.bfloat16)
    jax.block_until_ready(out_fast)
    rel = float(jnp.max(jnp.abs(out_fast.astype(jnp.float32) - ref))
                / (jnp.max(jnp.abs(ref)) + 1e-12))
    assert rel < 5e-2, rel

    # 3) Non-multiple-of-tile batch exercises the batch-padding path.
    out_small = flow_matching_forward(z[:13], t[:13], p_f32)
    jax.block_until_ready(out_small)
    assert out_small.shape == (13, param_dim), out_small.shape
    assert float(jnp.max(jnp.abs(out_small - ref[:13]))) < 2e-5

    # 4) Non-128-multiple param_dim exercises the lane-padding path.
    B2, pd2 = 16, 200
    raw2 = init_params(jax.random.PRNGKey(1), pd2, hidden_dim, rank)
    z2 = jax.random.normal(jax.random.PRNGKey(2), (B2, pd2), jnp.float32)
    t2 = jax.random.uniform(jax.random.PRNGKey(3), (B2, 1), jnp.float32)
    ref2 = reference_forward(z2, t2, raw2)
    out2 = flow_matching_forward(z2, t2, fold_params(raw2, matmul_dtype=jnp.float32))
    jax.block_until_ready(out2)
    assert out2.shape == (B2, pd2), out2.shape
    assert float(jnp.max(jnp.abs(out2 - ref2))) < 2e-5

    print("KERNEL_OK")
</pallas_src>

<mosaic_0001>
module attributes {stable_mosaic.version = 11 : i64} {
  func.func @_flow_kernel(%arg0: i32, %arg1: memref<128x256xf32, #tpu.memory_space<vmem>>, %arg2: memref<128x1xf32, #tpu.memory_space<vmem>>, %arg3: memref<1x32xf32, #tpu.memory_space<vmem>>, %arg4: memref<1x32xf32, #tpu.memory_space<vmem>>, %arg5: memref<32x64xf32, #tpu.memory_space<vmem>>, %arg6: memref<1x64xf32, #tpu.memory_space<vmem>>, %arg7: memref<256x128xf32, #tpu.memory_space<vmem>>, %arg8: memref<64x128xf32, #tpu.memory_space<vmem>>, %arg9: memref<1x128xf32, #tpu.memory_space<vmem>>, %arg10: memref<1x128xf32, #tpu.memory_space<vmem>>, %arg11: memref<1x128xf32, #tpu.memory_space<vmem>>, %arg12: memref<128x128xf32, #tpu.memory_space<vmem>>, %arg13: memref<1x128xf32, #tpu.memory_space<vmem>>, %arg14: memref<1x128xf32, #tpu.memory_space<vmem>>, %arg15: memref<1x128xf32, #tpu.memory_space<vmem>>, %arg16: memref<128x256xf32, #tpu.memory_space<vmem>>, %arg17: memref<1x256xf32, #tpu.memory_space<vmem>>, %arg18: memref<128x256xf32, #tpu.memory_space<vmem>>) attributes {dimension_semantics = [#tpu.dimension_semantics<parallel>], iteration_bounds = array<i64: 2>, scalar_prefetch = 0 : i64, scratch_operands = 0 : i64, tpu.core_type = #tpu.core_type<tc>, window_params = [{transform_indices = @transform_0, window_bounds = array<i64: 128, 256>}, {transform_indices = @transform_1, window_bounds = array<i64: 128, 1>}, {pipeline_mode = #tpu.pipeline_mode<synchronous>, transform_indices = @transform_2, window_bounds = array<i64: 1, 32>}, {pipeline_mode = #tpu.pipeline_mode<synchronous>, transform_indices = @transform_3, window_bounds = array<i64: 1, 32>}, {pipeline_mode = #tpu.pipeline_mode<synchronous>, transform_indices = @transform_4, window_bounds = array<i64: 32, 64>}, {pipeline_mode = #tpu.pipeline_mode<synchronous>, transform_indices = @transform_5, window_bounds = array<i64: 1, 64>}, {pipeline_mode = #tpu.pipeline_mode<synchronous>, transform_indices = @transform_6, window_bounds = array<i64: 256, 128>}, {pipeline_mode = #tpu.pipeline_mode<synchronous>, transform_indices = @transform_7, window_bounds = array<i64: 64, 128>}, {pipeline_mode = #tpu.pipeline_mode<synchronous>, transform_indices = @transform_8, window_bounds = array<i64: 1, 128>}, {pipeline_mode = #tpu.pipeline_mode<synchronous>, transform_indices = @transform_9, window_bounds = array<i64: 1, 128>}, {pipeline_mode = #tpu.pipeline_mode<synchronous>, transform_indices = @transform_10, window_bounds = array<i64: 1, 128>}, {pipeline_mode = #tpu.pipeline_mode<synchronous>, transform_indices = @transform_11, window_bounds = array<i64: 128, 128>}, {pipeline_mode = #tpu.pipeline_mode<synchronous>, transform_indices = @transform_12, window_bounds = array<i64: 1, 128>}, {pipeline_mode = #tpu.pipeline_mode<synchronous>, transform_indices = @transform_13, window_bounds = array<i64: 1, 128>}, {pipeline_mode = #tpu.pipeline_mode<synchronous>, transform_indices = @transform_14, window_bounds = array<i64: 1, 128>}, {pipeline_mode = #tpu.pipeline_mode<synchronous>, transform_indices = @transform_15, window_bounds = array<i64: 128, 256>}, {pipeline_mode = #tpu.pipeline_mode<synchronous>, transform_indices = @transform_16, window_bounds = array<i64: 1, 256>}, {transform_indices = @transform_17, window_bounds = array<i64: 128, 256>}]} {
    %c0 = arith.constant 0 : index
    %c0_0 = arith.constant 0 : index
    %0 = vector.load %arg1[%c0, %c0_0] : memref<128x256xf32, #tpu.memory_space<vmem>>, vector<128x256xf32>
    %c0_1 = arith.constant 0 : index
    %c0_2 = arith.constant 0 : index
    %1 = vector.load %arg2[%c0_1, %c0_2] : memref<128x1xf32, #tpu.memory_space<vmem>>, vector<128x1xf32>
    %c0_3 = arith.constant 0 : index
    %c0_4 = arith.constant 0 : index
    %2 = vector.load %arg3[%c0_3, %c0_4] : memref<1x32xf32, #tpu.memory_space<vmem>>, vector<1x32xf32>
    %3 = vector.broadcast %1 : vector<128x1xf32> to vector<128x32xf32>
    %4 = vector.broadcast %2 : vector<1x32xf32> to vector<128x32xf32>
    %5 = arith.mulf %3, %4 : vector<128x32xf32>
    %c0_5 = arith.constant 0 : index
    %c0_6 = arith.constant 0 : index
    %6 = vector.load %arg4[%c0_5, %c0_6] : memref<1x32xf32, #tpu.memory_space<vmem>>, vector<1x32xf32>
    %7 = vector.broadcast %6 : vector<1x32xf32> to vector<128x32xf32>
    %8 = arith.addf %5, %7 : vector<128x32xf32>
    %9 = arith.negf %8 : vector<128x32xf32>
    %10 = math.exp %9 : vector<128x32xf32>
    %cst = arith.constant 1.000000e+00 : f32
    %11 = vector.broadcast %cst : f32 to vector<128x32xf32>
    %12 = arith.addf %11, %10 : vector<128x32xf32>
    %13 = arith.divf %11, %12 : vector<128x32xf32>
    %14 = arith.mulf %8, %13 : vector<128x32xf32>
    %c0_7 = arith.constant 0 : index
    %c0_8 = arith.constant 0 : index
    %15 = vector.load %arg5[%c0_7, %c0_8] : memref<32x64xf32, #tpu.memory_space<vmem>>, vector<32x64xf32>
    %cst_9 = arith.constant dense<0.000000e+00> : vector<128x64xf32>
    %16 = tpu.matmul %14, %15, %cst_9 {dimension_numbers = #tpu.dot_dimension_numbers<[1], [0], [0], [1], [0, 0, 1, 1], [], []>} : vector<128x32xf32>, vector<32x64xf32>, vector<128x64xf32> -> vector<128x64xf32>
    %c0_10 = arith.constant 0 : index
    %c0_11 = arith.constant 0 : index
    %17 = vector.load %arg6[%c0_10, %c0_11] : memref<1x64xf32, #tpu.memory_space<vmem>>, vector<1x64xf32>
    %18 = vector.broadcast %17 : vector<1x64xf32> to vector<128x64xf32>
    %19 = arith.addf %16, %18 : vector<128x64xf32>
    %c0_12 = arith.constant 0 : index
    %c0_13 = arith.constant 0 : index
    %20 = vector.load %arg7[%c0_12, %c0_13] : memref<256x128xf32, #tpu.memory_space<vmem>>, vector<256x128xf32>
    %cst_14 = arith.constant dense<0.000000e+00> : vector<128x128xf32>
    %21 = tpu.matmul %0, %20, %cst_14 {dimension_numbers = #tpu.dot_dimension_numbers<[1], [0], [0], [1], [0, 0, 1, 1], [], []>} : vector<128x256xf32>, vector<256x128xf32>, vector<128x128xf32> -> vector<128x128xf32>
    %c0_15 = arith.constant 0 : index
    %c0_16 = arith.constant 0 : index
    %22 = vector.load %arg8[%c0_15, %c0_16] : memref<64x128xf32, #tpu.memory_space<vmem>>, vector<64x128xf32>
    %cst_17 = arith.constant dense<0.000000e+00> : vector<128x128xf32>
    %23 = tpu.matmul %19, %22, %cst_17 {dimension_numbers = #tpu.dot_dimension_numbers<[1], [0], [0], [1], [0, 0, 1, 1], [], []>} : vector<128x64xf32>, vector<64x128xf32>, vector<128x128xf32> -> vector<128x128xf32>
    %24 = arith.addf %21, %23 : vector<128x128xf32>
    %c0_18 = arith.constant 0 : index
    %c0_19 = arith.constant 0 : index
    %25 = vector.load %arg9[%c0_18, %c0_19] : memref<1x128xf32, #tpu.memory_space<vmem>>, vector<1x128xf32>
    %26 = vector.broadcast %25 : vector<1x128xf32> to vector<128x128xf32>
    %27 = arith.addf %24, %26 : vector<128x128xf32>
    %c0_20 = arith.constant 0 : index
    %c0_21 = arith.constant 0 : index
    %28 = vector.load %arg10[%c0_20, %c0_21] : memref<1x128xf32, #tpu.memory_space<vmem>>, vector<1x128xf32>
    %c0_22 = arith.constant 0 : index
    %c0_23 = arith.constant 0 : index
    %29 = vector.load %arg11[%c0_22, %c0_23] : memref<1x128xf32, #tpu.memory_space<vmem>>, vector<1x128xf32>
    %cst_24 = arith.constant dense<0.000000e+00> : vector<128xf32>
    %30 = vector.multi_reduction <add>, %27, %cst_24 [1] : vector<128x128xf32> to vector<128xf32>
    %31 = vector.shape_cast %30 : vector<128xf32> to vector<128x1xf32>
    %cst_25 = arith.constant 1.280000e+02 : f32
    %32 = vector.broadcast %cst_25 : f32 to vector<128x1xf32>
    %33 = arith.divf %31, %32 : vector<128x1xf32>
    %34 = arith.mulf %27, %27 : vector<128x128xf32>
    %cst_26 = arith.constant dense<0.000000e+00> : vector<128xf32>
    %35 = vector.multi_reduction <add>, %34, %cst_26 [1] : vector<128x128xf32> to vector<128xf32>
    %36 = vector.shape_cast %35 : vector<128xf32> to vector<128x1xf32>
    %cst_27 = arith.constant 1.280000e+02 : f32
    %37 = vector.broadcast %cst_27 : f32 to vector<128x1xf32>
    %38 = arith.divf %36, %37 : vector<128x1xf32>
    %39 = arith.mulf %33, %33 : vector<128x1xf32>
    %40 = arith.subf %38, %39 : vector<128x1xf32>
    %cst_28 = arith.constant 0.000000e+00 : f32
    %41 = vector.broadcast %cst_28 : f32 to vector<128x1xf32>
    %42 = arith.maximumf %40, %41 : vector<128x1xf32>
    %43 = vector.broadcast %33 : vector<128x1xf32> to vector<128x128xf32>
    %44 = arith.subf %27, %43 : vector<128x128xf32>
    %cst_29 = arith.constant 9.99999974E-6 : f32
    %45 = vector.broadcast %cst_29 : f32 to vector<128x1xf32>
    %46 = arith.addf %42, %45 : vector<128x1xf32>
    %47 = math.rsqrt %46 : vector<128x1xf32>
    %48 = vector.broadcast %47 : vector<128x1xf32> to vector<128x128xf32>
    %49 = arith.mulf %44, %48 : vector<128x128xf32>
    %50 = vector.broadcast %28 : vector<1x128xf32> to vector<128x128xf32>
    %51 = arith.mulf %49, %50 : vector<128x128xf32>
    %52 = vector.broadcast %29 : vector<1x128xf32> to vector<128x128xf32>
    %53 = arith.addf %51, %52 : vector<128x128xf32>
    %cst_30 = arith.constant 5.000000e-01 : f32
    %54 = vector.broadcast %cst_30 : f32 to vector<128x128xf32>
    %55 = arith.mulf %54, %53 : vector<128x128xf32>
    %cst_31 = arith.constant 0.707106769 : f32
    %56 = vector.broadcast %cst_31 : f32 to vector<128x128xf32>
    %57 = arith.mulf %53, %56 : vector<128x128xf32>
    %58 = math.erf %57 : vector<128x128xf32>
    %cst_32 = arith.constant 1.000000e+00 : f32
    %59 = vector.broadcast %cst_32 : f32 to vector<128x128xf32>
    %60 = arith.addf %59, %58 : vector<128x128xf32>
    %61 = arith.mulf %55, %60 : vector<128x128xf32>
    %c0_33 = arith.constant 0 : index
    %c0_34 = arith.constant 0 : index
    %62 = vector.load %arg12[%c0_33, %c0_34] : memref<128x128xf32, #tpu.memory_space<vmem>>, vector<128x128xf32>
    %cst_35 = arith.constant dense<0.000000e+00> : vector<128x128xf32>
    %63 = tpu.matmul %61, %62, %cst_35 {dimension_numbers = #tpu.dot_dimension_numbers<[1], [0], [0], [1], [0, 0, 1, 1], [], []>} : vector<128x128xf32>, vector<128x128xf32>, vector<128x128xf32> -> vector<128x128xf32>
    %c0_36 = arith.constant 0 : index
    %c0_37 = arith.constant 0 : index
    %64 = vector.load %arg13[%c0_36, %c0_37] : memref<1x128xf32, #tpu.memory_space<vmem>>, vector<1x128xf32>
    %65 = vector.broadcast %64 : vector<1x128xf32> to vector<128x128xf32>
    %66 = arith.addf %63, %65 : vector<128x128xf32>
    %c0_38 = arith.constant 0 : index
    %c0_39 = arith.constant 0 : index
    %67 = vector.load %arg14[%c0_38, %c0_39] : memref<1x128xf32, #tpu.memory_space<vmem>>, vector<1x128xf32>
    %c0_40 = arith.constant 0 : index
    %c0_41 = arith.constant 0 : index
    %68 = vector.load %arg15[%c0_40, %c0_41] : memref<1x128xf32, #tpu.memory_space<vmem>>, vector<1x128xf32>
    %cst_42 = arith.constant dense<0.000000e+00> : vector<128xf32>
    %69 = vector.multi_reduction <add>, %66, %cst_42 [1] : vector<128x128xf32> to vector<128xf32>
    %70 = vector.shape_cast %69 : vector<128xf32> to vector<128x1xf32>
    %cst_43 = arith.constant 1.280000e+02 : f32
    %71 = vector.broadcast %cst_43 : f32 to vector<128x1xf32>
    %72 = arith.divf %70, %71 : vector<128x1xf32>
    %73 = arith.mulf %66, %66 : vector<128x128xf32>
    %cst_44 = arith.constant dense<0.000000e+00> : vector<128xf32>
    %74 = vector.multi_reduction <add>, %73, %cst_44 [1] : vector<128x128xf32> to vector<128xf32>
    %75 = vector.shape_cast %74 : vector<128xf32> to vector<128x1xf32>
    %cst_45 = arith.constant 1.280000e+02 : f32
    %76 = vector.broadcast %cst_45 : f32 to vector<128x1xf32>
    %77 = arith.divf %75, %76 : vector<128x1xf32>
    %78 = arith.mulf %72, %72 : vector<128x1xf32>
    %79 = arith.subf %77, %78 : vector<128x1xf32>
    %cst_46 = arith.constant 0.000000e+00 : f32
    %80 = vector.broadcast %cst_46 : f32 to vector<128x1xf32>
    %81 = arith.maximumf %79, %80 : vector<128x1xf32>
    %82 = vector.broadcast %72 : vector<128x1xf32> to vector<128x128xf32>
    %83 = arith.subf %66, %82 : vector<128x128xf32>
    %cst_47 = arith.constant 9.99999974E-6 : f32
    %84 = vector.broadcast %cst_47 : f32 to vector<128x1xf32>
    %85 = arith.addf %81, %84 : vector<128x1xf32>
    %86 = math.rsqrt %85 : vector<128x1xf32>
    %87 = vector.broadcast %86 : vector<128x1xf32> to vector<128x128xf32>
    %88 = arith.mulf %83, %87 : vector<128x128xf32>
    %89 = vector.broadcast %67 : vector<1x128xf32> to vector<128x128xf32>
    %90 = arith.mulf %88, %89 : vector<128x128xf32>
    %91 = vector.broadcast %68 : vector<1x128xf32> to vector<128x128xf32>
    %92 = arith.addf %90, %91 : vector<128x128xf32>
    %cst_48 = arith.constant 5.000000e-01 : f32
    %93 = vector.broadcast %cst_48 : f32 to vector<128x128xf32>
    %94 = arith.mulf %93, %92 : vector<128x128xf32>
    %cst_49 = arith.constant 0.707106769 : f32
    %95 = vector.broadcast %cst_49 : f32 to vector<128x128xf32>
    %96 = arith.mulf %92, %95 : vector<128x128xf32>
    %97 = math.erf %96 : vector<128x128xf32>
    %cst_50 = arith.constant 1.000000e+00 : f32
    %98 = vector.broadcast %cst_50 : f32 to vector<128x128xf32>
    %99 = arith.addf %98, %97 : vector<128x128xf32>
    %100 = arith.mulf %94, %99 : vector<128x128xf32>
    %c0_51 = arith.constant 0 : index
    %c0_52 = arith.constant 0 : index
    %101 = vector.load %arg16[%c0_51, %c0_52] : memref<128x256xf32, #tpu.memory_space<vmem>>, vector<128x256xf32>
    %cst_53 = arith.constant dense<0.000000e+00> : vector<128x256xf32>
    %102 = tpu.matmul %100, %101, %cst_53 {dimension_numbers = #tpu.dot_dimension_numbers<[1], [0], [0], [1], [0, 0, 1, 1], [], []>} : vector<128x128xf32>, vector<128x256xf32>, vector<128x256xf32> -> vector<128x256xf32>
    %c0_54 = arith.constant 0 : index
    %c0_55 = arith.constant 0 : index
    %103 = vector.load %arg17[%c0_54, %c0_55] : memref<1x256xf32, #tpu.memory_space<vmem>>, vector<1x256xf32>
    %104 = vector.broadcast %103 : vector<1x256xf32> to vector<128x256xf32>
    %105 = arith.addf %102, %104 : vector<128x256xf32>
    %c0_56 = arith.constant 0 : index
    %c0_57 = arith.constant 0 : index
    %106 = vector.load %arg18[%c0_56, %c0_57] : memref<128x256xf32, #tpu.memory_space<vmem>>, vector<128x256xf32>
    tpu.vector_store %arg18[%c0_56, %c0_57], %105 {strides = array<i32>} : memref<128x256xf32, #tpu.memory_space<vmem>>, vector<128x256xf32>,
    return
  }
  func.func @transform_0(%arg0: i32) -> (i32, i32) {
    %c0_i32 = arith.constant 0 : i32
    %c0_i32_0 = arith.constant 0 : i32
    return %arg0, %c0_i32 : i32, i32
  }
  func.func @transform_1(%arg0: i32) -> (i32, i32) {
    %c0_i32 = arith.constant 0 : i32
    %c0_i32_0 = arith.constant 0 : i32
    return %arg0, %c0_i32 : i32, i32
  }
  func.func @transform_2(%arg0: i32) -> (i32, i32) {
    %c0_i32 = arith.constant 0 : i32
    %c0_i32_0 = arith.constant 0 : i32
    %c0_i32_1 = arith.constant 0 : i32
    return %c0_i32, %c0_i32_0 : i32, i32
  }
  func.func @transform_3(%arg0: i32) -> (i32, i32) {
    %c0_i32 = arith.constant 0 : i32
    %c0_i32_0 = arith.constant 0 : i32
    %c0_i32_1 = arith.constant 0 : i32
    return %c0_i32, %c0_i32_0 : i32, i32
  }
  func.func @transform_4(%arg0: i32) -> (i32, i32) {
    %c0_i32 = arith.constant 0 : i32
    %c0_i32_0 = arith.constant 0 : i32
    %c0_i32_1 = arith.constant 0 : i32
    return %c0_i32, %c0_i32_0 : i32, i32
  }
  func.func @transform_5(%arg0: i32) -> (i32, i32) {
    %c0_i32 = arith.constant 0 : i32
    %c0_i32_0 = arith.constant 0 : i32
    %c0_i32_1 = arith.constant 0 : i32
    return %c0_i32, %c0_i32_0 : i32, i32
  }
  func.func @transform_6(%arg0: i32) -> (i32, i32) {
    %c0_i32 = arith.constant 0 : i32
    %c0_i32_0 = arith.constant 0 : i32
    %c0_i32_1 = arith.constant 0 : i32
    return %c0_i32, %c0_i32_0 : i32, i32
  }
  func.func @transform_7(%arg0: i32) -> (i32, i32) {
    %c0_i32 = arith.constant 0 : i32
    %c0_i32_0 = arith.constant 0 : i32
    %c0_i32_1 = arith.constant 0 : i32
    return %c0_i32, %c0_i32_0 : i32, i32
  }
  func.func @transform_8(%arg0: i32) -> (i32, i32) {
    %c0_i32 = arith.constant 0 : i32
    %c0_i32_0 = arith.constant 0 : i32
    %c0_i32_1 = arith.constant 0 : i32
    return %c0_i32, %c0_i32_0 : i32, i32
  }
  func.func @transform_9(%arg0: i32) -> (i32, i32) {
    %c0_i32 = arith.constant 0 : i32
    %c0_i32_0 = arith.constant 0 : i32
    %c0_i32_1 = arith.constant 0 : i32
    return %c0_i32, %c0_i32_0 : i32, i32
  }
  func.func @transform_10(%arg0: i32) -> (i32, i32) {
    %c0_i32 = arith.constant 0 : i32
    %c0_i32_0 = arith.constant 0 : i32
    %c0_i32_1 = arith.constant 0 : i32
    return %c0_i32, %c0_i32_0 : i32, i32
  }
  func.func @transform_11(%arg0: i32) -> (i32, i32) {
    %c0_i32 = arith.constant 0 : i32
    %c0_i32_0 = arith.constant 0 : i32
    %c0_i32_1 = arith.constant 0 : i32
    return %c0_i32, %c0_i32_0 : i32, i32
  }
  func.func @transform_12(%arg0: i32) -> (i32, i32) {
    %c0_i32 = arith.constant 0 : i32
    %c0_i32_0 = arith.constant 0 : i32
    %c0_i32_1 = arith.constant 0 : i32
    return %c0_i32, %c0_i32_0 : i32, i32
  }
  func.func @transform_13(%arg0: i32) -> (i32, i32) {
    %c0_i32 = arith.constant 0 : i32
    %c0_i32_0 = arith.constant 0 : i32
    %c0_i32_1 = arith.constant 0 : i32
    return %c0_i32, %c0_i32_0 : i32, i32
  }
  func.func @transform_14(%arg0: i32) -> (i32, i32) {
    %c0_i32 = arith.constant 0 : i32
    %c0_i32_0 = arith.constant 0 : i32
    %c0_i32_1 = arith.constant 0 : i32
    return %c0_i32, %c0_i32_0 : i32, i32
  }
  func.func @transform_15(%arg0: i32) -> (i32, i32) {
    %c0_i32 = arith.constant 0 : i32
    %c0_i32_0 = arith.constant 0 : i32
    %c0_i32_1 = arith.constant 0 : i32
    return %c0_i32, %c0_i32_0 : i32, i32
  }
  func.func @transform_16(%arg0: i32) -> (i32, i32) {
    %c0_i32 = arith.constant 0 : i32
    %c0_i32_0 = arith.constant 0 : i32
    %c0_i32_1 = arith.constant 0 : i32
    return %c0_i32, %c0_i32_0 : i32, i32
  }
  func.func @transform_17(%arg0: i32) -> (i32, i32) {
    %c0_i32 = arith.constant 0 : i32
    %c0_i32_0 = arith.constant 0 : i32
    return %arg0, %c0_i32 : i32, i32
  }
}

module attributes {stable_mosaic.version = 11 : i64} {
  func.func @_flow_kernel(%arg0: i32, %arg1: memref<128x256xf32, #tpu.memory_space<vmem>>, %arg2: memref<128x1xf32, #tpu.memory_space<vmem>>, %arg3: memref<1x32xf32, #tpu.memory_space<vmem>>, %arg4: memref<1x32xf32, #tpu.memory_space<vmem>>, %arg5: memref<32x64xf32, #tpu.memory_space<vmem>>, %arg6: memref<1x64xf32, #tpu.memory_space<vmem>>, %arg7: memref<256x128xf32, #tpu.memory_space<vmem>>, %arg8: memref<64x128xf32, #tpu.memory_space<vmem>>, %arg9: memref<1x128xf32, #tpu.memory_space<vmem>>, %arg10: memref<1x128xf32, #tpu.memory_space<vmem>>, %arg11: memref<1x128xf32, #tpu.memory_space<vmem>>, %arg12: memref<128x128xf32, #tpu.memory_space<vmem>>, %arg13: memref<1x128xf32, #tpu.memory_space<vmem>>, %arg14: memref<1x128xf32, #tpu.memory_space<vmem>>, %arg15: memref<1x128xf32, #tpu.memory_space<vmem>>, %arg16: memref<128x256xf32, #tpu.memory_space<vmem>>, %arg17: memref<1x256xf32, #tpu.memory_space<vmem>>, %arg18: memref<128x256xf32, #tpu.memory_space<vmem>>) attributes {dimension_semantics = [#tpu.dimension_semantics<parallel>], iteration_bounds = array<i64: 2>, scalar_prefetch = 0 : i64, scratch_operands = 0 : i64, tpu.core_type = #tpu.core_type<tc>, window_params = [{transform_indices = @transform_0, window_bounds = array<i64: 128, 256>}, {transform_indices = @transform_1, window_bounds = array<i64: 128, 1>}, {pipeline_mode = #tpu.pipeline_mode<synchronous>, transform_indices = @transform_2, window_bounds = array<i64: 1, 32>}, {pipeline_mode = #tpu.pipeline_mode<synchronous>, transform_indices = @transform_3, window_bounds = array<i64: 1, 32>}, {pipeline_mode = #tpu.pipeline_mode<synchronous>, transform_indices = @transform_4, window_bounds = array<i64: 32, 64>}, {pipeline_mode = #tpu.pipeline_mode<synchronous>, transform_indices = @transform_5, window_bounds = array<i64: 1, 64>}, {pipeline_mode = #tpu.pipeline_mode<synchronous>, transform_indices = @transform_6, window_bounds = array<i64: 256, 128>}, {pipeline_mode = #tpu.pipeline_mode<synchronous>, transform_indices = @transform_7, window_bounds = array<i64: 64, 128>}, {pipeline_mode = #tpu.pipeline_mode<synchronous>, transform_indices = @transform_8, window_bounds = array<i64: 1, 128>}, {pipeline_mode = #tpu.pipeline_mode<synchronous>, transform_indices = @transform_9, window_bounds = array<i64: 1, 128>}, {pipeline_mode = #tpu.pipeline_mode<synchronous>, transform_indices = @transform_10, window_bounds = array<i64: 1, 128>}, {pipeline_mode = #tpu.pipeline_mode<synchronous>, transform_indices = @transform_11, window_bounds = array<i64: 128, 128>}, {pipeline_mode = #tpu.pipeline_mode<synchronous>, transform_indices = @transform_12, window_bounds = array<i64: 1, 128>}, {pipeline_mode = #tpu.pipeline_mode<synchronous>, transform_indices = @transform_13, window_bounds = array<i64: 1, 128>}, {pipeline_mode = #tpu.pipeline_mode<synchronous>, transform_indices = @transform_14, window_bounds = array<i64: 1, 128>}, {pipeline_mode = #tpu.pipeline_mode<synchronous>, transform_indices = @transform_15, window_bounds = array<i64: 128, 256>}, {pipeline_mode = #tpu.pipeline_mode<synchronous>, transform_indices = @transform_16, window_bounds = array<i64: 1, 256>}, {transform_indices = @transform_17, window_bounds = array<i64: 128, 256>}]} {
    %c0 = arith.constant 0 : index
    %c0_0 = arith.constant 0 : index
    %0 = vector.load %arg1[%c0, %c0_0] : memref<128x256xf32, #tpu.memory_space<vmem>>, vector<128x256xf32>
    %c0_1 = arith.constant 0 : index
    %c0_2 = arith.constant 0 : index
    %1 = vector.load %arg2[%c0_1, %c0_2] : memref<128x1xf32, #tpu.memory_space<vmem>>, vector<128x1xf32>
    %c0_3 = arith.constant 0 : index
    %c0_4 = arith.constant 0 : index
    %2 = vector.load %arg3[%c0_3, %c0_4] : memref<1x32xf32, #tpu.memory_space<vmem>>, vector<1x32xf32>
    %3 = vector.broadcast %1 : vector<128x1xf32> to vector<128x32xf32>
    %4 = vector.broadcast %2 : vector<1x32xf32> to vector<128x32xf32>
    %5 = arith.mulf %3, %4 : vector<128x32xf32>
    %c0_5 = arith.constant 0 : index
    %c0_6 = arith.constant 0 : index
    %6 = vector.load %arg4[%c0_5, %c0_6] : memref<1x32xf32, #tpu.memory_space<vmem>>, vector<1x32xf32>
    %7 = vector.broadcast %6 : vector<1x32xf32> to vector<128x32xf32>
    %8 = arith.addf %5, %7 : vector<128x32xf32>
    %9 = arith.negf %8 : vector<128x32xf32>
    %10 = math.exp %9 : vector<128x32xf32>
    %cst = arith.constant 1.000000e+00 : f32
    %11 = vector.broadcast %cst : f32 to vector<128x32xf32>
    %12 = arith.addf %11, %10 : vector<128x32xf32>
    %13 = arith.divf %11, %12 : vector<128x32xf32>
    %14 = arith.mulf %8, %13 : vector<128x32xf32>
    %c0_7 = arith.constant 0 : index
    %c0_8 = arith.constant 0 : index
    %15 = vector.load %arg5[%c0_7, %c0_8] : memref<32x64xf32, #tpu.memory_space<vmem>>, vector<32x64xf32>
    %cst_9 = arith.constant dense<0.000000e+00> : vector<128x64xf32>
    %16 = tpu.matmul %14, %15, %cst_9 {dimension_numbers = #tpu.dot_dimension_numbers<[1], [0], [0], [1], [0, 0, 1, 1], [], []>} : vector<128x32xf32>, vector<32x64xf32>, vector<128x64xf32> -> vector<128x64xf32>
    %c0_10 = arith.constant 0 : index
    %c0_11 = arith.constant 0 : index
    %17 = vector.load %arg6[%c0_10, %c0_11] : memref<1x64xf32, #tpu.memory_space<vmem>>, vector<1x64xf32>
    %18 = vector.broadcast %17 : vector<1x64xf32> to vector<128x64xf32>
    %19 = arith.addf %16, %18 : vector<128x64xf32>
    %c0_12 = arith.constant 0 : index
    %c0_13 = arith.constant 0 : index
    %20 = vector.load %arg7[%c0_12, %c0_13] : memref<256x128xf32, #tpu.memory_space<vmem>>, vector<256x128xf32>
    %cst_14 = arith.constant dense<0.000000e+00> : vector<128x128xf32>
    %21 = tpu.matmul %0, %20, %cst_14 {dimension_numbers = #tpu.dot_dimension_numbers<[1], [0], [0], [1], [0, 0, 1, 1], [], []>} : vector<128x256xf32>, vector<256x128xf32>, vector<128x128xf32> -> vector<128x128xf32>
    %c0_15 = arith.constant 0 : index
    %c0_16 = arith.constant 0 : index
    %22 = vector.load %arg8[%c0_15, %c0_16] : memref<64x128xf32, #tpu.memory_space<vmem>>, vector<64x128xf32>
    %cst_17 = arith.constant dense<0.000000e+00> : vector<128x128xf32>
    %23 = tpu.matmul %19, %22, %cst_17 {dimension_numbers = #tpu.dot_dimension_numbers<[1], [0], [0], [1], [0, 0, 1, 1], [], []>} : vector<128x64xf32>, vector<64x128xf32>, vector<128x128xf32> -> vector<128x128xf32>
    %24 = arith.addf %21, %23 : vector<128x128xf32>
    %c0_18 = arith.constant 0 : index
    %c0_19 = arith.constant 0 : index
    %25 = vector.load %arg9[%c0_18, %c0_19] : memref<1x128xf32, #tpu.memory_space<vmem>>, vector<1x128xf32>
    %26 = vector.broadcast %25 : vector<1x128xf32> to vector<128x128xf32>
    %27 = arith.addf %24, %26 : vector<128x128xf32>
    %c0_20 = arith.constant 0 : index
    %c0_21 = arith.constant 0 : index
    %28 = vector.load %arg10[%c0_20, %c0_21] : memref<1x128xf32, #tpu.memory_space<vmem>>, vector<1x128xf32>
    %c0_22 = arith.constant 0 : index
    %c0_23 = arith.constant 0 : index
    %29 = vector.load %arg11[%c0_22, %c0_23] : memref<1x128xf32, #tpu.memory_space<vmem>>, vector<1x128xf32>
    %cst_24 = arith.constant dense<0.000000e+00> : vector<128xf32>
    %30 = vector.multi_reduction <add>, %27, %cst_24 [1] : vector<128x128xf32> to vector<128xf32>
    %31 = vector.shape_cast %30 : vector<128xf32> to vector<128x1xf32>
    %cst_25 = arith.constant 1.280000e+02 : f32
    %32 = vector.broadcast %cst_25 : f32 to vector<128x1xf32>
    %33 = arith.divf %31, %32 : vector<128x1xf32>
    %34 = arith.mulf %27, %27 : vector<128x128xf32>
    %cst_26 = arith.constant dense<0.000000e+00> : vector<128xf32>
    %35 = vector.multi_reduction <add>, %34, %cst_26 [1] : vector<128x128xf32> to vector<128xf32>
    %36 = vector.shape_cast %35 : vector<128xf32> to vector<128x1xf32>
    %cst_27 = arith.constant 1.280000e+02 : f32
    %37 = vector.broadcast %cst_27 : f32 to vector<128x1xf32>
    %38 = arith.divf %36, %37 : vector<128x1xf32>
    %39 = arith.mulf %33, %33 : vector<128x1xf32>
    %40 = arith.subf %38, %39 : vector<128x1xf32>
    %cst_28 = arith.constant 0.000000e+00 : f32
    %41 = vector.broadcast %cst_28 : f32 to vector<128x1xf32>
    %42 = arith.maximumf %40, %41 : vector<128x1xf32>
    %43 = vector.broadcast %33 : vector<128x1xf32> to vector<128x128xf32>
    %44 = arith.subf %27, %43 : vector<128x128xf32>
    %cst_29 = arith.constant 9.99999974E-6 : f32
    %45 = vector.broadcast %cst_29 : f32 to vector<128x1xf32>
    %46 = arith.addf %42, %45 : vector<128x1xf32>
    %47 = math.rsqrt %46 : vector<128x1xf32>
    %48 = vector.broadcast %47 : vector<128x1xf32> to vector<128x128xf32>
    %49 = arith.mulf %44, %48 : vector<128x128xf32>
    %50 = vector.broadcast %28 : vector<1x128xf32> to vector<128x128xf32>
    %51 = arith.mulf %49, %50 : vector<128x128xf32>
    %52 = vector.broadcast %29 : vector<1x128xf32> to vector<128x128xf32>
    %53 = arith.addf %51, %52 : vector<128x128xf32>
    %cst_30 = arith.constant 5.000000e-01 : f32
    %54 = vector.broadcast %cst_30 : f32 to vector<128x128xf32>
    %55 = arith.mulf %54, %53 : vector<128x128xf32>
    %cst_31 = arith.constant 0.707106769 : f32
    %56 = vector.broadcast %cst_31 : f32 to vector<128x128xf32>
    %57 = arith.mulf %53, %56 : vector<128x128xf32>
    %58 = math.erf %57 : vector<128x128xf32>
    %cst_32 = arith.constant 1.000000e+00 : f32
    %59 = vector.broadcast %cst_32 : f32 to vector<128x128xf32>
    %60 = arith.addf %59, %58 : vector<128x128xf32>
    %61 = arith.mulf %55, %60 : vector<128x128xf32>
    %c0_33 = arith.constant 0 : index
    %c0_34 = arith.constant 0 : index
    %62 = vector.load %arg12[%c0_33, %c0_34] : memref<128x128xf32, #tpu.memory_space<vmem>>, vector<128x128xf32>
    %cst_35 = arith.constant dense<0.000000e+00> : vector<128x128xf32>
    %63 = tpu.matmul %61, %62, %cst_35 {dimension_numbers = #tpu.dot_dimension_numbers<[1], [0], [0], [1], [0, 0, 1, 1], [], []>} : vector<128x128xf32>, vector<128x128xf32>, vector<128x128xf32> -> vector<128x128xf32>
    %c0_36 = arith.constant 0 : index
    %c0_37 = arith.constant 0 : index
    %64 = vector.load %arg13[%c0_36, %c0_37] : memref<1x128xf32, #tpu.memory_space<vmem>>, vector<1x128xf32>
    %65 = vector.broadcast %64 : vector<1x128xf32> to vector<128x128xf32>
    %66 = arith.addf %63, %65 : vector<128x128xf32>
    %c0_38 = arith.constant 0 : index
    %c0_39 = arith.constant 0 : index
    %67 = vector.load %arg14[%c0_38, %c0_39] : memref<1x128xf32, #tpu.memory_space<vmem>>, vector<1x128xf32>
    %c0_40 = arith.constant 0 : index
    %c0_41 = arith.constant 0 : index
    %68 = vector.load %arg15[%c0_40, %c0_41] : memref<1x128xf32, #tpu.memory_space<vmem>>, vector<1x128xf32>
    %cst_42 = arith.constant dense<0.000000e+00> : vector<128xf32>
    %69 = vector.multi_reduction <add>, %66, %cst_42 [1] : vector<128x128xf32> to vector<128xf32>
    %70 = vector.shape_cast %69 : vector<128xf32> to vector<128x1xf32>
    %cst_43 = arith.constant 1.280000e+02 : f32
    %71 = vector.broadcast %cst_43 : f32 to vector<128x1xf32>
    %72 = arith.divf %70, %71 : vector<128x1xf32>
    %73 = arith.mulf %66, %66 : vector<128x128xf32>
    %cst_44 = arith.constant dense<0.000000e+00> : vector<128xf32>
    %74 = vector.multi_reduction <add>, %73, %cst_44 [1] : vector<128x128xf32> to vector<128xf32>
    %75 = vector.shape_cast %74 : vector<128xf32> to vector<128x1xf32>
    %cst_45 = arith.constant 1.280000e+02 : f32
    %76 = vector.broadcast %cst_45 : f32 to vector<128x1xf32>
    %77 = arith.divf %75, %76 : vector<128x1xf32>
    %78 = arith.mulf %72, %72 : vector<128x1xf32>
    %79 = arith.subf %77, %78 : vector<128x1xf32>
    %cst_46 = arith.constant 0.000000e+00 : f32
    %80 = vector.broadcast %cst_46 : f32 to vector<128x1xf32>
    %81 = arith.maximumf %79, %80 : vector<128x1xf32>
    %82 = vector.broadcast %72 : vector<128x1xf32> to vector<128x128xf32>
    %83 = arith.subf %66, %82 : vector<128x128xf32>
    %cst_47 = arith.constant 9.99999974E-6 : f32
    %84 = vector.broadcast %cst_47 : f32 to vector<128x1xf32>
    %85 = arith.addf %81, %84 : vector<128x1xf32>
    %86 = math.rsqrt %85 : vector<128x1xf32>
    %87 = vector.broadcast %86 : vector<128x1xf32> to vector<128x128xf32>
    %88 = arith.mulf %83, %87 : vector<128x128xf32>
    %89 = vector.broadcast %67 : vector<1x128xf32> to vector<128x128xf32>
    %90 = arith.mulf %88, %89 : vector<128x128xf32>
    %91 = vector.broadcast %68 : vector<1x128xf32> to vector<128x128xf32>
    %92 = arith.addf %90, %91 : vector<128x128xf32>
    %cst_48 = arith.constant 5.000000e-01 : f32
    %93 = vector.broadcast %cst_48 : f32 to vector<128x128xf32>
    %94 = arith.mulf %93, %92 : vector<128x128xf32>
    %cst_49 = arith.constant 0.707106769 : f32
    %95 = vector.broadcast %cst_49 : f32 to vector<128x128xf32>
    %96 = arith.mulf %92, %95 : vector<128x128xf32>
    %97 = math.erf %96 : vector<128x128xf32>
    %cst_50 = arith.constant 1.000000e+00 : f32
    %98 = vector.broadcast %cst_50 : f32 to vector<128x128xf32>
    %99 = arith.addf %98, %97 : vector<128x128xf32>
    %100 = arith.mulf %94, %99 : vector<128x128xf32>
    %c0_51 = arith.constant 0 : index
    %c0_52 = arith.constant 0 : index
    %101 = vector.load %arg16[%c0_51, %c0_52] : memref<128x256xf32, #tpu.memory_space<vmem>>, vector<128x256xf32>
    %cst_53 = arith.constant dense<0.000000e+00> : vector<128x256xf32>
    %102 = tpu.matmul %100, %101, %cst_53 {dimension_numbers = #tpu.dot_dimension_numbers<[1], [0], [0], [1], [0, 0, 1, 1], [], []>} : vector<128x128xf32>, vector<128x256xf32>, vector<128x256xf32> -> vector<128x256xf32>
    %c0_54 = arith.constant 0 : index
    %c0_55 = arith.constant 0 : index
    %103 = vector.load %arg17[%c0_54, %c0_55] : memref<1x256xf32, #tpu.memory_space<vmem>>, vector<1x256xf32>
    %104 = vector.broadcast %103 : vector<1x256xf32> to vector<128x256xf32>
    %105 = arith.addf %102, %104 : vector<128x256xf32>
    %c0_56 = arith.constant 0 : index
    %c0_57 = arith.constant 0 : index
    %106 = vector.load %arg18[%c0_56, %c0_57] : memref<128x256xf32, #tpu.memory_space<vmem>>, vector<128x256xf32>
    tpu.vector_store %arg18[%c0_56, %c0_57], %105 {strides = array<i32>} : memref<128x256xf32, #tpu.memory_space<vmem>>, vector<128x256xf32>,
    return
  }
  func.func @transform_0(%arg0: i32) -> (i32, i32) {
    %c0_i32 = arith.constant 0 : i32
    %c0_i32_0 = arith.constant 0 : i32
    return %arg0, %c0_i32 : i32, i32
  }
  func.func @transform_1(%arg0: i32) -> (i32, i32) {
    %c0_i32 = arith.constant 0 : i32
    %c0_i32_0 = arith.constant 0 : i32
    return %arg0, %c0_i32 : i32, i32
  }
  func.func @transform_2(%arg0: i32) -> (i32, i32) {
    %c0_i32 = arith.constant 0 : i32
    %c0_i32_0 = arith.constant 0 : i32
    %c0_i32_1 = arith.constant 0 : i32
    return %c0_i32, %c0_i32_0 : i32, i32
  }
  func.func @transform_3(%arg0: i32) -> (i32, i32) {
    %c0_i32 = arith.constant 0 : i32
    %c0_i32_0 = arith.constant 0 : i32
    %c0_i32_1 = arith.constant 0 : i32
    return %c0_i32, %c0_i32_0 : i32, i32
  }
  func.func @transform_4(%arg0: i32) -> (i32, i32) {
    %c0_i32 = arith.constant 0 : i32
    %c0_i32_0 = arith.constant 0 : i32
    %c0_i32_1 = arith.constant 0 : i32
    return %c0_i32, %c0_i32_0 : i32, i32
  }
  func.func @transform_5(%arg0: i32) -> (i32, i32) {
    %c0_i32 = arith.constant 0 : i32
    %c0_i32_0 = arith.constant 0 : i32
    %c0_i32_1 = arith.constant 0 : i32
    return %c0_i32, %c0_i32_0 : i32, i32
  }
  func.func @transform_6(%arg0: i32) -> (i32, i32) {
    %c0_i32 = arith.constant 0 : i32
    %c0_i32_0 = arith.constant 0 : i32
    %c0_i32_1 = arith.constant 0 : i32
    return %c0_i32, %c0_i32_0 : i32, i32
  }
  func.func @transform_7(%arg0: i32) -> (i32, i32) {
    %c0_i32 = arith.constant 0 : i32
    %c0_i32_0 = arith.constant 0 : i32
    %c0_i32_1 = arith.constant 0 : i32
    return %c0_i32, %c0_i32_0 : i32, i32
  }
  func.func @transform_8(%arg0: i32) -> (i32, i32) {
    %c0_i32 = arith.constant 0 : i32
    %c0_i32_0 = arith.constant 0 : i32
    %c0_i32_1 = arith.constant 0 : i32
    return %c0_i32, %c0_i32_0 : i32, i32
  }
  func.func @transform_9(%arg0: i32) -> (i32, i32) {
    %c0_i32 = arith.constant 0 : i32
    %c0_i32_0 = arith.constant 0 : i32
    %c0_i32_1 = arith.constant 0 : i32
    return %c0_i32, %c0_i32_0 : i32, i32
  }
  func.func @transform_10(%arg0: i32) -> (i32, i32) {
    %c0_i32 = arith.constant 0 : i32
    %c0_i32_0 = arith.constant 0 : i32
    %c0_i32_1 = arith.constant 0 : i32
    return %c0_i32, %c0_i32_0 : i32, i32
  }
  func.func @transform_11(%arg0: i32) -> (i32, i32) {
    %c0_i32 = arith.constant 0 : i32
    %c0_i32_0 = arith.constant 0 : i32
    %c0_i32_1 = arith.constant 0 : i32
    return %c0_i32, %c0_i32_0 : i32, i32
  }
  func.func @transform_12(%arg0: i32) -> (i32, i32) {
    %c0_i32 = arith.constant 0 : i32
    %c0_i32_0 = arith.constant 0 : i32
    %c0_i32_1 = arith.constant 0 : i32
    return %c0_i32, %c0_i32_0 : i32, i32
  }
  func.func @transform_13(%arg0: i32) -> (i32, i32) {
    %c0_i32 = arith.constant 0 : i32
    %c0_i32_0 = arith.constant 0 : i32
    %c0_i32_1 = arith.constant 0 : i32
    return %c0_i32, %c0_i32_0 : i32, i32
  }
  func.func @transform_14(%arg0: i32) -> (i32, i32) {
    %c0_i32 = arith.constant 0 : i32
    %c0_i32_0 = arith.constant 0 : i32
    %c0_i32_1 = arith.constant 0 : i32
    return %c0_i32, %c0_i32_0 : i32, i32
  }
  func.func @transform_15(%arg0: i32) -> (i32, i32) {
    %c0_i32 = arith.constant 0 : i32
    %c0_i32_0 = arith.constant 0 : i32
    %c0_i32_1 = arith.constant 0 : i32
    return %c0_i32, %c0_i32_0 : i32, i32
  }
  func.func @transform_16(%arg0: i32) -> (i32, i32) {
    %c0_i32 = arith.constant 0 : i32
    %c0_i32_0 = arith.constant 0 : i32
    %c0_i32_1 = arith.constant 0 : i32
    return %c0_i32, %c0_i32_0 : i32, i32
  }
  func.func @transform_17(%arg0: i32) -> (i32, i32) {
    %c0_i32 = arith.constant 0 : i32
    %c0_i32_0 = arith.constant 0 : i32
    return %arg0, %c0_i32 : i32, i32
  }
}

</mosaic_0001>

<llo_original>
// kernel: tpu_custom_call.1
$region0: #{tpu_custom_call.1}
  #allocation0 [shape = 'u32[]', space=smem, size = 0x4, offset = 0x4, fixed_abs, tag = 'smem constant byte address 0x4 - core index']
  #allocation1 [shape = 'u32[144,128]{1,0:T(1,128)}', space=vmem, size = 0x12000, scoped, tag = 'internal scratch']
  %s0 = inlined_call_operand.hbm [shape: f32[256,256], index: 0, kind: input, shape index: {}]
  %s1 = inlined_call_operand.vmem [shape: f32[256,1], index: 1, kind: input, shape index: {}]
  %s2 = inlined_call_operand.vmem [shape: f32[1,32], index: 2, kind: input, shape index: {}]
  %s3 = inlined_call_operand.vmem [shape: f32[1,32], index: 3, kind: input, shape index: {}]
  %s4 = inlined_call_operand.hbm [shape: f32[32,64], index: 4, kind: input, shape index: {}]
  %s5 = inlined_call_operand.vmem [shape: f32[1,64], index: 5, kind: input, shape index: {}]
  %s6 = inlined_call_operand.vmem [shape: f32[256,128], index: 6, kind: input, shape index: {}]
  %s7 = inlined_call_operand.hbm [shape: f32[64,128], index: 7, kind: input, shape index: {}]
  %s8 = inlined_call_operand.vmem [shape: f32[1,128], index: 8, kind: input, shape index: {}]
  %s9 = inlined_call_operand.vmem [shape: f32[1,128], index: 9, kind: input, shape index: {}]
  %s10 = inlined_call_operand.vmem [shape: f32[1,128], index: 10, kind: input, shape index: {}]
  %s11 = inlined_call_operand.hbm [shape: f32[128,128], index: 11, kind: input, shape index: {}]
  %s12 = inlined_call_operand.vmem [shape: f32[1,128], index: 12, kind: input, shape index: {}]
  %s13 = inlined_call_operand.vmem [shape: f32[1,128], index: 13, kind: input, shape index: {}]
  %s14 = inlined_call_operand.vmem [shape: f32[1,128], index: 14, kind: input, shape index: {}]
  %s15 = inlined_call_operand.hbm [shape: f32[128,256], index: 15, kind: input, shape index: {}]
  %s16 = inlined_call_operand.vmem [shape: f32[1,256], index: 16, kind: input, shape index: {}]
  %s17 = inlined_call_operand.hbm [shape: f32[256,256], index: 17, kind: output, shape index: {}]
  %s18 = sld [smem:[#allocation0]]
  $region121: #{tpu_custom_call.1} parent=0
    _
  %s20 = ssub.s32 1, %s18
  %s21 = scalar_select 0, %s20, %s18
  $region1: #{tpu_custom_call.1} parent=0
    #allocation2 [shape = 'u8[262144]{0}', space=vmem, size = 0x40000, scoped, tag = 'input window, operand 0']
    #allocation3 [shape = 's32[2]{0}', space=sflag, size = 0x8, scoped, tag = 'scoped memory for tpu_custom_call.1']
    #allocation4 [shape = 's32[2]{0}', space=sflag, size = 0x8, scoped, tag = 'scoped memory for tpu_custom_call.1']
    #allocation5 [shape = 'u8[16384]{0}', space=vmem, size = 0x4000, scoped, tag = 'input window, operand 4, single buffered']
    #allocation6 [shape = 's32[1]{0}', space=sflag, size = 0x4, scoped, tag = 'scoped memory for tpu_custom_call.1']
    #allocation7 [shape = 'u8[32768]{0}', space=vmem, size = 0x8000, scoped, tag = 'input window, operand 7, single buffered']
    #allocation8 [shape = 'u8[65536]{0}', space=vmem, size = 0x10000, scoped, tag = 'input window, operand 11, single buffered']
    #allocation9 [shape = 's32[1]{0}', space=sflag, size = 0x4, scoped, tag = 'scoped memory for tpu_custom_call.1']
    #allocation10 [shape = 'u8[131072]{0}', space=vmem, size = 0x20000, scoped, tag = 'input window, operand 15, single buffered']
    #allocation11 [shape = 'u8[262144]{0}', space=vmem, size = 0x40000, scoped, tag = 'output window, operand 0']
    %22 = vsyncpa [#allocation3], 0
    %s23 = scalar_lea.sflag [#allocation3], 1
    %24 = vsyncpa %s23, 0
    %25 = vsyncpa [#allocation6], 0
    %26 = vsyncpa [#allocation9], 0
    %27 = vsyncpa [#allocation4], 0
    %s28 = scalar_lea.sflag [#allocation4], 1
    %29 = vsyncpa %s28, 0
    loop: start=0, step=1, limit=4
    $region2: #{tpu_custom_call.1} parent=1 // loop_pre_header
      _
    $region3: #{tpu_custom_call.1} parent=1 // loop_header
      %s31 = sphi 0, %s35
      %p32 = scmp.ge.s32.totalorder %s31, 4
      %s41 = sphi 0, %s43
      %s44 = sphi 0, %s41
      %s45 = sphi 0, %s44
      %s61 = sphi 0, %s45
      %s67 = sphi 0, %s69
      %s70 = sphi 0, %s67
      %s71 = sphi 0, %s70
      %s87 = sphi 0, %s71
      %s91 = sphi 0, %s91
      %s93 = sphi 0, %s91
      %s94 = sphi 0, %s93
      %s108 = sphi 0, %s94
      %s112 = sphi 0, %s112
      %s114 = sphi 0, %s112
      %s115 = sphi 0, %s114
      %s129 = sphi 0, %s115
      %s133 = sphi 0, %s133
      %s135 = sphi 0, %s133
      %s136 = sphi 0, %s135
      %s150 = sphi 0, %s136
      %s154 = sphi 0, %s154
      %s156 = sphi 0, %s154
      %s157 = sphi 0, %s156
      %s171 = sphi 0, %s157
      %s175 = sphi 0, %s175
      %s177 = sphi 0, %s175
      %s178 = sphi 0, %s177
      %s192 = sphi 0, %s178
      %s196 = sphi 0, %s196
      %s198 = sphi 0, %s196
      %s199 = sphi 0, %s198
      %s213 = sphi 0, %s199
      %s217 = sphi 0, %s217
      %s219 = sphi 0, %s217
      %s220 = sphi 0, %s219
      %s234 = sphi 0, %s220
      %s238 = sphi 0, %s238
      %s240 = sphi 0, %s238
      %s241 = sphi 0, %s240
      %s255 = sphi 0, %s241
      %s259 = sphi 0, %s259
      %s261 = sphi 0, %s259
      %s262 = sphi 0, %s261
      %s276 = sphi 0, %s262
      %s280 = sphi 0, %s280
      %s282 = sphi 0, %s280
      %s283 = sphi 0, %s282
      %s297 = sphi 0, %s283
      %s301 = sphi 0, %s301
      %s303 = sphi 0, %s301
      %s304 = sphi 0, %s303
      %s318 = sphi 0, %s304
      %s322 = sphi 0, %s322
      %s324 = sphi 0, %s322
      %s325 = sphi 0, %s324
      %s339 = sphi 0, %s325
      %s343 = sphi 0, %s343
      %s345 = sphi 0, %s343
      %s346 = sphi 0, %s345
      %s360 = sphi 0, %s346
      %s364 = sphi 0, %s364
      %s366 = sphi 0, %s364
      %s367 = sphi 0, %s366
      %s381 = sphi 0, %s367
      %s385 = sphi 0, %s385
      %s387 = sphi 0, %s385
      %s388 = sphi 0, %s387
      %s402 = sphi 0, %s388
      %s408 = sphi 0, %s410
      %s411 = sphi 0, %s408
      %s412 = sphi 0, %s411
      %s428 = sphi 0, %s412
    $region4: #{tpu_custom_call.1} parent=1 // loop_header_branch
      %34 = sbr.rel (%p32) target = $region8
    $region5: #{tpu_custom_call.1} parent=1 // loop_body
      %s36 = ssub.s32 %s31, 1
      %s37 = ssub.s32 %s31, 2
      %s38 = sadd.s32 %s31, 1
      %s39 = ssub.s32 %s31, %s38
      %p40 = scmp.eq.s32.totalorder %s39, 0
      %s42 = sadd.s32 %s41, 1
      %s43 = scalar_select %p40, %s41, %s42
      %p46 = pneg %p40
      %p47 = scmp.eq.s32.totalorder %s31, 1
      %p48 = por %p46, %p47
      %p49 = scmp.ne.s32.totalorder %s41, %s44
      %p50 = scmp.eq.s32.totalorder %s31, 0
      %p51 = por %p49, %p50
      %p52 = scmp.ne.s32.totalorder %s41, %s44
      %p53 = scmp.eq.s32.totalorder %s36, 1
      %p54 = por %p52, %p53
      %p55 = scmp.ne.s32.totalorder %s44, %s45
      %p56 = scmp.eq.s32.totalorder %s36, 0
      %p57 = por %p55, %p56
      %p58 = scmp.ne.s32.totalorder %s44, %s45
      %p59 = scmp.eq.s32.totalorder %s37, 1
      %p60 = por %p58, %p59
      %p62 = scmp.ne.s32.totalorder %s45, %s61
      %p63 = scmp.eq.s32.totalorder %s37, 0
      %p64 = por %p62, %p63
      %s65 = ssub.s32 %s31, %s38
      %p66 = scmp.eq.s32.totalorder %s65, 0
      %s68 = sadd.s32 %s67, 1
      %s69 = scalar_select %p66, %s67, %s68
      %p72 = pneg %p66
      %p73 = scmp.eq.s32.totalorder %s31, 1
      %p74 = por %p72, %p73
      %p75 = scmp.ne.s32.totalorder %s67, %s70
      %p76 = scmp.eq.s32.totalorder %s31, 0
      %p77 = por %p75, %p76
      %p78 = scmp.ne.s32.totalorder %s67, %s70
      %p79 = scmp.eq.s32.totalorder %s36, 1
      %p80 = por %p78, %p79
      %p81 = scmp.ne.s32.totalorder %s70, %s71
      %p82 = scmp.eq.s32.totalorder %s36, 0
      %p83 = por %p81, %p82
      %p84 = scmp.ne.s32.totalorder %s70, %s71
      %p85 = scmp.eq.s32.totalorder %s37, 1
      %p86 = por %p84, %p85
      %p88 = scmp.ne.s32.totalorder %s71, %s87
      %p89 = scmp.eq.s32.totalorder %s37, 0
      %p90 = por %p88, %p89
      %s92 = sadd.s32 %s91, 1
      %p95 = scmp.eq.s32.totalorder %s31, 1
      %p96 = scmp.ne.s32.totalorder %s91, %s93
      %p97 = scmp.eq.s32.totalorder %s31, 0
      %p98 = por %p96, %p97
      %p99 = scmp.ne.s32.totalorder %s91, %s93
      %p100 = scmp.eq.s32.totalorder %s36, 1
      %p101 = por %p99, %p100
      %p102 = scmp.ne.s32.totalorder %s93, %s94
      %p103 = scmp.eq.s32.totalorder %s36, 0
      %p104 = por %p102, %p103
      %p105 = scmp.ne.s32.totalorder %s93, %s94
      %p106 = scmp.eq.s32.totalorder %s37, 1
      %p107 = por %p105, %p106
      %p109 = scmp.ne.s32.totalorder %s94, %s108
      %p110 = scmp.eq.s32.totalorder %s37, 0
      %p111 = por %p109, %p110
      %s113 = sadd.s32 %s112, 1
      %p116 = scmp.eq.s32.totalorder %s31, 1
      %p117 = scmp.ne.s32.totalorder %s112, %s114
      %p118 = scmp.eq.s32.totalorder %s31, 0
      %p119 = por %p117, %p118
      %p120 = scmp.ne.s32.totalorder %s112, %s114
      %p121 = scmp.eq.s32.totalorder %s36, 1
      %p122 = por %p120, %p121
      %p123 = scmp.ne.s32.totalorder %s114, %s115
      %p124 = scmp.eq.s32.totalorder %s36, 0
      %p125 = por %p123, %p124
      %p126 = scmp.ne.s32.totalorder %s114, %s115
      %p127 = scmp.eq.s32.totalorder %s37, 1
      %p128 = por %p126, %p127
      %p130 = scmp.ne.s32.totalorder %s115, %s129
      %p131 = scmp.eq.s32.totalorder %s37, 0
      %p132 = por %p130, %p131
      %s134 = sadd.s32 %s133, 1
      %p137 = scmp.eq.s32.totalorder %s31, 1
      %p138 = scmp.ne.s32.totalorder %s133, %s135
      %p139 = scmp.eq.s32.totalorder %s31, 0
      %p140 = por %p138, %p139
      %p141 = scmp.ne.s32.totalorder %s133, %s135
      %p142 = scmp.eq.s32.totalorder %s36, 1
      %p143 = por %p141, %p142
      %p144 = scmp.ne.s32.totalorder %s135, %s136
      %p145 = scmp.eq.s32.totalorder %s36, 0
      %p146 = por %p144, %p145
      %p147 = scmp.ne.s32.totalorder %s135, %s136
      %p148 = scmp.eq.s32.totalorder %s37, 1
      %p149 = por %p147, %p148
      %p151 = scmp.ne.s32.totalorder %s136, %s150
      %p152 = scmp.eq.s32.totalorder %s37, 0
      %p153 = por %p151, %p152
      %s155 = sadd.s32 %s154, 1
      %p158 = scmp.eq.s32.totalorder %s31, 1
      %p159 = scmp.ne.s32.totalorder %s154, %s156
      %p160 = scmp.eq.s32.totalorder %s31, 0
      %p161 = por %p159, %p160
      %p162 = scmp.ne.s32.totalorder %s154, %s156
      %p163 = scmp.eq.s32.totalorder %s36, 1
      %p164 = por %p162, %p163
      %p165 = scmp.ne.s32.totalorder %s156, %s157
      %p166 = scmp.eq.s32.totalorder %s36, 0
      %p167 = por %p165, %p166
      %p168 = scmp.ne.s32.totalorder %s156, %s157
      %p169 = scmp.eq.s32.totalorder %s37, 1
      %p170 = por %p168, %p169
      %p172 = scmp.ne.s32.totalorder %s157, %s171
      %p173 = scmp.eq.s32.totalorder %s37, 0
      %p174 = por %p172, %p173
      %s176 = sadd.s32 %s175, 1
      %p179 = scmp.eq.s32.totalorder %s31, 1
      %p180 = scmp.ne.s32.totalorder %s175, %s177
      %p181 = scmp.eq.s32.totalorder %s31, 0
      %p182 = por %p180, %p181
      %p183 = scmp.ne.s32.totalorder %s175, %s177
      %p184 = scmp.eq.s32.totalorder %s36, 1
      %p185 = por %p183, %p184
      %p186 = scmp.ne.s32.totalorder %s177, %s178
      %p187 = scmp.eq.s32.totalorder %s36, 0
      %p188 = por %p186, %p187
      %p189 = scmp.ne.s32.totalorder %s177, %s178
      %p190 = scmp.eq.s32.totalorder %s37, 1
      %p191 = por %p189, %p190
      %p193 = scmp.ne.s32.totalorder %s178, %s192
      %p194 = scmp.eq.s32.totalorder %s37, 0
      %p195 = por %p193, %p194
      %s197 = sadd.s32 %s196, 1
      %p200 = scmp.eq.s32.totalorder %s31, 1
      %p201 = scmp.ne.s32.totalorder %s196, %s198
      %p202 = scmp.eq.s32.totalorder %s31, 0
      %p203 = por %p201, %p202
      %p204 = scmp.ne.s32.totalorder %s196, %s198
      %p205 = scmp.eq.s32.totalorder %s36, 1
      %p206 = por %p204, %p205
      %p207 = scmp.ne.s32.totalorder %s198, %s199
      %p208 = scmp.eq.s32.totalorder %s36, 0
      %p209 = por %p207, %p208
      %p210 = scmp.ne.s32.totalorder %s198, %s199
      %p211 = scmp.eq.s32.totalorder %s37, 1
      %p212 = por %p210, %p211
      %p214 = scmp.ne.s32.totalorder %s199, %s213
      %p215 = scmp.eq.s32.totalorder %s37, 0
      %p216 = por %p214, %p215
      %s218 = sadd.s32 %s217, 1
      %p221 = scmp.eq.s32.totalorder %s31, 1
      %p222 = scmp.ne.s32.totalorder %s217, %s219
      %p223 = scmp.eq.s32.totalorder %s31, 0
      %p224 = por %p222, %p223
      %p225 = scmp.ne.s32.totalorder %s217, %s219
      %p226 = scmp.eq.s32.totalorder %s36, 1
      %p227 = por %p225, %p226
      %p228 = scmp.ne.s32.totalorder %s219, %s220
      %p229 = scmp.eq.s32.totalorder %s36, 0
      %p230 = por %p228, %p229
      %p231 = scmp.ne.s32.totalorder %s219, %s220
      %p232 = scmp.eq.s32.totalorder %s37, 1
      %p233 = por %p231, %p232
      %p235 = scmp.ne.s32.totalorder %s220, %s234
      %p236 = scmp.eq.s32.totalorder %s37, 0
      %p237 = por %p235, %p236
      %s239 = sadd.s32 %s238, 1
      %p242 = scmp.eq.s32.totalorder %s31, 1
      %p243 = scmp.ne.s32.totalorder %s238, %s240
      %p244 = scmp.eq.s32.totalorder %s31, 0
      %p245 = por %p243, %p244
      %p246 = scmp.ne.s32.totalorder %s238, %s240
      %p247 = scmp.eq.s32.totalorder %s36, 1
      %p248 = por %p246, %p247
      %p249 = scmp.ne.s32.totalorder %s240, %s241
      %p250 = scmp.eq.s32.totalorder %s36, 0
      %p251 = por %p249, %p250
      %p252 = scmp.ne.s32.totalorder %s240, %s241
      %p253 = scmp.eq.s32.totalorder %s37, 1
      %p254 = por %p252, %p253
      %p256 = scmp.ne.s32.totalorder %s241, %s255
      %p257 = scmp.eq.s32.totalorder %s37, 0
      %p258 = por %p256, %p257
      %s260 = sadd.s32 %s259, 1
      %p263 = scmp.eq.s32.totalorder %s31, 1
      %p264 = scmp.ne.s32.totalorder %s259, %s261
      %p265 = scmp.eq.s32.totalorder %s31, 0
      %p266 = por %p264, %p265
      %p267 = scmp.ne.s32.totalorder %s259, %s261
      %p268 = scmp.eq.s32.totalorder %s36, 1
      %p269 = por %p267, %p268
      %p270 = scmp.ne.s32.totalorder %s261, %s262
      %p271 = scmp.eq.s32.totalorder %s36, 0
      %p272 = por %p270, %p271
      %p273 = scmp.ne.s32.totalorder %s261, %s262
      %p274 = scmp.eq.s32.totalorder %s37, 1
      %p275 = por %p273, %p274
      %p277 = scmp.ne.s32.totalorder %s262, %s276
      %p278 = scmp.eq.s32.totalorder %s37, 0
      %p279 = por %p277, %p278
      %s281 = sadd.s32 %s280, 1
      %p284 = scmp.eq.s32.totalorder %s31, 1
      %p285 = scmp.ne.s32.totalorder %s280, %s282
      %p286 = scmp.eq.s32.totalorder %s31, 0
      %p287 = por %p285, %p286
      %p288 = scmp.ne.s32.totalorder %s280, %s282
      %p289 = scmp.eq.s32.totalorder %s36, 1
      %p290 = por %p288, %p289
      %p291 = scmp.ne.s32.totalorder %s282, %s283
      %p292 = scmp.eq.s32.totalorder %s36, 0
      %p293 = por %p291, %p292
      %p294 = scmp.ne.s32.totalorder %s282, %s283
      %p295 = scmp.eq.s32.totalorder %s37, 1
      %p296 = por %p294, %p295
      %p298 = scmp.ne.s32.totalorder %s283, %s297
      %p299 = scmp.eq.s32.totalorder %s37, 0
      %p300 = por %p298, %p299
      %s302 = sadd.s32 %s301, 1
      %p305 = scmp.eq.s32.totalorder %s31, 1
      %p306 = scmp.ne.s32.totalorder %s301, %s303
      %p307 = scmp.eq.s32.totalorder %s31, 0
      %p308 = por %p306, %p307
      %p309 = scmp.ne.s32.totalorder %s301, %s303
      %p310 = scmp.eq.s32.totalorder %s36, 1
      %p311 = por %p309, %p310
      %p312 = scmp.ne.s32.totalorder %s303, %s304
      %p313 = scmp.eq.s32.totalorder %s36, 0
      %p314 = por %p312, %p313
      %p315 = scmp.ne.s32.totalorder %s303, %s304
      %p316 = scmp.eq.s32.totalorder %s37, 1
      %p317 = por %p315, %p316
      %p319 = scmp.ne.s32.totalorder %s304, %s318
      %p320 = scmp.eq.s32.totalorder %s37, 0
      %p321 = por %p319, %p320
      %s323 = sadd.s32 %s322, 1
      %p326 = scmp.eq.s32.totalorder %s31, 1
      %p327 = scmp.ne.s32.totalorder %s322, %s324
      %p328 = scmp.eq.s32.totalorder %s31, 0
      %p329 = por %p327, %p328
      %p330 = scmp.ne.s32.totalorder %s322, %s324
      %p331 = scmp.eq.s32.totalorder %s36, 1
      %p332 = por %p330, %p331
      %p333 = scmp.ne.s32.totalorder %s324, %s325
      %p334 = scmp.eq.s32.totalorder %s36, 0
      %p335 = por %p333, %p334
      %p336 = scmp.ne.s32.totalorder %s324, %s325
      %p337 = scmp.eq.s32.totalorder %s37, 1
      %p338 = por %p336, %p337
      %p340 = scmp.ne.s32.totalorder %s325, %s339
      %p341 = scmp.eq.s32.totalorder %s37, 0
      %p342 = por %p340, %p341
      %s344 = sadd.s32 %s343, 1
      %p347 = scmp.eq.s32.totalorder %s31, 1
      %p348 = scmp.ne.s32.totalorder %s343, %s345
      %p349 = scmp.eq.s32.totalorder %s31, 0
      %p350 = por %p348, %p349
      %p351 = scmp.ne.s32.totalorder %s343, %s345
      %p352 = scmp.eq.s32.totalorder %s36, 1
      %p353 = por %p351, %p352
      %p354 = scmp.ne.s32.totalorder %s345, %s346
      %p355 = scmp.eq.s32.totalorder %s36, 0
      %p356 = por %p354, %p355
      %p357 = scmp.ne.s32.totalorder %s345, %s346
      %p358 = scmp.eq.s32.totalorder %s37, 1
      %p359 = por %p357, %p358
      %p361 = scmp.ne.s32.totalorder %s346, %s360
      %p362 = scmp.eq.s32.totalorder %s37, 0
      %p363 = por %p361, %p362
      %s365 = sadd.s32 %s364, 1
      %p368 = scmp.eq.s32.totalorder %s31, 1
      %p369 = scmp.ne.s32.totalorder %s364, %s366
      %p370 = scmp.eq.s32.totalorder %s31, 0
      %p371 = por %p369, %p370
      %p372 = scmp.ne.s32.totalorder %s364, %s366
      %p373 = scmp.eq.s32.totalorder %s36, 1
      %p374 = por %p372, %p373
      %p375 = scmp.ne.s32.totalorder %s366, %s367
      %p376 = scmp.eq.s32.totalorder %s36, 0
      %p377 = por %p375, %p376
      %p378 = scmp.ne.s32.totalorder %s366, %s367
      %p379 = scmp.eq.s32.totalorder %s37, 1
      %p380 = por %p378, %p379
      %p382 = scmp.ne.s32.totalorder %s367, %s381
      %p383 = scmp.eq.s32.totalorder %s37, 0
      %p384 = por %p382, %p383
      %s386 = sadd.s32 %s385, 1
      %p389 = scmp.eq.s32.totalorder %s31, 1
      %p390 = scmp.ne.s32.totalorder %s385, %s387
      %p391 = scmp.eq.s32.totalorder %s31, 0
      %p392 = por %p390, %p391
      %p393 = scmp.ne.s32.totalorder %s385, %s387
      %p394 = scmp.eq.s32.totalorder %s36, 1
      %p395 = por %p393, %p394
      %p396 = scmp.ne.s32.totalorder %s387, %s388
      %p397 = scmp.eq.s32.totalorder %s36, 0
      %p398 = por %p396, %p397
      %p399 = scmp.ne.s32.totalorder %s387, %s388
      %p400 = scmp.eq.s32.totalorder %s37, 1
      %p401 = por %p399, %p400
      %p403 = scmp.ne.s32.totalorder %s388, %s402
      %p404 = scmp.eq.s32.totalorder %s37, 0
      %p405 = por %p403, %p404
      %s406 = ssub.s32 %s31, %s38
      %p407 = scmp.eq.s32.totalorder %s406, 0
      %s409 = sadd.s32 %s408, 1
      %s410 = scalar_select %p407, %s408, %s409
      %p413 = pneg %p407
      %p414 = scmp.eq.s32.totalorder %s31, 1
      %p415 = por %p413, %p414
      %p416 = scmp.ne.s32.totalorder %s408, %s411
      %p417 = scmp.eq.s32.totalorder %s31, 0
      %p418 = por %p416, %p417
      %p419 = scmp.ne.s32.totalorder %s408, %s411
      %p420 = scmp.eq.s32.totalorder %s36, 1
      %p421 = por %p419, %p420
      %p422 = scmp.ne.s32.totalorder %s411, %s412
      %p423 = scmp.eq.s32.totalorder %s36, 0
      %p424 = por %p422, %p423
      %p425 = scmp.ne.s32.totalorder %s411, %s412
      %p426 = scmp.eq.s32.totalorder %s37, 1
      %p427 = por %p425, %p426
      %p429 = scmp.ne.s32.totalorder %s412, %s428
      %p430 = scmp.eq.s32.totalorder %s37, 0
      %p431 = por %p429, %p430
      %p432 = scmp.le.s32.totalorder 1, %s31
      %p433 = scmp.lt.s32.totalorder %s31, 3
      %p434 = pnand %p432, %p433
      %p435 = pneg %p434
      // Predicated region
      $region9: #{tpu_custom_call.1} parent=5 // pred_check
        _
      $region10: #{tpu_custom_call.1} parent=5 // pred_check_branch
        %437 = sbr.rel (%p434) target = $region12
      $region11: #{tpu_custom_call.1} parent=5 // pred_region
        %s438 = ssub.s32 %s31, 1
        // Predicated region
        $region13: #{tpu_custom_call.1} parent=11 // pred_check
          %p439 = pneg %p104
        $region14: #{tpu_custom_call.1} parent=11 // pred_check_branch
          %441 = sbr.rel (%p439) target = $region16
        $region15: #{tpu_custom_call.1} parent=11 // pred_region
          _
        $region16: #{tpu_custom_call.1} parent=11 // pred_fallthru
          _
        // Predicated region
        $region17: #{tpu_custom_call.1} parent=11 // pred_check
          %p442 = pneg %p125
        $region18: #{tpu_custom_call.1} parent=11 // pred_check_branch
          %444 = sbr.rel (%p442) target = $region20
        $region19: #{tpu_custom_call.1} parent=11 // pred_region
          _
        $region20: #{tpu_custom_call.1} parent=11 // pred_fallthru
          _
        // Predicated region
        $region21: #{tpu_custom_call.1} parent=11 // pred_check
          %p445 = pneg %p146
        $region22: #{tpu_custom_call.1} parent=11 // pred_check_branch
          %447 = sbr.rel (%p445) target = $region24
        $region23: #{tpu_custom_call.1} parent=11 // pred_region
          %s449 = ssub.s32 512, 512
          %450 = vsyncadd [#allocation6], %s449
          %s451 = sshll.u32 [#allocation5], 4
          %s452 = int_to_ptr.vmem [resolvable:$true] %s451
          %457 = dma.hbm_to_vmem [thread:$0]  %s4, 512, %s452, [#allocation6], 128, 128, 8
        $region24: #{tpu_custom_call.1} parent=11 // pred_fallthru
          _
        // Predicated region
        $region25: #{tpu_custom_call.1} parent=11 // pred_check
          %p458 = pneg %p167
        $region26: #{tpu_custom_call.1} parent=11 // pred_check_branch
          %460 = sbr.rel (%p458) target = $region28
        $region27: #{tpu_custom_call.1} parent=11 // pred_region
          _
        $region28: #{tpu_custom_call.1} parent=11 // pred_fallthru
          _
        // Predicated region
        $region29: #{tpu_custom_call.1} parent=11 // pred_check
          %p461 = pneg %p188
        $region30: #{tpu_custom_call.1} parent=11 // pred_check_branch
          %463 = sbr.rel (%p461) target = $region32
        $region31: #{tpu_custom_call.1} parent=11 // pred_region
          _
        $region32: #{tpu_custom_call.1} parent=11 // pred_fallthru
          _
        // Predicated region
        $region33: #{tpu_custom_call.1} parent=11 // pred_check
          %p464 = pneg %p209
        $region34: #{tpu_custom_call.1} parent=11 // pred_check_branch
          %466 = sbr.rel (%p464) target = $region36
        $region35: #{tpu_custom_call.1} parent=11 // pred_region
          %s468 = ssub.s32 1024, 1024
          %469 = vsyncadd [#allocation6], %s468
          %s470 = sshll.u32 [#allocation7], 4
          %s471 = int_to_ptr.vmem [resolvable:$true] %s470
          %476 = dma.hbm_to_vmem [thread:$0]  %s7, 1024, %s471, [#allocation6], 128, 128, 8
        $region36: #{tpu_custom_call.1} parent=11 // pred_fallthru
          _
        // Predicated region
        $region37: #{tpu_custom_call.1} parent=11 // pred_check
          %p477 = pneg %p230
        $region38: #{tpu_custom_call.1} parent=11 // pred_check_branch
          %479 = sbr.rel (%p477) target = $region40
        $region39: #{tpu_custom_call.1} parent=11 // pred_region
          _
        $region40: #{tpu_custom_call.1} parent=11 // pred_fallthru
          _
        // Predicated region
        $region41: #{tpu_custom_call.1} parent=11 // pred_check
          %p480 = pneg %p251
        $region42: #{tpu_custom_call.1} parent=11 // pred_check_branch
          %482 = sbr.rel (%p480) target = $region44
        $region43: #{tpu_custom_call.1} parent=11 // pred_region
          _
        $region44: #{tpu_custom_call.1} parent=11 // pred_fallthru
          _
        // Predicated region
        $region45: #{tpu_custom_call.1} parent=11 // pred_check
          %p483 = pneg %p272
        $region46: #{tpu_custom_call.1} parent=11 // pred_check_branch
          %485 = sbr.rel (%p483) target = $region48
        $region47: #{tpu_custom_call.1} parent=11 // pred_region
          _
        $region48: #{tpu_custom_call.1} parent=11 // pred_fallthru
          _
        // Predicated region
        $region49: #{tpu_custom_call.1} parent=11 // pred_check
          %p486 = pneg %p293
        $region50: #{tpu_custom_call.1} parent=11 // pred_check_branch
          %488 = sbr.rel (%p486) target = $region52
        $region51: #{tpu_custom_call.1} parent=11 // pred_region
          %s490 = ssub.s32 2048, 2048
          %491 = vsyncadd [#allocation9], %s490
          %s492 = sshll.u32 [#allocation8], 4
          %s493 = int_to_ptr.vmem [resolvable:$true] %s492
          %498 = dma.hbm_to_vmem [thread:$0]  %s11, 2048, %s493, [#allocation9], 128, 128, 8
        $region52: #{tpu_custom_call.1} parent=11 // pred_fallthru
          _
        // Predicated region
        $region53: #{tpu_custom_call.1} parent=11 // pred_check
          %p499 = pneg %p314
        $region54: #{tpu_custom_call.1} parent=11 // pred_check_branch
          %501 = sbr.rel (%p499) target = $region56
        $region55: #{tpu_custom_call.1} parent=11 // pred_region
          _
        $region56: #{tpu_custom_call.1} parent=11 // pred_fallthru
          _
        // Predicated region
        $region57: #{tpu_custom_call.1} parent=11 // pred_check
          %p502 = pneg %p335
        $region58: #{tpu_custom_call.1} parent=11 // pred_check_branch
          %504 = sbr.rel (%p502) target = $region60
        $region59: #{tpu_custom_call.1} parent=11 // pred_region
          _
        $region60: #{tpu_custom_call.1} parent=11 // pred_fallthru
          _
        // Predicated region
        $region61: #{tpu_custom_call.1} parent=11 // pred_check
          %p505 = pneg %p356
        $region62: #{tpu_custom_call.1} parent=11 // pred_check_branch
          %507 = sbr.rel (%p505) target = $region64
        $region63: #{tpu_custom_call.1} parent=11 // pred_region
          _
        $region64: #{tpu_custom_call.1} parent=11 // pred_fallthru
          _
        // Predicated region
        $region65: #{tpu_custom_call.1} parent=11 // pred_check
          %p508 = pneg %p377
        $region66: #{tpu_custom_call.1} parent=11 // pred_check_branch
          %510 = sbr.rel (%p508) target = $region68
        $region67: #{tpu_custom_call.1} parent=11 // pred_region
          %s512 = ssub.s32 4096, 4096
          %513 = vsyncadd [#allocation9], %s512
          %s514 = sshll.u32 [#allocation10], 4
          %s515 = int_to_ptr.vmem [resolvable:$true] %s514
          %520 = dma.hbm_to_vmem [thread:$0]  %s15, 4096, %s515, [#allocation9], 256, 256, 16
        $region68: #{tpu_custom_call.1} parent=11 // pred_fallthru
          _
        // Predicated region
        $region69: #{tpu_custom_call.1} parent=11 // pred_check
          %p521 = pneg %p398
        $region70: #{tpu_custom_call.1} parent=11 // pred_check_branch
          %523 = sbr.rel (%p521) target = $region72
        $region71: #{tpu_custom_call.1} parent=11 // pred_region
          _
        $region72: #{tpu_custom_call.1} parent=11 // pred_fallthru
          _
      $region12: #{tpu_custom_call.1} parent=5 // pred_fallthru
        _
      %p524 = scmp.lt.s32.totalorder %s31, 2
      // Predicated region
      $region73: #{tpu_custom_call.1} parent=5 // pred_check
        %p525 = pneg %p524
      $region74: #{tpu_custom_call.1} parent=5 // pred_check_branch
        %527 = sbr.rel (%p525) target = $region76
      $region75: #{tpu_custom_call.1} parent=5 // pred_region
        // Predicated region
        $region77: #{tpu_custom_call.1} parent=75 // pred_check
          %p528 = pneg %p51
        $region78: #{tpu_custom_call.1} parent=75 // pred_check_branch
          %530 = sbr.rel (%p528) target = $region80
        $region79: #{tpu_custom_call.1} parent=75 // pred_region
          %s531 = sand.u32 %s41, 1
          %s532 = scalar_lea.sflag [#allocation3], %s531
          %s533 = sand.u32 %s41, 1
          %s534 = smul.addr %s533, 256
          %s535 = scalar_lea.vmem [#allocation2], %s534
          %s536 = smul.u32 16, %s31
          %s538 = ssub.s32 4096, 4096
          %539 = vsyncadd %s532, %s538
          %s540 = smul.addr %s536, 2
          %s541 = smul.addr %s540, 128
          %s542 = scalar_lea.hbm %s0, %s541
          %s543 = sshll.u32 %s535, 4
          %s544 = int_to_ptr.vmem [resolvable:$true] %s543
          %549 = dma.hbm_to_vmem [thread:$0]  %s542, 4096, %s544, %s532, 256, 256, 16
        $region80: #{tpu_custom_call.1} parent=75 // pred_fallthru
          _
        // Predicated region
        $region81: #{tpu_custom_call.1} parent=75 // pred_check
          %p550 = pneg %p77
        $region82: #{tpu_custom_call.1} parent=75 // pred_check_branch
          %552 = sbr.rel (%p550) target = $region84
        $region83: #{tpu_custom_call.1} parent=75 // pred_region
          %s553 = smul.u32 16, %s31
          %p554 = scmp.lt.s32.totalorder %s553, 31
          %s555 = scalar_select %p554, %s553, 31
          %s556 = smul.addr %s555, 8
          %s557 = scalar_lea.vmem %s1, %s556
          %s558 = smul.u32 16, %s31
        $region84: #{tpu_custom_call.1} parent=75 // pred_fallthru
          _
      $region76: #{tpu_custom_call.1} parent=5 // pred_fallthru
        _
      %p559 = scmp.le.s32.totalorder 1, %s31
      %p560 = scmp.lt.s32.totalorder %s31, 3
      %p561 = pnand %p559, %p560
      %p562 = pneg %p561
      // Predicated region
      $region85: #{tpu_custom_call.1} parent=5 // pred_check
        _
      $region86: #{tpu_custom_call.1} parent=5 // pred_check_branch
        %564 = sbr.rel (%p561) target = $region88
      $region87: #{tpu_custom_call.1} parent=5 // pred_region
        %s565 = ssub.s32 %s31, 1
        %s566 = sand.u32 %s44, 1
        %s567 = scalar_lea.sflag [#allocation3], %s566
        %s568 = sand.u32 %s44, 1
        %s569 = smul.addr %s568, 256
        %s570 = scalar_lea.vmem [#allocation2], %s569
        // Predicated region
        $region89: #{tpu_custom_call.1} parent=87 // pred_check
          %p571 = pneg %p57
        $region90: #{tpu_custom_call.1} parent=87 // pred_check_branch
          %573 = sbr.rel (%p571) target = $region92
        $region91: #{tpu_custom_call.1} parent=87 // pred_region
          %574 = dma.done %s567, 4096
        $region92: #{tpu_custom_call.1} parent=87 // pred_fallthru
          _
        // Predicated region
        $region93: #{tpu_custom_call.1} parent=87 // pred_check
          %p575 = pneg %p146
        $region94: #{tpu_custom_call.1} parent=87 // pred_check_branch
          %577 = sbr.rel (%p575) target = $region96
        $region95: #{tpu_custom_call.1} parent=87 // pred_region
          %578 = dma.done [#allocation6], 512
        $region96: #{tpu_custom_call.1} parent=87 // pred_fallthru
          _
        // Predicated region
        $region97: #{tpu_custom_call.1} parent=87 // pred_check
          %p579 = pneg %p209
        $region98: #{tpu_custom_call.1} parent=87 // pred_check_branch
          %581 = sbr.rel (%p579) target = $region100
        $region99: #{tpu_custom_call.1} parent=87 // pred_region
          %582 = dma.done [#allocation6], 1024
        $region100: #{tpu_custom_call.1} parent=87 // pred_fallthru
          _
        // Predicated region
        $region101: #{tpu_custom_call.1} parent=87 // pred_check
          %p583 = pneg %p293
        $region102: #{tpu_custom_call.1} parent=87 // pred_check_branch
          %585 = sbr.rel (%p583) target = $region104
        $region103: #{tpu_custom_call.1} parent=87 // pred_region
          %586 = dma.done [#allocation9], 2048
        $region104: #{tpu_custom_call.1} parent=87 // pred_fallthru
          _
        // Predicated region
        $region105: #{tpu_custom_call.1} parent=87 // pred_check
          %p587 = pneg %p377
        $region106: #{tpu_custom_call.1} parent=87 // pred_check_branch
          %589 = sbr.rel (%p587) target = $region108
        $region107: #{tpu_custom_call.1} parent=87 // pred_region
          %590 = dma.done [#allocation9], 4096
        $region108: #{tpu_custom_call.1} parent=87 // pred_fallthru
          _
        %s591 = sand.u32 %s44, 1
        %s592 = scalar_lea.sflag [#allocation3], %s591
        %s593 = sand.u32 %s44, 1
        %s594 = smul.addr %s593, 256
        %s595 = scalar_lea.vmem [#allocation2], %s594
        %p596 = pneg %p57
        %p597 = pneg %p54
        %s598 = smul.u32 16, %s36
        %p599 = scmp.lt.s32.totalorder %s598, 31
        %s600 = scalar_select %p599, %s598, 31
        %s601 = smul.addr %s600, 8
        %s602 = scalar_lea.vmem %s1, %s601
        %p603 = pneg %p83
        %p604 = pneg %p80
        %p605 = pneg %p104
        %p606 = pneg %p101
        %p607 = pneg %p125
        %p608 = pneg %p122
        %p609 = pneg %p146
        %p610 = pneg %p143
        %p611 = pneg %p167
        %p612 = pneg %p164
        %p613 = pneg %p188
        %p614 = pneg %p185
        %p615 = pneg %p209
        %p616 = pneg %p206
        %p617 = pneg %p230
        %p618 = pneg %p227
        %p619 = pneg %p251
        %p620 = pneg %p248
        %p621 = pneg %p272
        %p622 = pneg %p269
        %p623 = pneg %p293
        %p624 = pneg %p290
        %p625 = pneg %p314
        %p626 = pneg %p311
        %p627 = pneg %p335
        %p628 = pneg %p332
        %p629 = pneg %p356
        %p630 = pneg %p353
        %p631 = pneg %p377
        %p632 = pneg %p374
        %p633 = pneg %p398
        %p634 = pneg %p395
        %p635 = pneg %p424
        %p636 = pneg %p421
        %s637 = sand.u32 %s411, 1
        %s638 = scalar_lea.sflag [#allocation4], %s637
        %s639 = sand.u32 %s411, 1
        %s640 = smul.addr %s639, 256
        %s641 = scalar_lea.vmem [#allocation11], %s640
        %s642 = smul.u32 16, %s36
        %s643 = smul.u32 16, %s36
        %p644 = scmp.lt.s32.totalorder %s643, 31
        %s645 = scalar_select %p644, %s643, 31
        %s646 = smul.addr %s645, 8
        %s647 = scalar_lea.vmem %s1, %s646
        %s648 = smul.u32 16, %s36
        %s649 = smul.u32 16, %s36
        %v650 = vld [vmem:[%s570] sm:$0xff]
        %v651 = vld [vmem:[%s570 + $0x8] sm:$0xff]
        %v652 = vld [vmem:[%s570 + $0x10] sm:$0xff]
        %v653 = vld [vmem:[%s570 + $0x18] sm:$0xff]
        %v654 = vld [vmem:[%s570 + $0x20] sm:$0xff]
        %v655 = vld [vmem:[%s570 + $0x28] sm:$0xff]
        %v656 = vld [vmem:[%s570 + $0x30] sm:$0xff]
        %v657 = vld [vmem:[%s570 + $0x38] sm:$0xff]
        %v658 = vld [vmem:[%s570 + $0x40] sm:$0xff]
        %v659 = vld [vmem:[%s570 + $0x48] sm:$0xff]
        %v660 = vld [vmem:[%s570 + $0x50] sm:$0xff]
        %v661 = vld [vmem:[%s570 + $0x58] sm:$0xff]
        %v662 = vld [vmem:[%s570 + $0x60] sm:$0xff]
        %v663 = vld [vmem:[%s570 + $0x68] sm:$0xff]
        %v664 = vld [vmem:[%s570 + $0x70] sm:$0xff]
        %v665 = vld [vmem:[%s570 + $0x78] sm:$0xff]
        %v666 = vld [vmem:[%s570 + $0x80] sm:$0xff]
        %v667 = vld [vmem:[%s570 + $0x88] sm:$0xff]
        %v668 = vld [vmem:[%s570 + $0x90] sm:$0xff]
        %v669 = vld [vmem:[%s570 + $0x98] sm:$0xff]
        %v670 = vld [vmem:[%s570 + $0xa0] sm:$0xff]
        %v671 = vld [vmem:[%s570 + $0xa8] sm:$0xff]
        %v672 = vld [vmem:[%s570 + $0xb0] sm:$0xff]
        %v673 = vld [vmem:[%s570 + $0xb8] sm:$0xff]
        %v674 = vld [vmem:[%s570 + $0xc0] sm:$0xff]
        %v675 = vld [vmem:[%s570 + $0xc8] sm:$0xff]
        %v676 = vld [vmem:[%s570 + $0xd0] sm:$0xff]
        %v677 = vld [vmem:[%s570 + $0xd8] sm:$0xff]
        %v678 = vld [vmem:[%s570 + $0xe0] sm:$0xff]
        %v679 = vld [vmem:[%s570 + $0xe8] sm:$0xff]
        %v680 = vld [vmem:[%s570 + $0xf0] sm:$0xff]
        %v681 = vld [vmem:[%s570 + $0xf8] sm:$0xff]
        %v682 = vld [vmem:[%s647] sm:$0xff]
        %v683 = vld [vmem:[%s647 + $0x8] sm:$0xff]
        %v684 = vld [vmem:[%s647 + $0x10] sm:$0xff]
        %v685 = vld [vmem:[%s647 + $0x18] sm:$0xff]
        %v686 = vld [vmem:[%s647 + $0x20] sm:$0xff]
        %v687 = vld [vmem:[%s647 + $0x28] sm:$0xff]
        %v688 = vld [vmem:[%s647 + $0x30] sm:$0xff]
        %v689 = vld [vmem:[%s647 + $0x38] sm:$0xff]
        %v690 = vld [vmem:[%s647 + $0x40] sm:$0xff]
        %v691 = vld [vmem:[%s647 + $0x48] sm:$0xff]
        %v692 = vld [vmem:[%s647 + $0x50] sm:$0xff]
        %v693 = vld [vmem:[%s647 + $0x58] sm:$0xff]
        %v694 = vld [vmem:[%s647 + $0x60] sm:$0xff]
        %v695 = vld [vmem:[%s647 + $0x68] sm:$0xff]
        %v696 = vld [vmem:[%s647 + $0x70] sm:$0xff]
        %v697 = vld [vmem:[%s647 + $0x78] sm:$0xff]
        %v698 = vld [vmem:[%s2] sm:$0x1]
        %700 = vset.pattern.permute.xlu0 0
        %701 = vperm.xlu0 %700, %v682
        %v702 = vpop.permute.xlu0 %701
        %705 = vset.pattern.permute.xlu0 0
        %706 = vperm.xlu0 %705, %v683
        %v707 = vpop.permute.xlu0 %706
        %710 = vset.pattern.permute.xlu0 0
        %711 = vperm.xlu0 %710, %v684
        %v712 = vpop.permute.xlu0 %711
        %715 = vset.pattern.permute.xlu0 0
        %716 = vperm.xlu0 %715, %v685
        %v717 = vpop.permute.xlu0 %716
        %720 = vset.pattern.permute.xlu0 0
        %721 = vperm.xlu0 %720, %v686
        %v722 = vpop.permute.xlu0 %721
        %725 = vset.pattern.permute.xlu0 0
        %726 = vperm.xlu0 %725, %v687
        %v727 = vpop.permute.xlu0 %726
        %730 = vset.pattern.permute.xlu0 0
        %731 = vperm.xlu0 %730, %v688
        %v732 = vpop.permute.xlu0 %731
        %735 = vset.pattern.permute.xlu0 0
        %736 = vperm.xlu0 %735, %v689
        %v737 = vpop.permute.xlu0 %736
        %740 = vset.pattern.permute.xlu0 0
        %741 = vperm.xlu0 %740, %v690
        %v742 = vpop.permute.xlu0 %741
        %745 = vset.pattern.permute.xlu0 0
        %746 = vperm.xlu0 %745, %v691
        %v747 = vpop.permute.xlu0 %746
        %750 = vset.pattern.permute.xlu0 0
        %751 = vperm.xlu0 %750, %v692
        %v752 = vpop.permute.xlu0 %751
        %755 = vset.pattern.permute.xlu0 0
        %756 = vperm.xlu0 %755, %v693
        %v757 = vpop.permute.xlu0 %756
        %760 = vset.pattern.permute.xlu0 0
        %761 = vperm.xlu0 %760, %v694
        %v762 = vpop.permute.xlu0 %761
        %765 = vset.pattern.permute.xlu0 0
        %766 = vperm.xlu0 %765, %v695
        %v767 = vpop.permute.xlu0 %766
        %770 = vset.pattern.permute.xlu0 0
        %771 = vperm.xlu0 %770, %v696
        %v772 = vpop.permute.xlu0 %771
        %775 = vset.pattern.permute.xlu0 0
        %776 = vperm.xlu0 %775, %v697
        %v777 = vpop.permute.xlu0 %776
        %v780 = vlaneseq
        %v781 = vshrl.u32 %v780, 7
        %v782 = vsub.s32 0, %v781
        %v783 = vrot.slane %v698, %v782
        %v785 = vmul.f32 %v702, %v783
        %v786 = vmul.f32 %v707, %v783
        %v787 = vmul.f32 %v712, %v783
        %v788 = vmul.f32 %v717, %v783
        %v789 = vmul.f32 %v722, %v783
        %v790 = vmul.f32 %v727, %v783
        %v791 = vmul.f32 %v732, %v783
        %v792 = vmul.f32 %v737, %v783
        %v793 = vmul.f32 %v742, %v783
        %v794 = vmul.f32 %v747, %v783
        %v795 = vmul.f32 %v752, %v783
        %v796 = vmul.f32 %v757, %v783
        %v797 = vmul.f32 %v762, %v783
        %v798 = vmul.f32 %v767, %v783
        %v799 = vmul.f32 %v772, %v783
        %v800 = vmul.f32 %v777, %v783
        %v801 = vld [vmem:[%s3] sm:$0x1]
        %v803 = vlaneseq
        %v804 = vshrl.u32 %v803, 7
        %v805 = vsub.s32 0, %v804
        %v806 = vrot.slane %v801, %v805
        %v808 = vadd.f32 %v785, %v806
        %v809 = vadd.f32 %v786, %v806
        %v810 = vadd.f32 %v787, %v806
        %v811 = vadd.f32 %v788, %v806
        %v812 = vadd.f32 %v789, %v806
        %v813 = vadd.f32 %v790, %v806
        %v814 = vadd.f32 %v791, %v806
        %v815 = vadd.f32 %v792, %v806
        %v816 = vadd.f32 %v793, %v806
        %v817 = vadd.f32 %v794, %v806
        %v818 = vadd.f32 %v795, %v806
        %v819 = vadd.f32 %v796, %v806
        %v820 = vadd.f32 %v797, %v806
        %v821 = vadd.f32 %v798, %v806
        %v822 = vadd.f32 %v799, %v806
        %v823 = vadd.f32 %v800, %v806
        %v824 = vxor.u32 %v808, 2147483648
        %v825 = vxor.u32 %v809, 2147483648
        %v826 = vxor.u32 %v810, 2147483648
        %v827 = vxor.u32 %v811, 2147483648
        %v828 = vxor.u32 %v812, 2147483648
        %v829 = vxor.u32 %v813, 2147483648
        %v830 = vxor.u32 %v814, 2147483648
        %v831 = vxor.u32 %v815, 2147483648
        %v832 = vxor.u32 %v816, 2147483648
        %v833 = vxor.u32 %v817, 2147483648
        %v834 = vxor.u32 %v818, 2147483648
        %v835 = vxor.u32 %v819, 2147483648
        %v836 = vxor.u32 %v820, 2147483648
        %v837 = vxor.u32 %v821, 2147483648
        %v838 = vxor.u32 %v822, 2147483648
        %v839 = vxor.u32 %v823, 2147483648
        %v840 = vmul.f32 %v824, 1.442695
        %v841 = vpow.pop %v840
        %v842 = vmul.f32 %v825, 1.442695
        %v843 = vpow.pop %v842
        %v844 = vmul.f32 %v826, 1.442695
        %v845 = vpow.pop %v844
        %v846 = vmul.f32 %v827, 1.442695
        %v847 = vpow.pop %v846
        %v848 = vmul.f32 %v828, 1.442695
        %v849 = vpow.pop %v848
        %v850 = vmul.f32 %v829, 1.442695
        %v851 = vpow.pop %v850
        %v852 = vmul.f32 %v830, 1.442695
        %v853 = vpow.pop %v852
        %v854 = vmul.f32 %v831, 1.442695
        %v855 = vpow.pop %v854
        %v856 = vmul.f32 %v832, 1.442695
        %v857 = vpow.pop %v856
        %v858 = vmul.f32 %v833, 1.442695
        %v859 = vpow.pop %v858
        %v860 = vmul.f32 %v834, 1.442695
        %v861 = vpow.pop %v860
        %v862 = vmul.f32 %v835, 1.442695
        %v863 = vpow.pop %v862
        %v864 = vmul.f32 %v836, 1.442695
        %v865 = vpow.pop %v864
        %v866 = vmul.f32 %v837, 1.442695
        %v867 = vpow.pop %v866
        %v868 = vmul.f32 %v838, 1.442695
        %v869 = vpow.pop %v868
        %v870 = vmul.f32 %v839, 1.442695
        %v871 = vpow.pop %v870
        %v872 = vadd.f32 %v841, 1.0
        %v873 = vadd.f32 %v843, 1.0
        %v874 = vadd.f32 %v845, 1.0
        %v875 = vadd.f32 %v847, 1.0
        %v876 = vadd.f32 %v849, 1.0
        %v877 = vadd.f32 %v851, 1.0
        %v878 = vadd.f32 %v853, 1.0
        %v879 = vadd.f32 %v855, 1.0
        %v880 = vadd.f32 %v857, 1.0
        %v881 = vadd.f32 %v859, 1.0
        %v882 = vadd.f32 %v861, 1.0
        %v883 = vadd.f32 %v863, 1.0
        %v884 = vadd.f32 %v865, 1.0
        %v885 = vadd.f32 %v867, 1.0
        %v886 = vadd.f32 %v869, 1.0
        %v887 = vadd.f32 %v871, 1.0
        %v888 = vrcp.pop %v872
        %v889 = vmul.f32 1.0, %v888
        %v890 = vrcp.pop %v873
        %v891 = vmul.f32 1.0, %v890
        %v892 = vrcp.pop %v874
        %v893 = vmul.f32 1.0, %v892
        %v894 = vrcp.pop %v875
        %v895 = vmul.f32 1.0, %v894
        %v896 = vrcp.pop %v876
        %v897 = vmul.f32 1.0, %v896
        %v898 = vrcp.pop %v877
        %v899 = vmul.f32 1.0, %v898
        %v900 = vrcp.pop %v878
        %v901 = vmul.f32 1.0, %v900
        %v902 = vrcp.pop %v879
        %v903 = vmul.f32 1.0, %v902
        %v904 = vrcp.pop %v880
        %v905 = vmul.f32 1.0, %v904
        %v906 = vrcp.pop %v881
        %v907 = vmul.f32 1.0, %v906
        %v908 = vrcp.pop %v882
        %v909 = vmul.f32 1.0, %v908
        %v910 = vrcp.pop %v883
        %v911 = vmul.f32 1.0, %v910
        %v912 = vrcp.pop %v884
        %v913 = vmul.f32 1.0, %v912
        %v914 = vrcp.pop %v885
        %v915 = vmul.f32 1.0, %v914
        %v916 = vrcp.pop %v886
        %v917 = vmul.f32 1.0, %v916
        %v918 = vrcp.pop %v887
        %v919 = vmul.f32 1.0, %v918
        %v920 = vmul.f32 %v808, %v889
        %v921 = vmul.f32 %v809, %v891
        %v922 = vmul.f32 %v810, %v893
        %v923 = vmul.f32 %v811, %v895
        %v924 = vmul.f32 %v812, %v897
        %v925 = vmul.f32 %v813, %v899
        %v926 = vmul.f32 %v814, %v901
        %v927 = vmul.f32 %v815, %v903
        %v928 = vmul.f32 %v816, %v905
        %v929 = vmul.f32 %v817, %v907
        %v930 = vmul.f32 %v818, %v909
        %v931 = vmul.f32 %v819, %v911
        %v932 = vmul.f32 %v820, %v913
        %v933 = vmul.f32 %v821, %v915
        %v934 = vmul.f32 %v822, %v917
        %v935 = vmul.f32 %v823, %v919
        %v936 = vld [vmem:[#allocation5] sm:$0xff]
        %v937 = vld [vmem:[#allocation5 + $0x8] sm:$0xff]
        %v938 = vld [vmem:[#allocation5 + $0x10] sm:$0xff]
        %v939 = vld [vmem:[#allocation5 + $0x18] sm:$0xff]
        %v940 = vld [vmem:[%s5] sm:$0x1]
        %v942 = vlaneseq
        %v943 = vshrl.u32 %v942, 7
        %v944 = vsub.s32 0, %v943
        %v945 = vrot.slane %v940, %v944
        %vm947 = vcmask 261120
        %v949 = vsel %vm947, %v920, 0
        %v952 = vsel %vm947, %v921, 0
        %v955 = vsel %vm947, %v922, 0
        %v958 = vsel %vm947, %v923, 0
        %v961 = vsel %vm947, %v924, 0
        %v964 = vsel %vm947, %v925, 0
        %v967 = vsel %vm947, %v926, 0
        %v970 = vsel %vm947, %v927, 0
        %v973 = vsel %vm947, %v928, 0
        %v976 = vsel %vm947, %v929, 0
        %v979 = vsel %vm947, %v930, 0
        %v982 = vsel %vm947, %v931, 0
        %v985 = vsel %vm947, %v932, 0
        %v988 = vsel %vm947, %v933, 0
        %v991 = vsel %vm947, %v934, 0
        %v994 = vsel %vm947, %v935, 0
        %996 = vmatprep.subr.mxu0 0.0
        %997 = vmatpush1.msra.mxu0 %v936
        %998 = vmatprep.subr.mxu0 0.0
        %999 = vmatpush1.msra.mxu0 %v937
        %1000 = vmatprep.subr.mxu0 0.0
        %1001 = vmatpush1.msra.mxu0 %v938
        %1002 = vmatprep.subr.mxu0 0.0
        %1003 = vmatpush1.msra.mxu0 %v939
        %1004 = vmatprep.subr.mxu0 0.0
        %1005 = vmatpush1.msra.mxu0 0.0
        %1006 = vmatprep.subr.mxu0 0.0
        %1007 = vmatpush1.msra.mxu0 0.0
        %1008 = vmatprep.subr.mxu0 0.0
        %1009 = vmatpush1.msra.mxu0 0.0
        %1010 = vmatprep.subr.mxu0 0.0
        %1011 = vmatpush1.msra.mxu0 0.0
        %1012 = vmatprep.subr.mxu0 0.0
        %1013 = vmatpush1.msra.mxu0 0.0
        %1014 = vmatprep.subr.mxu0 0.0
        %1015 = vmatpush1.msra.mxu0 0.0
        %1016 = vmatprep.subr.mxu0 0.0
        %1017 = vmatpush1.msra.mxu0 0.0
        %1018 = vmatprep.subr.mxu0 0.0
        %1019 = vmatpush1.msra.mxu0 0.0
        %1020 = vmatprep.subr.mxu0 0.0
        %1021 = vmatpush1.msra.mxu0 0.0
        %1022 = vmatprep.subr.mxu0 0.0
        %1023 = vmatpush1.msra.mxu0 0.0
        %1024 = vmatprep.subr.mxu0 0.0
        %1025 = vmatpush1.msra.mxu0 0.0
        %1026 = vmatprep.subr.mxu0 0.0
        %1027 = vmatpush1.msra.mxu0 0.0
        %1028 = vmatprep.subr.mxu0 0.0
        %1029 = vmatpush1.msra.mxu0 0.0
        %1030 = vmatprep.subr.mxu0 0.0
        %1031 = vmatpush1.msra.mxu0 0.0
        %1032 = vmatprep.subr.mxu0 0.0
        %1033 = vmatpush1.msra.mxu0 0.0
        %1034 = vmatprep.subr.mxu0 0.0
        %1035 = vmatpush1.msra.mxu0 0.0
        %1036 = vmatprep.subr.mxu0 0.0
        %1037 = vmatpush1.msra.mxu0 0.0
        %1038 = vmatprep.subr.mxu0 0.0
        %1039 = vmatpush1.msra.mxu0 0.0
        %1040 = vmatprep.subr.mxu0 0.0
        %1041 = vmatpush1.msra.mxu0 0.0
        %1042 = vmatprep.subr.mxu0 0.0
        %1043 = vmatpush1.msra.mxu0 0.0
        %1044 = vmatprep.subr.mxu0 0.0
        %1045 = vmatpush1.msra.mxu0 0.0
        %1046 = vmatprep.subr.mxu0 0.0
        %1047 = vmatpush1.msra.mxu0 0.0
        %1048 = vmatprep.subr.mxu0 0.0
        %1049 = vmatpush1.msra.mxu0 0.0
        %1050 = vmatprep.subr.mxu0 0.0
        %1051 = vmatpush1.msra.mxu0 0.0
        %1052 = vmatprep.subr.mxu0 0.0
        %1053 = vmatpush1.msra.mxu0 0.0
        %1054 = vmatprep.subr.mxu0 0.0
        %1055 = vmatpush1.msra.mxu0 0.0
        %1056 = vmatprep.subr.mxu0 0.0
        %1057 = vmatpush1.msra.mxu0 0.0
        %1058 = vmatprep.subr.mxu0 0.0
        %1059 = vmatpush1.msra.mxu0 0.0
        %1060 = vmatprep.mubr.f32.mxu0 0.0
        %1061 = vmatmul.mubr.f32.gmra.mrb[0].mxu0 %v949
        %v1062 = vpop.f32.mrb[0].mxu0
        %v1063 = vadd.f32 %v945, %v1062
        %v1064 = vpop.f32.mrb[0].mxu0
        %1065 = vmatprep.mubr.f32.mxu0 0.0
        %1066 = vmatmul.mubr.f32.gmra.mrb[0].mxu0 %v952
        %v1067 = vpop.f32.mrb[0].mxu0
        %v1068 = vadd.f32 %v945, %v1067
        %v1069 = vpop.f32.mrb[0].mxu0
        %1070 = vmatprep.mubr.f32.mxu0 0.0
        %1071 = vmatmul.mubr.f32.gmra.mrb[0].mxu0 %v955
        %v1072 = vpop.f32.mrb[0].mxu0
        %v1073 = vadd.f32 %v945, %v1072
        %v1074 = vpop.f32.mrb[0].mxu0
        %1075 = vmatprep.mubr.f32.mxu0 0.0
        %1076 = vmatmul.mubr.f32.gmra.mrb[0].mxu0 %v958
        %v1077 = vpop.f32.mrb[0].mxu0
        %v1078 = vadd.f32 %v945, %v1077
        %v1079 = vpop.f32.mrb[0].mxu0
        %1080 = vmatprep.mubr.f32.mxu0 0.0
        %1081 = vmatmul.mubr.f32.gmra.mrb[0].mxu0 %v961
        %v1082 = vpop.f32.mrb[0].mxu0
        %v1083 = vadd.f32 %v945, %v1082
        %v1084 = vpop.f32.mrb[0].mxu0
        %1085 = vmatprep.mubr.f32.mxu0 0.0
        %1086 = vmatmul.mubr.f32.gmra.mrb[0].mxu0 %v964
        %v1087 = vpop.f32.mrb[0].mxu0
        %v1088 = vadd.f32 %v945, %v1087
        %v1089 = vpop.f32.mrb[0].mxu0
        %1090 = vmatprep.mubr.f32.mxu0 0.0
        %1091 = vmatmul.mubr.f32.gmra.mrb[0].mxu0 %v967
        %v1092 = vpop.f32.mrb[0].mxu0
        %v1093 = vadd.f32 %v945, %v1092
        %v1094 = vpop.f32.mrb[0].mxu0
        %1095 = vmatprep.mubr.f32.mxu0 0.0
        %1096 = vmatmul.mubr.f32.gmra.mrb[0].mxu0 %v970
        %v1097 = vpop.f32.mrb[0].mxu0
        %v1098 = vadd.f32 %v945, %v1097
        %v1099 = vpop.f32.mrb[0].mxu0
        %1100 = vmatprep.mubr.f32.mxu0 0.0
        %1101 = vmatmul.mubr.f32.gmra.mrb[0].mxu0 %v973
        %v1102 = vpop.f32.mrb[0].mxu0
        %v1103 = vadd.f32 %v945, %v1102
        %v1104 = vpop.f32.mrb[0].mxu0
        %1105 = vmatprep.mubr.f32.mxu0 0.0
        %1106 = vmatmul.mubr.f32.gmra.mrb[0].mxu0 %v976
        %v1107 = vpop.f32.mrb[0].mxu0
        %v1108 = vadd.f32 %v945, %v1107
        %v1109 = vpop.f32.mrb[0].mxu0
        %1110 = vmatprep.mubr.f32.mxu0 0.0
        %1111 = vmatmul.mubr.f32.gmra.mrb[0].mxu0 %v979
        %v1112 = vpop.f32.mrb[0].mxu0
        %v1113 = vadd.f32 %v945, %v1112
        %v1114 = vpop.f32.mrb[0].mxu0
        %1115 = vmatprep.mubr.f32.mxu0 0.0
        %1116 = vmatmul.mubr.f32.gmra.mrb[0].mxu0 %v982
        %v1117 = vpop.f32.mrb[0].mxu0
        %v1118 = vadd.f32 %v945, %v1117
        %v1119 = vpop.f32.mrb[0].mxu0
        %1120 = vmatprep.mubr.f32.mxu0 0.0
        %1121 = vmatmul.mubr.f32.gmra.mrb[0].mxu0 %v985
        %v1122 = vpop.f32.mrb[0].mxu0
        %v1123 = vadd.f32 %v945, %v1122
        %v1124 = vpop.f32.mrb[0].mxu0
        %1125 = vmatprep.mubr.f32.mxu0 0.0
        %1126 = vmatmul.mubr.f32.gmra.mrb[0].mxu0 %v988
        %v1127 = vpop.f32.mrb[0].mxu0
        %v1128 = vadd.f32 %v945, %v1127
        %v1129 = vpop.f32.mrb[0].mxu0
        %1130 = vmatprep.mubr.f32.mxu0 0.0
        %1131 = vmatmul.mubr.f32.gmra.mrb[0].mxu0 %v991
        %v1132 = vpop.f32.mrb[0].mxu0
        %v1133 = vadd.f32 %v945, %v1132
        %v1134 = vpop.f32.mrb[0].mxu0
        %1135 = vmatprep.mubr.f32.mxu0 0.0
        %1136 = vmatmul.mubr.f32.gmra.mrb[0].mxu0 %v994
        %v1137 = vpop.f32.mrb[0].mxu0
        %v1138 = vadd.f32 %v945, %v1137
        %v1139 = vpop.f32.mrb[0].mxu0
        %1140 = vdwg.mxu0
        %v1141 = vld [vmem:[%s6] sm:$0xff]
        %v1142 = vld [vmem:[%s6 + $0x8] sm:$0xff]
        %v1143 = vld [vmem:[%s6 + $0x10] sm:$0xff]
        %v1144 = vld [vmem:[%s6 + $0x18] sm:$0xff]
        %v1145 = vld [vmem:[%s6 + $0x20] sm:$0xff]
        %v1146 = vld [vmem:[%s6 + $0x28] sm:$0xff]
        %v1147 = vld [vmem:[%s6 + $0x30] sm:$0xff]
        %v1148 = vld [vmem:[%s6 + $0x38] sm:$0xff]
        %v1149 = vld [vmem:[%s6 + $0x40] sm:$0xff]
        %v1150 = vld [vmem:[%s6 + $0x48] sm:$0xff]
        %v1151 = vld [vmem:[%s6 + $0x50] sm:$0xff]
        %v1152 = vld [vmem:[%s6 + $0x58] sm:$0xff]
        %v1153 = vld [vmem:[%s6 + $0x60] sm:$0xff]
        %v1154 = vld [vmem:[%s6 + $0x68] sm:$0xff]
        %v1155 = vld [vmem:[%s6 + $0x70] sm:$0xff]
        %v1156 = vld [vmem:[%s6 + $0x78] sm:$0xff]
        %v1157 = vld [vmem:[%s6 + $0x80] sm:$0xff]
        %v1158 = vld [vmem:[%s6 + $0x88] sm:$0xff]
        %v1159 = vld [vmem:[%s6 + $0x90] sm:$0xff]
        %v1160 = vld [vmem:[%s6 + $0x98] sm:$0xff]
        %v1161 = vld [vmem:[%s6 + $0xa0] sm:$0xff]
        %v1162 = vld [vmem:[%s6 + $0xa8] sm:$0xff]
        %v1163 = vld [vmem:[%s6 + $0xb0] sm:$0xff]
        %v1164 = vld [vmem:[%s6 + $0xb8] sm:$0xff]
        %v1165 = vld [vmem:[%s6 + $0xc0] sm:$0xff]
        %v1166 = vld [vmem:[%s6 + $0xc8] sm:$0xff]
        %v1167 = vld [vmem:[%s6 + $0xd0] sm:$0xff]
        %v1168 = vld [vmem:[%s6 + $0xd8] sm:$0xff]
        %v1169 = vld [vmem:[%s6 + $0xe0] sm:$0xff]
        %v1170 = vld [vmem:[%s6 + $0xe8] sm:$0xff]
        %v1171 = vld [vmem:[%s6 + $0xf0] sm:$0xff]
        %v1172 = vld [vmem:[%s6 + $0xf8] sm:$0xff]
        %v1173 = vld [vmem:[#allocation7] sm:$0xff]
        %v1174 = vld [vmem:[#allocation7 + $0x8] sm:$0xff]
        %v1175 = vld [vmem:[#allocation7 + $0x10] sm:$0xff]
        %v1176 = vld [vmem:[#allocation7 + $0x18] sm:$0xff]
        %v1177 = vld [vmem:[#allocation7 + $0x20] sm:$0xff]
        %v1178 = vld [vmem:[#allocation7 + $0x28] sm:$0xff]
        %v1179 = vld [vmem:[#allocation7 + $0x30] sm:$0xff]
        %v1180 = vld [vmem:[#allocation7 + $0x38] sm:$0xff]
        %vm1181 = vcmask 523264
        %v1183 = vsel %vm1181, %v1063, 0
        %v1186 = vsel %vm1181, %v1068, 0
        %v1189 = vsel %vm1181, %v1073, 0
        %v1192 = vsel %vm1181, %v1078, 0
        %v1195 = vsel %vm1181, %v1083, 0
        %v1198 = vsel %vm1181, %v1088, 0
        %v1201 = vsel %vm1181, %v1093, 0
        %v1204 = vsel %vm1181, %v1098, 0
        %v1207 = vsel %vm1181, %v1103, 0
        %v1210 = vsel %vm1181, %v1108, 0
        %v1213 = vsel %vm1181, %v1113, 0
        %v1216 = vsel %vm1181, %v1118, 0
        %v1219 = vsel %vm1181, %v1123, 0
        %v1222 = vsel %vm1181, %v1128, 0
        %v1225 = vsel %vm1181, %v1133, 0
        %v1228 = vsel %vm1181, %v1138, 0
        %1230 = vmatprep.subr.mxu0 0.0
        %1231 = vmatpush1.msra.mxu0 %v1173
        %1232 = vmatprep.subr.mxu0 0.0
        %1233 = vmatpush1.msra.mxu0 %v1174
        %1234 = vmatprep.subr.mxu0 0.0
        %1235 = vmatpush1.msra.mxu0 %v1175
        %1236 = vmatprep.subr.mxu0 0.0
        %1237 = vmatpush1.msra.mxu0 %v1176
        %1238 = vmatprep.subr.mxu0 0.0
        %1239 = vmatpush1.msra.mxu0 %v1177
        %1240 = vmatprep.subr.mxu0 0.0
        %1241 = vmatpush1.msra.mxu0 %v1178
        %1242 = vmatprep.subr.mxu0 0.0
        %1243 = vmatpush1.msra.mxu0 %v1179
        %1244 = vmatprep.subr.mxu0 0.0
        %1245 = vmatpush1.msra.mxu0 %v1180
        %1246 = vmatprep.subr.mxu0 0.0
        %1247 = vmatpush1.msra.mxu0 0.0
        %1248 = vmatprep.subr.mxu0 0.0
        %1249 = vmatpush1.msra.mxu0 0.0
        %1250 = vmatprep.subr.mxu0 0.0
        %1251 = vmatpush1.msra.mxu0 0.0
        %1252 = vmatprep.subr.mxu0 0.0
        %1253 = vmatpush1.msra.mxu0 0.0
        %1254 = vmatprep.subr.mxu0 0.0
        %1255 = vmatpush1.msra.mxu0 0.0
        %1256 = vmatprep.subr.mxu0 0.0
        %1257 = vmatpush1.msra.mxu0 0.0
        %1258 = vmatprep.subr.mxu0 0.0
        %1259 = vmatpush1.msra.mxu0 0.0
        %1260 = vmatprep.subr.mxu0 0.0
        %1261 = vmatpush1.msra.mxu0 0.0
        %1262 = vmatprep.subr.mxu0 0.0
        %1263 = vmatpush1.msra.mxu0 0.0
        %1264 = vmatprep.subr.mxu0 0.0
        %1265 = vmatpush1.msra.mxu0 0.0
        %1266 = vmatprep.subr.mxu0 0.0
        %1267 = vmatpush1.msra.mxu0 0.0
        %1268 = vmatprep.subr.mxu0 0.0
        %1269 = vmatpush1.msra.mxu0 0.0
        %1270 = vmatprep.subr.mxu0 0.0
        %1271 = vmatpush1.msra.mxu0 0.0
        %1272 = vmatprep.subr.mxu0 0.0
        %1273 = vmatpush1.msra.mxu0 0.0
        %1274 = vmatprep.subr.mxu0 0.0
        %1275 = vmatpush1.msra.mxu0 0.0
        %1276 = vmatprep.subr.mxu0 0.0
        %1277 = vmatpush1.msra.mxu0 0.0
        %1278 = vmatprep.subr.mxu0 0.0
        %1279 = vmatpush1.msra.mxu0 0.0
        %1280 = vmatprep.subr.mxu0 0.0
        %1281 = vmatpush1.msra.mxu0 0.0
        %1282 = vmatprep.subr.mxu0 0.0
        %1283 = vmatpush1.msra.mxu0 0.0
        %1284 = vmatprep.subr.mxu0 0.0
        %1285 = vmatpush1.msra.mxu0 0.0
        %1286 = vmatprep.subr.mxu0 0.0
        %1287 = vmatpush1.msra.mxu0 0.0
        %1288 = vmatprep.subr.mxu0 0.0
        %1289 = vmatpush1.msra.mxu0 0.0
        %1290 = vmatprep.subr.mxu0 0.0
        %1291 = vmatpush1.msra.mxu0 0.0
        %1292 = vmatprep.subr.mxu0 0.0
        %1293 = vmatpush1.msra.mxu0 0.0
        %1294 = vmatprep.mubr.f32.mxu0 0.0
        %1295 = vmatmul.mubr.f32.gmra.mrb[0].mxu0 %v1183
        %v1296 = vpop.f32.mrb[0].mxu0
        %v1297 = vadd.f32 0.0, %v1296
        %v1298 = vpop.f32.mrb[0].mxu0
        %1299 = vmatprep.mubr.f32.mxu0 0.0
        %1300 = vmatmul.mubr.f32.gmra.mrb[0].mxu0 %v1186
        %v1301 = vpop.f32.mrb[0].mxu0
        %v1302 = vadd.f32 0.0, %v1301
        %v1303 = vpop.f32.mrb[0].mxu0
        %1304 = vmatprep.mubr.f32.mxu0 0.0
        %1305 = vmatmul.mubr.f32.gmra.mrb[0].mxu0 %v1189
        %v1306 = vpop.f32.mrb[0].mxu0
        %v1307 = vadd.f32 0.0, %v1306
        %v1308 = vpop.f32.mrb[0].mxu0
        %1309 = vmatprep.mubr.f32.mxu0 0.0
        %1310 = vmatmul.mubr.f32.gmra.mrb[0].mxu0 %v1192
        %v1311 = vpop.f32.mrb[0].mxu0
        %v1312 = vadd.f32 0.0, %v1311
        %v1313 = vpop.f32.mrb[0].mxu0
        %1314 = vmatprep.mubr.f32.mxu0 0.0
        %1315 = vmatmul.mubr.f32.gmra.mrb[0].mxu0 %v1195
        %v1316 = vpop.f32.mrb[0].mxu0
        %v1317 = vadd.f32 0.0, %v1316
        %v1318 = vpop.f32.mrb[0].mxu0
        %1319 = vmatprep.mubr.f32.mxu0 0.0
        %1320 = vmatmul.mubr.f32.gmra.mrb[0].mxu0 %v1198
        %v1321 = vpop.f32.mrb[0].mxu0
        %v1322 = vadd.f32 0.0, %v1321
        %v1323 = vpop.f32.mrb[0].mxu0
        %1324 = vmatprep.mubr.f32.mxu0 0.0
        %1325 = vmatmul.mubr.f32.gmra.mrb[0].mxu0 %v1201
        %v1326 = vpop.f32.mrb[0].mxu0
        %v1327 = vadd.f32 0.0, %v1326
        %v1328 = vpop.f32.mrb[0].mxu0
        %1329 = vmatprep.mubr.f32.mxu0 0.0
        %1330 = vmatmul.mubr.f32.gmra.mrb[0].mxu0 %v1204
        %v1331 = vpop.f32.mrb[0].mxu0
        %v1332 = vadd.f32 0.0, %v1331
        %v1333 = vpop.f32.mrb[0].mxu0
        %1334 = vmatprep.mubr.f32.mxu0 0.0
        %1335 = vmatmul.mubr.f32.gmra.mrb[0].mxu0 %v1207
        %v1336 = vpop.f32.mrb[0].mxu0
        %v1337 = vadd.f32 0.0, %v1336
        %v1338 = vpop.f32.mrb[0].mxu0
        %1339 = vmatprep.mubr.f32.mxu0 0.0
        %1340 = vmatmul.mubr.f32.gmra.mrb[0].mxu0 %v1210
        %v1341 = vpop.f32.mrb[0].mxu0
        %v1342 = vadd.f32 0.0, %v1341
        %v1343 = vpop.f32.mrb[0].mxu0
        %1344 = vmatprep.mubr.f32.mxu0 0.0
        %1345 = vmatmul.mubr.f32.gmra.mrb[0].mxu0 %v1213
        %v1346 = vpop.f32.mrb[0].mxu0
        %v1347 = vadd.f32 0.0, %v1346
        %v1348 = vpop.f32.mrb[0].mxu0
        %1349 = vmatprep.mubr.f32.mxu0 0.0
        %1350 = vmatmul.mubr.f32.gmra.mrb[0].mxu0 %v1216
        %v1351 = vpop.f32.mrb[0].mxu0
        %v1352 = vadd.f32 0.0, %v1351
        %v1353 = vpop.f32.mrb[0].mxu0
        %1354 = vmatprep.mubr.f32.mxu0 0.0
        %1355 = vmatmul.mubr.f32.gmra.mrb[0].mxu0 %v1219
        %v1356 = vpop.f32.mrb[0].mxu0
        %v1357 = vadd.f32 0.0, %v1356
        %v1358 = vpop.f32.mrb[0].mxu0
        %1359 = vmatprep.mubr.f32.mxu0 0.0
        %1360 = vmatmul.mubr.f32.gmra.mrb[0].mxu0 %v1222
        %v1361 = vpop.f32.mrb[0].mxu0
        %v1362 = vadd.f32 0.0, %v1361
        %v1363 = vpop.f32.mrb[0].mxu0
        %1364 = vmatprep.mubr.f32.mxu0 0.0
        %1365 = vmatmul.mubr.f32.gmra.mrb[0].mxu0 %v1225
        %v1366 = vpop.f32.mrb[0].mxu0
        %v1367 = vadd.f32 0.0, %v1366
        %v1368 = vpop.f32.mrb[0].mxu0
        %1369 = vmatprep.mubr.f32.mxu0 0.0
        %1370 = vmatmul.mubr.f32.gmra.mrb[0].mxu0 %v1228
        %v1371 = vpop.f32.mrb[0].mxu0
        %v1372 = vadd.f32 0.0, %v1371
        %v1373 = vpop.f32.mrb[0].mxu0
        %1374 = vdwg.mxu0
        %1375 = vmatprep.subr.mxu0 0.0
        %1376 = vmatpush1.msra.mxu0 %v1141
        %1377 = vmatprep.subr.mxu0 0.0
        %1378 = vmatpush1.msra.mxu0 %v1142
        %1379 = vmatprep.subr.mxu0 0.0
        %1380 = vmatpush1.msra.mxu0 %v1143
        %1381 = vmatprep.subr.mxu0 0.0
        %1382 = vmatpush1.msra.mxu0 %v1144
        %1383 = vmatprep.subr.mxu0 0.0
        %1384 = vmatpush1.msra.mxu0 %v1145
        %1385 = vmatprep.subr.mxu0 0.0
        %1386 = vmatpush1.msra.mxu0 %v1146
        %1387 = vmatprep.subr.mxu0 0.0
        %1388 = vmatpush1.msra.mxu0 %v1147
        %1389 = vmatprep.subr.mxu0 0.0
        %1390 = vmatpush1.msra.mxu0 %v1148
        %1391 = vmatprep.subr.mxu0 0.0
        %1392 = vmatpush1.msra.mxu0 %v1149
        %1393 = vmatprep.subr.mxu0 0.0
        %1394 = vmatpush1.msra.mxu0 %v1150
        %1395 = vmatprep.subr.mxu0 0.0
        %1396 = vmatpush1.msra.mxu0 %v1151
        %1397 = vmatprep.subr.mxu0 0.0
        %1398 = vmatpush1.msra.mxu0 %v1152
        %1399 = vmatprep.subr.mxu0 0.0
        %1400 = vmatpush1.msra.mxu0 %v1153
        %1401 = vmatprep.subr.mxu0 0.0
        %1402 = vmatpush1.msra.mxu0 %v1154
        %1403 = vmatprep.subr.mxu0 0.0
        %1404 = vmatpush1.msra.mxu0 %v1155
        %1405 = vmatprep.subr.mxu0 0.0
        %1406 = vmatpush1.msra.mxu0 %v1156
        %1407 = vmatprep.subr.mxu0 0.0
        %1408 = vmatpush1.msra.mxu0 %v1157
        %1409 = vmatprep.subr.mxu0 0.0
        %1410 = vmatpush1.msra.mxu0 %v1158
        %1411 = vmatprep.subr.mxu0 0.0
        %1412 = vmatpush1.msra.mxu0 %v1159
        %1413 = vmatprep.subr.mxu0 0.0
        %1414 = vmatpush1.msra.mxu0 %v1160
        %1415 = vmatprep.subr.mxu0 0.0
        %1416 = vmatpush1.msra.mxu0 %v1161
        %1417 = vmatprep.subr.mxu0 0.0
        %1418 = vmatpush1.msra.mxu0 %v1162
        %1419 = vmatprep.subr.mxu0 0.0
        %1420 = vmatpush1.msra.mxu0 %v1163
        %1421 = vmatprep.subr.mxu0 0.0
        %1422 = vmatpush1.msra.mxu0 %v1164
        %1423 = vmatprep.subr.mxu0 0.0
        %1424 = vmatpush1.msra.mxu0 %v1165
        %1425 = vmatprep.subr.mxu0 0.0
        %1426 = vmatpush1.msra.mxu0 %v1166
        %1427 = vmatprep.subr.mxu0 0.0
        %1428 = vmatpush1.msra.mxu0 %v1167
        %1429 = vmatprep.subr.mxu0 0.0
        %1430 = vmatpush1.msra.mxu0 %v1168
        %1431 = vmatprep.subr.mxu0 0.0
        %1432 = vmatpush1.msra.mxu0 %v1169
        %1433 = vmatprep.subr.mxu0 0.0
        %1434 = vmatpush1.msra.mxu0 %v1170
        %1435 = vmatprep.subr.mxu0 0.0
        %1436 = vmatpush1.msra.mxu0 %v1171
        %1437 = vmatprep.subr.mxu0 0.0
        %1438 = vmatpush1.msra.mxu0 %v1172
        %1439 = vmatprep.mubr.f32.mxu0 %v651
        %1440 = vmatmul.mubr.f32.gmra.mrb[0].mxu0 %v650
        %v1441 = vpop.f32.mrb[0].mxu0
        %v1442 = vadd.f32 %v1297, %v1441
        %v1443 = vpop.f32.mrb[0].mxu0
        %1444 = vmatprep.mubr.f32.mxu0 %v653
        %1445 = vmatmul.mubr.f32.gmra.mrb[0].mxu0 %v652
        %v1446 = vpop.f32.mrb[0].mxu0
        %v1447 = vadd.f32 %v1302, %v1446
        %v1448 = vpop.f32.mrb[0].mxu0
        %1449 = vmatprep.mubr.f32.mxu0 %v655
        %1450 = vmatmul.mubr.f32.gmra.mrb[0].mxu0 %v654
        %v1451 = vpop.f32.mrb[0].mxu0
        %v1452 = vadd.f32 %v1307, %v1451
        %v1453 = vpop.f32.mrb[0].mxu0
        %1454 = vmatprep.mubr.f32.mxu0 %v657
        %1455 = vmatmul.mubr.f32.gmra.mrb[0].mxu0 %v656
        %v1456 = vpop.f32.mrb[0].mxu0
        %v1457 = vadd.f32 %v1312, %v1456
        %v1458 = vpop.f32.mrb[0].mxu0
        %1459 = vmatprep.mubr.f32.mxu0 %v659
        %1460 = vmatmul.mubr.f32.gmra.mrb[0].mxu0 %v658
        %v1461 = vpop.f32.mrb[0].mxu0
        %v1462 = vadd.f32 %v1317, %v1461
        %v1463 = vpop.f32.mrb[0].mxu0
        %1464 = vmatprep.mubr.f32.mxu0 %v661
        %1465 = vmatmul.mubr.f32.gmra.mrb[0].mxu0 %v660
        %v1466 = vpop.f32.mrb[0].mxu0
        %v1467 = vadd.f32 %v1322, %v1466
        %v1468 = vpop.f32.mrb[0].mxu0
        %1469 = vmatprep.mubr.f32.mxu0 %v663
        %1470 = vmatmul.mubr.f32.gmra.mrb[0].mxu0 %v662
        %v1471 = vpop.f32.mrb[0].mxu0
        %v1472 = vadd.f32 %v1327, %v1471
        %v1473 = vpop.f32.mrb[0].mxu0
        %1474 = vmatprep.mubr.f32.mxu0 %v665
        %1475 = vmatmul.mubr.f32.gmra.mrb[0].mxu0 %v664
        %v1476 = vpop.f32.mrb[0].mxu0
        %v1477 = vadd.f32 %v1332, %v1476
        %v1478 = vpop.f32.mrb[0].mxu0
        %1479 = vmatprep.mubr.f32.mxu0 %v667
        %1480 = vmatmul.mubr.f32.gmra.mrb[0].mxu0 %v666
        %v1481 = vpop.f32.mrb[0].mxu0
        %v1482 = vadd.f32 %v1337, %v1481
        %v1483 = vpop.f32.mrb[0].mxu0
        %1484 = vmatprep.mubr.f32.mxu0 %v669
        %1485 = vmatmul.mubr.f32.gmra.mrb[0].mxu0 %v668
        %v1486 = vpop.f32.mrb[0].mxu0
        %v1487 = vadd.f32 %v1342, %v1486
        %v1488 = vpop.f32.mrb[0].mxu0
        %1489 = vmatprep.mubr.f32.mxu0 %v671
        %1490 = vmatmul.mubr.f32.gmra.mrb[0].mxu0 %v670
        %v1491 = vpop.f32.mrb[0].mxu0
        %v1492 = vadd.f32 %v1347, %v1491
        %v1493 = vpop.f32.mrb[0].mxu0
        %1494 = vmatprep.mubr.f32.mxu0 %v673
        %1495 = vmatmul.mubr.f32.gmra.mrb[0].mxu0 %v672
        %v1496 = vpop.f32.mrb[0].mxu0
        %v1497 = vadd.f32 %v1352, %v1496
        %v1498 = vpop.f32.mrb[0].mxu0
        %1499 = vmatprep.mubr.f32.mxu0 %v675
        %1500 = vmatmul.mubr.f32.gmra.mrb[0].mxu0 %v674
        %v1501 = vpop.f32.mrb[0].mxu0
        %v1502 = vadd.f32 %v1357, %v1501
        %v1503 = vpop.f32.mrb[0].mxu0
        %1504 = vmatprep.mubr.f32.mxu0 %v677
        %1505 = vmatmul.mubr.f32.gmra.mrb[0].mxu0 %v676
        %v1506 = vpop.f32.mrb[0].mxu0
        %v1507 = vadd.f32 %v1362, %v1506
        %v1508 = vpop.f32.mrb[0].mxu0
        %1509 = vmatprep.mubr.f32.mxu0 %v679
        %1510 = vmatmul.mubr.f32.gmra.mrb[0].mxu0 %v678
        %v1511 = vpop.f32.mrb[0].mxu0
        %v1512 = vadd.f32 %v1367, %v1511
        %v1513 = vpop.f32.mrb[0].mxu0
        %1514 = vmatprep.mubr.f32.mxu0 %v681
        %1515 = vmatmul.mubr.f32.gmra.mrb[0].mxu0 %v680
        %v1516 = vpop.f32.mrb[0].mxu0
        %v1517 = vadd.f32 %v1372, %v1516
        %v1518 = vpop.f32.mrb[0].mxu0
        %1519 = vdwg.mxu0
        %v1520 = vld [vmem:[%s8] sm:$0x1]
        %v1522 = vlaneseq
        %v1523 = vshrl.u32 %v1522, 7
        %v1524 = vsub.s32 0, %v1523
        %v1525 = vrot.slane %v1520, %v1524
        %v1527 = vadd.f32 %v1442, %v1525
        %v1528 = vadd.f32 %v1447, %v1525
        %v1529 = vadd.f32 %v1452, %v1525
        %v1530 = vadd.f32 %v1457, %v1525
        %v1531 = vadd.f32 %v1462, %v1525
        %v1532 = vadd.f32 %v1467, %v1525
        %v1533 = vadd.f32 %v1472, %v1525
        %v1534 = vadd.f32 %v1477, %v1525
        %v1535 = vadd.f32 %v1482, %v1525
        %v1536 = vadd.f32 %v1487, %v1525
        %v1537 = vadd.f32 %v1492, %v1525
        %v1538 = vadd.f32 %v1497, %v1525
        %v1539 = vadd.f32 %v1502, %v1525
        %v1540 = vadd.f32 %v1507, %v1525
        %v1541 = vadd.f32 %v1512, %v1525
        %v1542 = vadd.f32 %v1517, %v1525
        %v1543 = vld [vmem:[%s9] sm:$0x1]
        %v1544 = vld [vmem:[%s10] sm:$0x1]
        %1545 = vadd.xlane.f32.xlu0 %v1527
        %v1546 = vpop.xlane.xlu0 %1545
        %1547 = vadd.xlane.f32.xlu0 %v1528
        %v1548 = vpop.xlane.xlu0 %1547
        %1549 = vadd.xlane.f32.xlu0 %v1529
        %v1550 = vpop.xlane.xlu0 %1549
        %1551 = vadd.xlane.f32.xlu0 %v1530
        %v1552 = vpop.xlane.xlu0 %1551
        %1553 = vadd.xlane.f32.xlu0 %v1531
        %v1554 = vpop.xlane.xlu0 %1553
        %1555 = vadd.xlane.f32.xlu0 %v1532
        %v1556 = vpop.xlane.xlu0 %1555
        %1557 = vadd.xlane.f32.xlu0 %v1533
        %v1558 = vpop.xlane.xlu0 %1557
        %1559 = vadd.xlane.f32.xlu0 %v1534
        %v1560 = vpop.xlane.xlu0 %1559
        %1561 = vadd.xlane.f32.xlu0 %v1535
        %v1562 = vpop.xlane.xlu0 %1561
        %1563 = vadd.xlane.f32.xlu0 %v1536
        %v1564 = vpop.xlane.xlu0 %1563
        %1565 = vadd.xlane.f32.xlu0 %v1537
        %v1566 = vpop.xlane.xlu0 %1565
        %1567 = vadd.xlane.f32.xlu0 %v1538
        %v1568 = vpop.xlane.xlu0 %1567
        %1569 = vadd.xlane.f32.xlu0 %v1539
        %v1570 = vpop.xlane.xlu0 %1569
        %1571 = vadd.xlane.f32.xlu0 %v1540
        %v1572 = vpop.xlane.xlu0 %1571
        %1573 = vadd.xlane.f32.xlu0 %v1541
        %v1574 = vpop.xlane.xlu0 %1573
        %1575 = vadd.xlane.f32.xlu0 %v1542
        %v1576 = vpop.xlane.xlu0 %1575
        %v1577 = vrcp.pop 128.0
        %v1578 = vmul.f32 %v1546, %v1577
        %v1579 = vmul.f32 %v1548, %v1577
        %v1580 = vmul.f32 %v1550, %v1577
        %v1581 = vmul.f32 %v1552, %v1577
        %v1582 = vmul.f32 %v1554, %v1577
        %v1583 = vmul.f32 %v1556, %v1577
        %v1584 = vmul.f32 %v1558, %v1577
        %v1585 = vmul.f32 %v1560, %v1577
        %v1586 = vmul.f32 %v1562, %v1577
        %v1587 = vmul.f32 %v1564, %v1577
        %v1588 = vmul.f32 %v1566, %v1577
        %v1589 = vmul.f32 %v1568, %v1577
        %v1590 = vmul.f32 %v1570, %v1577
        %v1591 = vmul.f32 %v1572, %v1577
        %v1592 = vmul.f32 %v1574, %v1577
        %v1593 = vmul.f32 %v1576, %v1577
        %v1594 = vmul.f32 %v1527, %v1527
        %v1595 = vmul.f32 %v1528, %v1528
        %v1596 = vmul.f32 %v1529, %v1529
        %v1597 = vmul.f32 %v1530, %v1530
        %v1598 = vmul.f32 %v1531, %v1531
        %v1599 = vmul.f32 %v1532, %v1532
        %v1600 = vmul.f32 %v1533, %v1533
        %v1601 = vmul.f32 %v1534, %v1534
        %v1602 = vmul.f32 %v1535, %v1535
        %v1603 = vmul.f32 %v1536, %v1536
        %v1604 = vmul.f32 %v1537, %v1537
        %v1605 = vmul.f32 %v1538, %v1538
        %v1606 = vmul.f32 %v1539, %v1539
        %v1607 = vmul.f32 %v1540, %v1540
        %v1608 = vmul.f32 %v1541, %v1541
        %v1609 = vmul.f32 %v1542, %v1542
        %1610 = vadd.xlane.f32.xlu0 %v1594
        %v1611 = vpop.xlane.xlu0 %1610
        %1612 = vadd.xlane.f32.xlu0 %v1595
        %v1613 = vpop.xlane.xlu0 %1612
        %1614 = vadd.xlane.f32.xlu0 %v1596
        %v1615 = vpop.xlane.xlu0 %1614
        %1616 = vadd.xlane.f32.xlu0 %v1597
        %v1617 = vpop.xlane.xlu0 %1616
        %1618 = vadd.xlane.f32.xlu0 %v1598
        %v1619 = vpop.xlane.xlu0 %1618
        %1620 = vadd.xlane.f32.xlu0 %v1599
        %v1621 = vpop.xlane.xlu0 %1620
        %1622 = vadd.xlane.f32.xlu0 %v1600
        %v1623 = vpop.xlane.xlu0 %1622
        %1624 = vadd.xlane.f32.xlu0 %v1601
        %v1625 = vpop.xlane.xlu0 %1624
        %1626 = vadd.xlane.f32.xlu0 %v1602
        %v1627 = vpop.xlane.xlu0 %1626
        %1628 = vadd.xlane.f32.xlu0 %v1603
        %v1629 = vpop.xlane.xlu0 %1628
        %1630 = vadd.xlane.f32.xlu0 %v1604
        %v1631 = vpop.xlane.xlu0 %1630
        %1632 = vadd.xlane.f32.xlu0 %v1605
        %v1633 = vpop.xlane.xlu0 %1632
        %1634 = vadd.xlane.f32.xlu0 %v1606
        %v1635 = vpop.xlane.xlu0 %1634
        %1636 = vadd.xlane.f32.xlu0 %v1607
        %v1637 = vpop.xlane.xlu0 %1636
        %1638 = vadd.xlane.f32.xlu0 %v1608
        %v1639 = vpop.xlane.xlu0 %1638
        %1640 = vadd.xlane.f32.xlu0 %v1609
        %v1641 = vpop.xlane.xlu0 %1640
        %v1642 = vmul.f32 %v1611, %v1577
        %v1643 = vmul.f32 %v1613, %v1577
        %v1644 = vmul.f32 %v1615, %v1577
        %v1645 = vmul.f32 %v1617, %v1577
        %v1646 = vmul.f32 %v1619, %v1577
        %v1647 = vmul.f32 %v1621, %v1577
        %v1648 = vmul.f32 %v1623, %v1577
        %v1649 = vmul.f32 %v1625, %v1577
        %v1650 = vmul.f32 %v1627, %v1577
        %v1651 = vmul.f32 %v1629, %v1577
        %v1652 = vmul.f32 %v1631, %v1577
        %v1653 = vmul.f32 %v1633, %v1577
        %v1654 = vmul.f32 %v1635, %v1577
        %v1655 = vmul.f32 %v1637, %v1577
        %v1656 = vmul.f32 %v1639, %v1577
        %v1657 = vmul.f32 %v1641, %v1577
        %v1658 = vmul.f32 %v1578, %v1578
        %v1659 = vmul.f32 %v1579, %v1579
        %v1660 = vmul.f32 %v1580, %v1580
        %v1661 = vmul.f32 %v1581, %v1581
        %v1662 = vmul.f32 %v1582, %v1582
        %v1663 = vmul.f32 %v1583, %v1583
        %v1664 = vmul.f32 %v1584, %v1584
        %v1665 = vmul.f32 %v1585, %v1585
        %v1666 = vmul.f32 %v1586, %v1586
        %v1667 = vmul.f32 %v1587, %v1587
        %v1668 = vmul.f32 %v1588, %v1588
        %v1669 = vmul.f32 %v1589, %v1589
        %v1670 = vmul.f32 %v1590, %v1590
        %v1671 = vmul.f32 %v1591, %v1591
        %v1672 = vmul.f32 %v1592, %v1592
        %v1673 = vmul.f32 %v1593, %v1593
        %v1674 = vsub.f32 %v1642, %v1658
        %v1675 = vsub.f32 %v1643, %v1659
        %v1676 = vsub.f32 %v1644, %v1660
        %v1677 = vsub.f32 %v1645, %v1661
        %v1678 = vsub.f32 %v1646, %v1662
        %v1679 = vsub.f32 %v1647, %v1663
        %v1680 = vsub.f32 %v1648, %v1664
        %v1681 = vsub.f32 %v1649, %v1665
        %v1682 = vsub.f32 %v1650, %v1666
        %v1683 = vsub.f32 %v1651, %v1667
        %v1684 = vsub.f32 %v1652, %v1668
        %v1685 = vsub.f32 %v1653, %v1669
        %v1686 = vsub.f32 %v1654, %v1670
        %v1687 = vsub.f32 %v1655, %v1671
        %v1688 = vsub.f32 %v1656, %v1672
        %v1689 = vsub.f32 %v1657, %v1673
        %v1690 = vmax.f32 %v1674, 0.0
        %v1691 = vmax.f32 %v1675, 0.0
        %v1692 = vmax.f32 %v1676, 0.0
        %v1693 = vmax.f32 %v1677, 0.0
        %v1694 = vmax.f32 %v1678, 0.0
        %v1695 = vmax.f32 %v1679, 0.0
        %v1696 = vmax.f32 %v1680, 0.0
        %v1697 = vmax.f32 %v1681, 0.0
        %v1698 = vmax.f32 %v1682, 0.0
        %v1699 = vmax.f32 %v1683, 0.0
        %v1700 = vmax.f32 %v1684, 0.0
        %v1701 = vmax.f32 %v1685, 0.0
        %v1702 = vmax.f32 %v1686, 0.0
        %v1703 = vmax.f32 %v1687, 0.0
        %v1704 = vmax.f32 %v1688, 0.0
        %v1705 = vmax.f32 %v1689, 0.0
        %v1706 = vsub.f32 %v1527, %v1578
        %v1707 = vsub.f32 %v1528, %v1579
        %v1708 = vsub.f32 %v1529, %v1580
        %v1709 = vsub.f32 %v1530, %v1581
        %v1710 = vsub.f32 %v1531, %v1582
        %v1711 = vsub.f32 %v1532, %v1583
        %v1712 = vsub.f32 %v1533, %v1584
        %v1713 = vsub.f32 %v1534, %v1585
        %v1714 = vsub.f32 %v1535, %v1586
        %v1715 = vsub.f32 %v1536, %v1587
        %v1716 = vsub.f32 %v1537, %v1588
        %v1717 = vsub.f32 %v1538, %v1589
        %v1718 = vsub.f32 %v1539, %v1590
        %v1719 = vsub.f32 %v1540, %v1591
        %v1720 = vsub.f32 %v1541, %v1592
        %v1721 = vsub.f32 %v1542, %v1593
        %v1722 = vadd.f32 %v1690, 1e-05
        %v1723 = vadd.f32 %v1691, 1e-05
        %v1724 = vadd.f32 %v1692, 1e-05
        %v1725 = vadd.f32 %v1693, 1e-05
        %v1726 = vadd.f32 %v1694, 1e-05
        %v1727 = vadd.f32 %v1695, 1e-05
        %v1728 = vadd.f32 %v1696, 1e-05
        %v1729 = vadd.f32 %v1697, 1e-05
        %v1730 = vadd.f32 %v1698, 1e-05
        %v1731 = vadd.f32 %v1699, 1e-05
        %v1732 = vadd.f32 %v1700, 1e-05
        %v1733 = vadd.f32 %v1701, 1e-05
        %v1734 = vadd.f32 %v1702, 1e-05
        %v1735 = vadd.f32 %v1703, 1e-05
        %v1736 = vadd.f32 %v1704, 1e-05
        %v1737 = vadd.f32 %v1705, 1e-05
        %v1738 = vrsqrt.pop %v1722
        %v1739 = vrsqrt.pop %v1723
        %v1740 = vrsqrt.pop %v1724
        %v1741 = vrsqrt.pop %v1725
        %v1742 = vrsqrt.pop %v1726
        %v1743 = vrsqrt.pop %v1727
        %v1744 = vrsqrt.pop %v1728
        %v1745 = vrsqrt.pop %v1729
        %v1746 = vrsqrt.pop %v1730
        %v1747 = vrsqrt.pop %v1731
        %v1748 = vrsqrt.pop %v1732
        %v1749 = vrsqrt.pop %v1733
        %v1750 = vrsqrt.pop %v1734
        %v1751 = vrsqrt.pop %v1735
        %v1752 = vrsqrt.pop %v1736
        %v1753 = vrsqrt.pop %v1737
        %v1754 = vmul.f32 %v1706, %v1738
        %v1755 = vmul.f32 %v1707, %v1739
        %v1756 = vmul.f32 %v1708, %v1740
        %v1757 = vmul.f32 %v1709, %v1741
        %v1758 = vmul.f32 %v1710, %v1742
        %v1759 = vmul.f32 %v1711, %v1743
        %v1760 = vmul.f32 %v1712, %v1744
        %v1761 = vmul.f32 %v1713, %v1745
        %v1762 = vmul.f32 %v1714, %v1746
        %v1763 = vmul.f32 %v1715, %v1747
        %v1764 = vmul.f32 %v1716, %v1748
        %v1765 = vmul.f32 %v1717, %v1749
        %v1766 = vmul.f32 %v1718, %v1750
        %v1767 = vmul.f32 %v1719, %v1751
        %v1768 = vmul.f32 %v1720, %v1752
        %v1769 = vmul.f32 %v1721, %v1753
        %v1771 = vlaneseq
        %v1772 = vshrl.u32 %v1771, 7
        %v1773 = vsub.s32 0, %v1772
        %v1774 = vrot.slane %v1543, %v1773
        %v1776 = vmul.f32 %v1754, %v1774
        %v1777 = vmul.f32 %v1755, %v1774
        %v1778 = vmul.f32 %v1756, %v1774
        %v1779 = vmul.f32 %v1757, %v1774
        %v1780 = vmul.f32 %v1758, %v1774
        %v1781 = vmul.f32 %v1759, %v1774
        %v1782 = vmul.f32 %v1760, %v1774
        %v1783 = vmul.f32 %v1761, %v1774
        %v1784 = vmul.f32 %v1762, %v1774
        %v1785 = vmul.f32 %v1763, %v1774
        %v1786 = vmul.f32 %v1764, %v1774
        %v1787 = vmul.f32 %v1765, %v1774
        %v1788 = vmul.f32 %v1766, %v1774
        %v1789 = vmul.f32 %v1767, %v1774
        %v1790 = vmul.f32 %v1768, %v1774
        %v1791 = vmul.f32 %v1769, %v1774
        %v1793 = vlaneseq
        %v1794 = vshrl.u32 %v1793, 7
        %v1795 = vsub.s32 0, %v1794
        %v1796 = vrot.slane %v1544, %v1795
        %v1798 = vadd.f32 %v1776, %v1796
        %v1799 = vadd.f32 %v1777, %v1796
        %v1800 = vadd.f32 %v1778, %v1796
        %v1801 = vadd.f32 %v1779, %v1796
        %v1802 = vadd.f32 %v1780, %v1796
        %v1803 = vadd.f32 %v1781, %v1796
        %v1804 = vadd.f32 %v1782, %v1796
        %v1805 = vadd.f32 %v1783, %v1796
        %v1806 = vadd.f32 %v1784, %v1796
        %v1807 = vadd.f32 %v1785, %v1796
        %v1808 = vadd.f32 %v1786, %v1796
        %v1809 = vadd.f32 %v1787, %v1796
        %v1810 = vadd.f32 %v1788, %v1796
        %v1811 = vadd.f32 %v1789, %v1796
        %v1812 = vadd.f32 %v1790, %v1796
        %v1813 = vadd.f32 %v1791, %v1796
        %v1814 = vmul.f32 %v1798, 0.5
        %v1815 = vmul.f32 %v1799, 0.5
        %v1816 = vmul.f32 %v1800, 0.5
        %v1817 = vmul.f32 %v1801, 0.5
        %v1818 = vmul.f32 %v1802, 0.5
        %v1819 = vmul.f32 %v1803, 0.5
        %v1820 = vmul.f32 %v1804, 0.5
        %v1821 = vmul.f32 %v1805, 0.5
        %v1822 = vmul.f32 %v1806, 0.5
        %v1823 = vmul.f32 %v1807, 0.5
        %v1824 = vmul.f32 %v1808, 0.5
        %v1825 = vmul.f32 %v1809, 0.5
        %v1826 = vmul.f32 %v1810, 0.5
        %v1827 = vmul.f32 %v1811, 0.5
        %v1828 = vmul.f32 %v1812, 0.5
        %v1829 = vmul.f32 %v1813, 0.5
        %v1830 = vmul.f32 %v1798, 0.70710677
        %v1831 = vmul.f32 %v1799, 0.70710677
        %v1832 = vmul.f32 %v1800, 0.70710677
        %v1833 = vmul.f32 %v1801, 0.70710677
        %v1834 = vmul.f32 %v1802, 0.70710677
        %v1835 = vmul.f32 %v1803, 0.70710677
        %v1836 = vmul.f32 %v1804, 0.70710677
        %v1837 = vmul.f32 %v1805, 0.70710677
        %v1838 = vmul.f32 %v1806, 0.70710677
        %v1839 = vmul.f32 %v1807, 0.70710677
        %v1840 = vmul.f32 %v1808, 0.70710677
        %v1841 = vmul.f32 %v1809, 0.70710677
        %v1842 = vmul.f32 %v1810, 0.70710677
        %v1843 = vmul.f32 %v1811, 0.70710677
        %v1844 = vmul.f32 %v1812, 0.70710677
        %v1845 = vmul.f32 %v1813, 0.70710677
        %v1846 = verf.f32.pop %v1830
        %v1847 = verf.f32.pop %v1831
        %v1848 = verf.f32.pop %v1832
        %v1849 = verf.f32.pop %v1833
        %v1850 = verf.f32.pop %v1834
        %v1851 = verf.f32.pop %v1835
        %v1852 = verf.f32.pop %v1836
        %v1853 = verf.f32.pop %v1837
        %v1854 = verf.f32.pop %v1838
        %v1855 = verf.f32.pop %v1839
        %v1856 = verf.f32.pop %v1840
        %v1857 = verf.f32.pop %v1841
        %v1858 = verf.f32.pop %v1842
        %v1859 = verf.f32.pop %v1843
        %v1860 = verf.f32.pop %v1844
        %v1861 = verf.f32.pop %v1845
        %v1862 = vadd.f32 %v1846, 1.0
        %v1863 = vadd.f32 %v1847, 1.0
        %v1864 = vadd.f32 %v1848, 1.0
        %v1865 = vadd.f32 %v1849, 1.0
        %v1866 = vadd.f32 %v1850, 1.0
        %v1867 = vadd.f32 %v1851, 1.0
        %v1868 = vadd.f32 %v1852, 1.0
        %v1869 = vadd.f32 %v1853, 1.0
        %v1870 = vadd.f32 %v1854, 1.0
        %v1871 = vadd.f32 %v1855, 1.0
        %v1872 = vadd.f32 %v1856, 1.0
        %v1873 = vadd.f32 %v1857, 1.0
        %v1874 = vadd.f32 %v1858, 1.0
        %v1875 = vadd.f32 %v1859, 1.0
        %v1876 = vadd.f32 %v1860, 1.0
        %v1877 = vadd.f32 %v1861, 1.0
        %v1878 = vmul.f32 %v1814, %v1862
        %v1879 = vmul.f32 %v1815, %v1863
        %v1880 = vmul.f32 %v1816, %v1864
        %v1881 = vmul.f32 %v1817, %v1865
        %v1882 = vmul.f32 %v1818, %v1866
        %v1883 = vmul.f32 %v1819, %v1867
        %v1884 = vmul.f32 %v1820, %v1868
        %v1885 = vmul.f32 %v1821, %v1869
        %v1886 = vmul.f32 %v1822, %v1870
        %v1887 = vmul.f32 %v1823, %v1871
        %v1888 = vmul.f32 %v1824, %v1872
        %v1889 = vmul.f32 %v1825, %v1873
        %v1890 = vmul.f32 %v1826, %v1874
        %v1891 = vmul.f32 %v1827, %v1875
        %v1892 = vmul.f32 %v1828, %v1876
        %v1893 = vmul.f32 %v1829, %v1877
        %v1894 = vld [vmem:[#allocation8] sm:$0xff]
        %v1895 = vld [vmem:[#allocation8 + $0x8] sm:$0xff]
        %v1896 = vld [vmem:[#allocation8 + $0x10] sm:$0xff]
        %v1897 = vld [vmem:[#allocation8 + $0x18] sm:$0xff]
        %v1898 = vld [vmem:[#allocation8 + $0x20] sm:$0xff]
        %v1899 = vld [vmem:[#allocation8 + $0x28] sm:$0xff]
        %v1900 = vld [vmem:[#allocation8 + $0x30] sm:$0xff]
        %v1901 = vld [vmem:[#allocation8 + $0x38] sm:$0xff]
        %v1902 = vld [vmem:[#allocation8 + $0x40] sm:$0xff]
        %v1903 = vld [vmem:[#allocation8 + $0x48] sm:$0xff]
        %v1904 = vld [vmem:[#allocation8 + $0x50] sm:$0xff]
        %v1905 = vld [vmem:[#allocation8 + $0x58] sm:$0xff]
        %v1906 = vld [vmem:[#allocation8 + $0x60] sm:$0xff]
        %v1907 = vld [vmem:[#allocation8 + $0x68] sm:$0xff]
        %v1908 = vld [vmem:[#allocation8 + $0x70] sm:$0xff]
        %v1909 = vld [vmem:[#allocation8 + $0x78] sm:$0xff]
        %v1910 = vld [vmem:[%s12] sm:$0x1]
        %v1912 = vlaneseq
        %v1913 = vshrl.u32 %v1912, 7
        %v1914 = vsub.s32 0, %v1913
        %v1915 = vrot.slane %v1910, %v1914
        %1917 = vmatprep.subr.mxu0 0.0
        %1918 = vmatpush1.msra.mxu0 %v1894
        %1919 = vmatprep.subr.mxu0 0.0
        %1920 = vmatpush1.msra.mxu0 %v1895
        %1921 = vmatprep.subr.mxu0 0.0
        %1922 = vmatpush1.msra.mxu0 %v1896
        %1923 = vmatprep.subr.mxu0 0.0
        %1924 = vmatpush1.msra.mxu0 %v1897
        %1925 = vmatprep.subr.mxu0 0.0
        %1926 = vmatpush1.msra.mxu0 %v1898
        %1927 = vmatprep.subr.mxu0 0.0
        %1928 = vmatpush1.msra.mxu0 %v1899
        %1929 = vmatprep.subr.mxu0 0.0
        %1930 = vmatpush1.msra.mxu0 %v1900
        %1931 = vmatprep.subr.mxu0 0.0
        %1932 = vmatpush1.msra.mxu0 %v1901
        %1933 = vmatprep.subr.mxu0 0.0
        %1934 = vmatpush1.msra.mxu0 %v1902
        %1935 = vmatprep.subr.mxu0 0.0
        %1936 = vmatpush1.msra.mxu0 %v1903
        %1937 = vmatprep.subr.mxu0 0.0
        %1938 = vmatpush1.msra.mxu0 %v1904
        %1939 = vmatprep.subr.mxu0 0.0
        %1940 = vmatpush1.msra.mxu0 %v1905
        %1941 = vmatprep.subr.mxu0 0.0
        %1942 = vmatpush1.msra.mxu0 %v1906
        %1943 = vmatprep.subr.mxu0 0.0
        %1944 = vmatpush1.msra.mxu0 %v1907
        %1945 = vmatprep.subr.mxu0 0.0
        %1946 = vmatpush1.msra.mxu0 %v1908
        %1947 = vmatprep.subr.mxu0 0.0
        %1948 = vmatpush1.msra.mxu0 %v1909
        %1949 = vmatprep.subr.mxu0 0.0
        %1950 = vmatpush1.msra.mxu0 0.0
        %1951 = vmatprep.subr.mxu0 0.0
        %1952 = vmatpush1.msra.mxu0 0.0
        %1953 = vmatprep.subr.mxu0 0.0
        %1954 = vmatpush1.msra.mxu0 0.0
        %1955 = vmatprep.subr.mxu0 0.0
        %1956 = vmatpush1.msra.mxu0 0.0
        %1957 = vmatprep.subr.mxu0 0.0
        %1958 = vmatpush1.msra.mxu0 0.0
        %1959 = vmatprep.subr.mxu0 0.0
        %1960 = vmatpush1.msra.mxu0 0.0
        %1961 = vmatprep.subr.mxu0 0.0
        %1962 = vmatpush1.msra.mxu0 0.0
        %1963 = vmatprep.subr.mxu0 0.0
        %1964 = vmatpush1.msra.mxu0 0.0
        %1965 = vmatprep.subr.mxu0 0.0
        %1966 = vmatpush1.msra.mxu0 0.0
        %1967 = vmatprep.subr.mxu0 0.0
        %1968 = vmatpush1.msra.mxu0 0.0
        %1969 = vmatprep.subr.mxu0 0.0
        %1970 = vmatpush1.msra.mxu0 0.0
        %1971 = vmatprep.subr.mxu0 0.0
        %1972 = vmatpush1.msra.mxu0 0.0
        %1973 = vmatprep.subr.mxu0 0.0
        %1974 = vmatpush1.msra.mxu0 0.0
        %1975 = vmatprep.subr.mxu0 0.0
        %1976 = vmatpush1.msra.mxu0 0.0
        %1977 = vmatprep.subr.mxu0 0.0
        %1978 = vmatpush1.msra.mxu0 0.0
        %1979 = vmatprep.subr.mxu0 0.0
        %1980 = vmatpush1.msra.mxu0 0.0
        %1981 = vmatprep.mubr.f32.mxu0 0.0
        %1982 = vmatmul.mubr.f32.gmra.mrb[0].mxu0 %v1878
        %v1983 = vpop.f32.mrb[0].mxu0
        %v1984 = vadd.f32 %v1915, %v1983
        %v1985 = vpop.f32.mrb[0].mxu0
        %1986 = vmatprep.mubr.f32.mxu0 0.0
        %1987 = vmatmul.mubr.f32.gmra.mrb[0].mxu0 %v1879
        %v1988 = vpop.f32.mrb[0].mxu0
        %v1989 = vadd.f32 %v1915, %v1988
        %v1990 = vpop.f32.mrb[0].mxu0
        %1991 = vmatprep.mubr.f32.mxu0 0.0
        %1992 = vmatmul.mubr.f32.gmra.mrb[0].mxu0 %v1880
        %v1993 = vpop.f32.mrb[0].mxu0
        %v1994 = vadd.f32 %v1915, %v1993
        %v1995 = vpop.f32.mrb[0].mxu0
        %1996 = vmatprep.mubr.f32.mxu0 0.0
        %1997 = vmatmul.mubr.f32.gmra.mrb[0].mxu0 %v1881
        %v1998 = vpop.f32.mrb[0].mxu0
        %v1999 = vadd.f32 %v1915, %v1998
        %v2000 = vpop.f32.mrb[0].mxu0
        %2001 = vmatprep.mubr.f32.mxu0 0.0
        %2002 = vmatmul.mubr.f32.gmra.mrb[0].mxu0 %v1882
        %v2003 = vpop.f32.mrb[0].mxu0
        %v2004 = vadd.f32 %v1915, %v2003
        %v2005 = vpop.f32.mrb[0].mxu0
        %2006 = vmatprep.mubr.f32.mxu0 0.0
        %2007 = vmatmul.mubr.f32.gmra.mrb[0].mxu0 %v1883
        %v2008 = vpop.f32.mrb[0].mxu0
        %v2009 = vadd.f32 %v1915, %v2008
        %v2010 = vpop.f32.mrb[0].mxu0
        %2011 = vmatprep.mubr.f32.mxu0 0.0
        %2012 = vmatmul.mubr.f32.gmra.mrb[0].mxu0 %v1884
        %v2013 = vpop.f32.mrb[0].mxu0
        %v2014 = vadd.f32 %v1915, %v2013
        %v2015 = vpop.f32.mrb[0].mxu0
        %2016 = vmatprep.mubr.f32.mxu0 0.0
        %2017 = vmatmul.mubr.f32.gmra.mrb[0].mxu0 %v1885
        %v2018 = vpop.f32.mrb[0].mxu0
        %v2019 = vadd.f32 %v1915, %v2018
        %v2020 = vpop.f32.mrb[0].mxu0
        %2021 = vmatprep.mubr.f32.mxu0 0.0
        %2022 = vmatmul.mubr.f32.gmra.mrb[0].mxu0 %v1886
        %v2023 = vpop.f32.mrb[0].mxu0
        %v2024 = vadd.f32 %v1915, %v2023
        %v2025 = vpop.f32.mrb[0].mxu0
        %2026 = vmatprep.mubr.f32.mxu0 0.0
        %2027 = vmatmul.mubr.f32.gmra.mrb[0].mxu0 %v1887
        %v2028 = vpop.f32.mrb[0].mxu0
        %v2029 = vadd.f32 %v1915, %v2028
        %v2030 = vpop.f32.mrb[0].mxu0
        %2031 = vmatprep.mubr.f32.mxu0 0.0
        %2032 = vmatmul.mubr.f32.gmra.mrb[0].mxu0 %v1888
        %v2033 = vpop.f32.mrb[0].mxu0
        %v2034 = vadd.f32 %v1915, %v2033
        %v2035 = vpop.f32.mrb[0].mxu0
        %2036 = vmatprep.mubr.f32.mxu0 0.0
        %2037 = vmatmul.mubr.f32.gmra.mrb[0].mxu0 %v1889
        %v2038 = vpop.f32.mrb[0].mxu0
        %v2039 = vadd.f32 %v1915, %v2038
        %v2040 = vpop.f32.mrb[0].mxu0
        %2041 = vmatprep.mubr.f32.mxu0 0.0
        %2042 = vmatmul.mubr.f32.gmra.mrb[0].mxu0 %v1890
        %v2043 = vpop.f32.mrb[0].mxu0
        %v2044 = vadd.f32 %v1915, %v2043
        %v2045 = vpop.f32.mrb[0].mxu0
        %2046 = vmatprep.mubr.f32.mxu0 0.0
        %2047 = vmatmul.mubr.f32.gmra.mrb[0].mxu0 %v1891
        %v2048 = vpop.f32.mrb[0].mxu0
        %v2049 = vadd.f32 %v1915, %v2048
        %v2050 = vpop.f32.mrb[0].mxu0
        %2051 = vmatprep.mubr.f32.mxu0 0.0
        %2052 = vmatmul.mubr.f32.gmra.mrb[0].mxu0 %v1892
        %v2053 = vpop.f32.mrb[0].mxu0
        %v2054 = vadd.f32 %v1915, %v2053
        %v2055 = vpop.f32.mrb[0].mxu0
        %2056 = vmatprep.mubr.f32.mxu0 0.0
        %2057 = vmatmul.mubr.f32.gmra.mrb[0].mxu0 %v1893
        %v2058 = vpop.f32.mrb[0].mxu0
        %v2059 = vadd.f32 %v1915, %v2058
        %v2060 = vpop.f32.mrb[0].mxu0
        %2061 = vdwg.mxu0
        %v2062 = vld [vmem:[%s13] sm:$0x1]
        %v2063 = vld [vmem:[%s14] sm:$0x1]
        %2064 = vadd.xlane.f32.xlu0 %v1984
        %v2065 = vpop.xlane.xlu0 %2064
        %2066 = vadd.xlane.f32.xlu0 %v1989
        %v2067 = vpop.xlane.xlu0 %2066
        %2068 = vadd.xlane.f32.xlu0 %v1994
        %v2069 = vpop.xlane.xlu0 %2068
        %2070 = vadd.xlane.f32.xlu0 %v1999
        %v2071 = vpop.xlane.xlu0 %2070
        %2072 = vadd.xlane.f32.xlu0 %v2004
        %v2073 = vpop.xlane.xlu0 %2072
        %2074 = vadd.xlane.f32.xlu0 %v2009
        %v2075 = vpop.xlane.xlu0 %2074
        %2076 = vadd.xlane.f32.xlu0 %v2014
        %v2077 = vpop.xlane.xlu0 %2076
        %2078 = vadd.xlane.f32.xlu0 %v2019
        %v2079 = vpop.xlane.xlu0 %2078
        %2080 = vadd.xlane.f32.xlu0 %v2024
        %v2081 = vpop.xlane.xlu0 %2080
        %2082 = vadd.xlane.f32.xlu0 %v2029
        %v2083 = vpop.xlane.xlu0 %2082
        %2084 = vadd.xlane.f32.xlu0 %v2034
        %v2085 = vpop.xlane.xlu0 %2084
        %2086 = vadd.xlane.f32.xlu0 %v2039
        %v2087 = vpop.xlane.xlu0 %2086
        %2088 = vadd.xlane.f32.xlu0 %v2044
        %v2089 = vpop.xlane.xlu0 %2088
        %2090 = vadd.xlane.f32.xlu0 %v2049
        %v2091 = vpop.xlane.xlu0 %2090
        %2092 = vadd.xlane.f32.xlu0 %v2054
        %v2093 = vpop.xlane.xlu0 %2092
        %2094 = vadd.xlane.f32.xlu0 %v2059
        %v2095 = vpop.xlane.xlu0 %2094
        %v2096 = vmul.f32 %v2065, %v1577
        %v2097 = vmul.f32 %v2067, %v1577
        %v2098 = vmul.f32 %v2069, %v1577
        %v2099 = vmul.f32 %v2071, %v1577
        %v2100 = vmul.f32 %v2073, %v1577
        %v2101 = vmul.f32 %v2075, %v1577
        %v2102 = vmul.f32 %v2077, %v1577
        %v2103 = vmul.f32 %v2079, %v1577
        %v2104 = vmul.f32 %v2081, %v1577
        %v2105 = vmul.f32 %v2083, %v1577
        %v2106 = vmul.f32 %v2085, %v1577
        %v2107 = vmul.f32 %v2087, %v1577
        %v2108 = vmul.f32 %v2089, %v1577
        %v2109 = vmul.f32 %v2091, %v1577
        %v2110 = vmul.f32 %v2093, %v1577
        %v2111 = vmul.f32 %v2095, %v1577
        %v2112 = vmul.f32 %v1984, %v1984
        %v2113 = vmul.f32 %v1989, %v1989
        %v2114 = vmul.f32 %v1994, %v1994
        %v2115 = vmul.f32 %v1999, %v1999
        %v2116 = vmul.f32 %v2004, %v2004
        %v2117 = vmul.f32 %v2009, %v2009
        %v2118 = vmul.f32 %v2014, %v2014
        %v2119 = vmul.f32 %v2019, %v2019
        %v2120 = vmul.f32 %v2024, %v2024
        %v2121 = vmul.f32 %v2029, %v2029
        %v2122 = vmul.f32 %v2034, %v2034
        %v2123 = vmul.f32 %v2039, %v2039
        %v2124 = vmul.f32 %v2044, %v2044
        %v2125 = vmul.f32 %v2049, %v2049
        %v2126 = vmul.f32 %v2054, %v2054
        %v2127 = vmul.f32 %v2059, %v2059
        %2128 = vadd.xlane.f32.xlu0 %v2112
        %v2129 = vpop.xlane.xlu0 %2128
        %2130 = vadd.xlane.f32.xlu0 %v2113
        %v2131 = vpop.xlane.xlu0 %2130
        %2132 = vadd.xlane.f32.xlu0 %v2114
        %v2133 = vpop.xlane.xlu0 %2132
        %2134 = vadd.xlane.f32.xlu0 %v2115
        %v2135 = vpop.xlane.xlu0 %2134
        %2136 = vadd.xlane.f32.xlu0 %v2116
        %v2137 = vpop.xlane.xlu0 %2136
        %2138 = vadd.xlane.f32.xlu0 %v2117
        %v2139 = vpop.xlane.xlu0 %2138
        %2140 = vadd.xlane.f32.xlu0 %v2118
        %v2141 = vpop.xlane.xlu0 %2140
        %2142 = vadd.xlane.f32.xlu0 %v2119
        %v2143 = vpop.xlane.xlu0 %2142
        %2144 = vadd.xlane.f32.xlu0 %v2120
        %v2145 = vpop.xlane.xlu0 %2144
        %2146 = vadd.xlane.f32.xlu0 %v2121
        %v2147 = vpop.xlane.xlu0 %2146
        %2148 = vadd.xlane.f32.xlu0 %v2122
        %v2149 = vpop.xlane.xlu0 %2148
        %2150 = vadd.xlane.f32.xlu0 %v2123
        %v2151 = vpop.xlane.xlu0 %2150
        %2152 = vadd.xlane.f32.xlu0 %v2124
        %v2153 = vpop.xlane.xlu0 %2152
        %2154 = vadd.xlane.f32.xlu0 %v2125
        %v2155 = vpop.xlane.xlu0 %2154
        %2156 = vadd.xlane.f32.xlu0 %v2126
        %v2157 = vpop.xlane.xlu0 %2156
        %2158 = vadd.xlane.f32.xlu0 %v2127
        %v2159 = vpop.xlane.xlu0 %2158
        %v2160 = vmul.f32 %v2129, %v1577
        %v2161 = vmul.f32 %v2131, %v1577
        %v2162 = vmul.f32 %v2133, %v1577
        %v2163 = vmul.f32 %v2135, %v1577
        %v2164 = vmul.f32 %v2137, %v1577
        %v2165 = vmul.f32 %v2139, %v1577
        %v2166 = vmul.f32 %v2141, %v1577
        %v2167 = vmul.f32 %v2143, %v1577
        %v2168 = vmul.f32 %v2145, %v1577
        %v2169 = vmul.f32 %v2147, %v1577
        %v2170 = vmul.f32 %v2149, %v1577
        %v2171 = vmul.f32 %v2151, %v1577
        %v2172 = vmul.f32 %v2153, %v1577
        %v2173 = vmul.f32 %v2155, %v1577
        %v2174 = vmul.f32 %v2157, %v1577
        %v2175 = vmul.f32 %v2159, %v1577
        %v2176 = vmul.f32 %v2096, %v2096
        %v2177 = vmul.f32 %v2097, %v2097
        %v2178 = vmul.f32 %v2098, %v2098
        %v2179 = vmul.f32 %v2099, %v2099
        %v2180 = vmul.f32 %v2100, %v2100
        %v2181 = vmul.f32 %v2101, %v2101
        %v2182 = vmul.f32 %v2102, %v2102
        %v2183 = vmul.f32 %v2103, %v2103
        %v2184 = vmul.f32 %v2104, %v2104
        %v2185 = vmul.f32 %v2105, %v2105
        %v2186 = vmul.f32 %v2106, %v2106
        %v2187 = vmul.f32 %v2107, %v2107
        %v2188 = vmul.f32 %v2108, %v2108
        %v2189 = vmul.f32 %v2109, %v2109
        %v2190 = vmul.f32 %v2110, %v2110
        %v2191 = vmul.f32 %v2111, %v2111
        %v2192 = vsub.f32 %v2160, %v2176
        %v2193 = vsub.f32 %v2161, %v2177
        %v2194 = vsub.f32 %v2162, %v2178
        %v2195 = vsub.f32 %v2163, %v2179
        %v2196 = vsub.f32 %v2164, %v2180
        %v2197 = vsub.f32 %v2165, %v2181
        %v2198 = vsub.f32 %v2166, %v2182
        %v2199 = vsub.f32 %v2167, %v2183
        %v2200 = vsub.f32 %v2168, %v2184
        %v2201 = vsub.f32 %v2169, %v2185
        %v2202 = vsub.f32 %v2170, %v2186
        %v2203 = vsub.f32 %v2171, %v2187
        %v2204 = vsub.f32 %v2172, %v2188
        %v2205 = vsub.f32 %v2173, %v2189
        %v2206 = vsub.f32 %v2174, %v2190
        %v2207 = vsub.f32 %v2175, %v2191
        %v2208 = vmax.f32 %v2192, 0.0
        %v2209 = vmax.f32 %v2193, 0.0
        %v2210 = vmax.f32 %v2194, 0.0
        %v2211 = vmax.f32 %v2195, 0.0
        %v2212 = vmax.f32 %v2196, 0.0
        %v2213 = vmax.f32 %v2197, 0.0
        %v2214 = vmax.f32 %v2198, 0.0
        %v2215 = vmax.f32 %v2199, 0.0
        %v2216 = vmax.f32 %v2200, 0.0
        %v2217 = vmax.f32 %v2201, 0.0
        %v2218 = vmax.f32 %v2202, 0.0
        %v2219 = vmax.f32 %v2203, 0.0
        %v2220 = vmax.f32 %v2204, 0.0
        %v2221 = vmax.f32 %v2205, 0.0
        %v2222 = vmax.f32 %v2206, 0.0
        %v2223 = vmax.f32 %v2207, 0.0
        %v2224 = vsub.f32 %v1984, %v2096
        %v2225 = vsub.f32 %v1989, %v2097
        %v2226 = vsub.f32 %v1994, %v2098
        %v2227 = vsub.f32 %v1999, %v2099
        %v2228 = vsub.f32 %v2004, %v2100
        %v2229 = vsub.f32 %v2009, %v2101
        %v2230 = vsub.f32 %v2014, %v2102
        %v2231 = vsub.f32 %v2019, %v2103
        %v2232 = vsub.f32 %v2024, %v2104
        %v2233 = vsub.f32 %v2029, %v2105
        %v2234 = vsub.f32 %v2034, %v2106
        %v2235 = vsub.f32 %v2039, %v2107
        %v2236 = vsub.f32 %v2044, %v2108
        %v2237 = vsub.f32 %v2049, %v2109
        %v2238 = vsub.f32 %v2054, %v2110
        %v2239 = vsub.f32 %v2059, %v2111
        %v2240 = vadd.f32 %v2208, 1e-05
        %v2241 = vadd.f32 %v2209, 1e-05
        %v2242 = vadd.f32 %v2210, 1e-05
        %v2243 = vadd.f32 %v2211, 1e-05
        %v2244 = vadd.f32 %v2212, 1e-05
        %v2245 = vadd.f32 %v2213, 1e-05
        %v2246 = vadd.f32 %v2214, 1e-05
        %v2247 = vadd.f32 %v2215, 1e-05
        %v2248 = vadd.f32 %v2216, 1e-05
        %v2249 = vadd.f32 %v2217, 1e-05
        %v2250 = vadd.f32 %v2218, 1e-05
        %v2251 = vadd.f32 %v2219, 1e-05
        %v2252 = vadd.f32 %v2220, 1e-05
        %v2253 = vadd.f32 %v2221, 1e-05
        %v2254 = vadd.f32 %v2222, 1e-05
        %v2255 = vadd.f32 %v2223, 1e-05
        %v2256 = vrsqrt.pop %v2240
        %v2257 = vrsqrt.pop %v2241
        %v2258 = vrsqrt.pop %v2242
        %v2259 = vrsqrt.pop %v2243
        %v2260 = vrsqrt.pop %v2244
        %v2261 = vrsqrt.pop %v2245
        %v2262 = vrsqrt.pop %v2246
        %v2263 = vrsqrt.pop %v2247
        %v2264 = vrsqrt.pop %v2248
        %v2265 = vrsqrt.pop %v2249
        %v2266 = vrsqrt.pop %v2250
        %v2267 = vrsqrt.pop %v2251
        %v2268 = vrsqrt.pop %v2252
        %v2269 = vrsqrt.pop %v2253
        %v2270 = vrsqrt.pop %v2254
        %v2271 = vrsqrt.pop %v2255
        %v2272 = vmul.f32 %v2224, %v2256
        %v2273 = vmul.f32 %v2225, %v2257
        %v2274 = vmul.f32 %v2226, %v2258
        %v2275 = vmul.f32 %v2227, %v2259
        %v2276 = vmul.f32 %v2228, %v2260
        %v2277 = vmul.f32 %v2229, %v2261
        %v2278 = vmul.f32 %v2230, %v2262
        %v2279 = vmul.f32 %v2231, %v2263
        %v2280 = vmul.f32 %v2232, %v2264
        %v2281 = vmul.f32 %v2233, %v2265
        %v2282 = vmul.f32 %v2234, %v2266
        %v2283 = vmul.f32 %v2235, %v2267
        %v2284 = vmul.f32 %v2236, %v2268
        %v2285 = vmul.f32 %v2237, %v2269
        %v2286 = vmul.f32 %v2238, %v2270
        %v2287 = vmul.f32 %v2239, %v2271
        %v2289 = vlaneseq
        %v2290 = vshrl.u32 %v2289, 7
        %v2291 = vsub.s32 0, %v2290
        %v2292 = vrot.slane %v2062, %v2291
        %v2294 = vmul.f32 %v2272, %v2292
        %v2295 = vmul.f32 %v2273, %v2292
        %v2296 = vmul.f32 %v2274, %v2292
        %v2297 = vmul.f32 %v2275, %v2292
        %v2298 = vmul.f32 %v2276, %v2292
        %v2299 = vmul.f32 %v2277, %v2292
        %v2300 = vmul.f32 %v2278, %v2292
        %v2301 = vmul.f32 %v2279, %v2292
        %v2302 = vmul.f32 %v2280, %v2292
        %v2303 = vmul.f32 %v2281, %v2292
        %v2304 = vmul.f32 %v2282, %v2292
        %v2305 = vmul.f32 %v2283, %v2292
        %v2306 = vmul.f32 %v2284, %v2292
        %v2307 = vmul.f32 %v2285, %v2292
        %v2308 = vmul.f32 %v2286, %v2292
        %v2309 = vmul.f32 %v2287, %v2292
        %v2311 = vlaneseq
        %v2312 = vshrl.u32 %v2311, 7
        %v2313 = vsub.s32 0, %v2312
        %v2314 = vrot.slane %v2063, %v2313
        %v2316 = vadd.f32 %v2294, %v2314
        %v2317 = vadd.f32 %v2295, %v2314
        %v2318 = vadd.f32 %v2296, %v2314
        %v2319 = vadd.f32 %v2297, %v2314
        %v2320 = vadd.f32 %v2298, %v2314
        %v2321 = vadd.f32 %v2299, %v2314
        %v2322 = vadd.f32 %v2300, %v2314
        %v2323 = vadd.f32 %v2301, %v2314
        %v2324 = vadd.f32 %v2302, %v2314
        %v2325 = vadd.f32 %v2303, %v2314
        %v2326 = vadd.f32 %v2304, %v2314
        %v2327 = vadd.f32 %v2305, %v2314
        %v2328 = vadd.f32 %v2306, %v2314
        %v2329 = vadd.f32 %v2307, %v2314
        %v2330 = vadd.f32 %v2308, %v2314
        %v2331 = vadd.f32 %v2309, %v2314
        %v2332 = vmul.f32 %v2316, 0.5
        %v2333 = vmul.f32 %v2317, 0.5
        %v2334 = vmul.f32 %v2318, 0.5
        %v2335 = vmul.f32 %v2319, 0.5
        %v2336 = vmul.f32 %v2320, 0.5
        %v2337 = vmul.f32 %v2321, 0.5
        %v2338 = vmul.f32 %v2322, 0.5
        %v2339 = vmul.f32 %v2323, 0.5
        %v2340 = vmul.f32 %v2324, 0.5
        %v2341 = vmul.f32 %v2325, 0.5
        %v2342 = vmul.f32 %v2326, 0.5
        %v2343 = vmul.f32 %v2327, 0.5
        %v2344 = vmul.f32 %v2328, 0.5
        %v2345 = vmul.f32 %v2329, 0.5
        %v2346 = vmul.f32 %v2330, 0.5
        %v2347 = vmul.f32 %v2331, 0.5
        %v2348 = vmul.f32 %v2316, 0.70710677
        %v2349 = vmul.f32 %v2317, 0.70710677
        %v2350 = vmul.f32 %v2318, 0.70710677
        %v2351 = vmul.f32 %v2319, 0.70710677
        %v2352 = vmul.f32 %v2320, 0.70710677
        %v2353 = vmul.f32 %v2321, 0.70710677
        %v2354 = vmul.f32 %v2322, 0.70710677
        %v2355 = vmul.f32 %v2323, 0.70710677
        %v2356 = vmul.f32 %v2324, 0.70710677
        %v2357 = vmul.f32 %v2325, 0.70710677
        %v2358 = vmul.f32 %v2326, 0.70710677
        %v2359 = vmul.f32 %v2327, 0.70710677
        %v2360 = vmul.f32 %v2328, 0.70710677
        %v2361 = vmul.f32 %v2329, 0.70710677
        %v2362 = vmul.f32 %v2330, 0.70710677
        %v2363 = vmul.f32 %v2331, 0.70710677
        %v2364 = verf.f32.pop %v2348
        %v2365 = verf.f32.pop %v2349
        %v2366 = verf.f32.pop %v2350
        %v2367 = verf.f32.pop %v2351
        %v2368 = verf.f32.pop %v2352
        %v2369 = verf.f32.pop %v2353
        %v2370 = verf.f32.pop %v2354
        %v2371 = verf.f32.pop %v2355
        %v2372 = verf.f32.pop %v2356
        %v2373 = verf.f32.pop %v2357
        %v2374 = verf.f32.pop %v2358
        %v2375 = verf.f32.pop %v2359
        %v2376 = verf.f32.pop %v2360
        %v2377 = verf.f32.pop %v2361
        %v2378 = verf.f32.pop %v2362
        %v2379 = verf.f32.pop %v2363
        %v2380 = vadd.f32 %v2364, 1.0
        %v2381 = vadd.f32 %v2365, 1.0
        %v2382 = vadd.f32 %v2366, 1.0
        %v2383 = vadd.f32 %v2367, 1.0
        %v2384 = vadd.f32 %v2368, 1.0
        %v2385 = vadd.f32 %v2369, 1.0
        %v2386 = vadd.f32 %v2370, 1.0
        %v2387 = vadd.f32 %v2371, 1.0
        %v2388 = vadd.f32 %v2372, 1.0
        %v2389 = vadd.f32 %v2373, 1.0
        %v2390 = vadd.f32 %v2374, 1.0
        %v2391 = vadd.f32 %v2375, 1.0
        %v2392 = vadd.f32 %v2376, 1.0
        %v2393 = vadd.f32 %v2377, 1.0
        %v2394 = vadd.f32 %v2378, 1.0
        %v2395 = vadd.f32 %v2379, 1.0
        %v2396 = vmul.f32 %v2332, %v2380
        %v2397 = vmul.f32 %v2333, %v2381
        %v2398 = vmul.f32 %v2334, %v2382
        %v2399 = vmul.f32 %v2335, %v2383
        %v2400 = vmul.f32 %v2336, %v2384
        %v2401 = vmul.f32 %v2337, %v2385
        %v2402 = vmul.f32 %v2338, %v2386
        %v2403 = vmul.f32 %v2339, %v2387
        %v2404 = vmul.f32 %v2340, %v2388
        %v2405 = vmul.f32 %v2341, %v2389
        %v2406 = vmul.f32 %v2342, %v2390
        %v2407 = vmul.f32 %v2343, %v2391
        %v2408 = vmul.f32 %v2344, %v2392
        %v2409 = vmul.f32 %v2345, %v2393
        %v2410 = vmul.f32 %v2346, %v2394
        %v2411 = vmul.f32 %v2347, %v2395
        %v2412 = vld [vmem:[#allocation10] sm:$0xff]
        %v2413 = vld [vmem:[#allocation10 + $0x8] sm:$0xff]
        %v2414 = vld [vmem:[#allocation10 + $0x10] sm:$0xff]
        %v2415 = vld [vmem:[#allocation10 + $0x18] sm:$0xff]
        %v2416 = vld [vmem:[#allocation10 + $0x20] sm:$0xff]
        %v2417 = vld [vmem:[#allocation10 + $0x28] sm:$0xff]
        %v2418 = vld [vmem:[#allocation10 + $0x30] sm:$0xff]
        %v2419 = vld [vmem:[#allocation10 + $0x38] sm:$0xff]
        %v2420 = vld [vmem:[#allocation10 + $0x40] sm:$0xff]
        %v2421 = vld [vmem:[#allocation10 + $0x48] sm:$0xff]
        %v2422 = vld [vmem:[#allocation10 + $0x50] sm:$0xff]
        %v2423 = vld [vmem:[#allocation10 + $0x58] sm:$0xff]
        %v2424 = vld [vmem:[#allocation10 + $0x60] sm:$0xff]
        %v2425 = vld [vmem:[#allocation10 + $0x68] sm:$0xff]
        %v2426 = vld [vmem:[#allocation10 + $0x70] sm:$0xff]
        %v2427 = vld [vmem:[#allocation10 + $0x78] sm:$0xff]
        %v2428 = vld [vmem:[#allocation10 + $0x80] sm:$0xff]
        %v2429 = vld [vmem:[#allocation10 + $0x88] sm:$0xff]
        %v2430 = vld [vmem:[#allocation10 + $0x90] sm:$0xff]
        %v2431 = vld [vmem:[#allocation10 + $0x98] sm:$0xff]
        %v2432 = vld [vmem:[#allocation10 + $0xa0] sm:$0xff]
        %v2433 = vld [vmem:[#allocation10 + $0xa8] sm:$0xff]
        %v2434 = vld [vmem:[#allocation10 + $0xb0] sm:$0xff]
        %v2435 = vld [vmem:[#allocation10 + $0xb8] sm:$0xff]
        %v2436 = vld [vmem:[#allocation10 + $0xc0] sm:$0xff]
        %v2437 = vld [vmem:[#allocation10 + $0xc8] sm:$0xff]
        %v2438 = vld [vmem:[#allocation10 + $0xd0] sm:$0xff]
        %v2439 = vld [vmem:[#allocation10 + $0xd8] sm:$0xff]
        %v2440 = vld [vmem:[#allocation10 + $0xe0] sm:$0xff]
        %v2441 = vld [vmem:[#allocation10 + $0xe8] sm:$0xff]
        %v2442 = vld [vmem:[#allocation10 + $0xf0] sm:$0xff]
        %v2443 = vld [vmem:[#allocation10 + $0xf8] sm:$0xff]
        %v2444 = vld [vmem:[%s16] sm:$0x3]
        %v2446 = vlaneseq
        %v2447 = vshrl.u32 %v2446, 7
        %v2448 = vsub.s32 0, %v2447
        %v2449 = vrot.slane %v2444, %v2448
        %v2450 = vlaneseq
        %v2451 = vshrl.u32 %v2450, 7
        %v2452 = vsub.s32 1, %v2451
        %v2453 = vrot.slane %v2444, %v2452
        %2456 = vmatprep.subr.mxu0 %v2413
        %2457 = vmatpush1.msra.mxu0 %v2412
        %2458 = vmatprep.subr.mxu0 %v2415
        %2459 = vmatpush1.msra.mxu0 %v2414
        %2460 = vmatprep.subr.mxu0 %v2417
        %2461 = vmatpush1.msra.mxu0 %v2416
        %2462 = vmatprep.subr.mxu0 %v2419
        %2463 = vmatpush1.msra.mxu0 %v2418
        %2464 = vmatprep.subr.mxu0 %v2421
        %2465 = vmatpush1.msra.mxu0 %v2420
        %2466 = vmatprep.subr.mxu0 %v2423
        %2467 = vmatpush1.msra.mxu0 %v2422
        %2468 = vmatprep.subr.mxu0 %v2425
        %2469 = vmatpush1.msra.mxu0 %v2424
        %2470 = vmatprep.subr.mxu0 %v2427
        %2471 = vmatpush1.msra.mxu0 %v2426
        %2472 = vmatprep.subr.mxu0 %v2429
        %2473 = vmatpush1.msra.mxu0 %v2428
        %2474 = vmatprep.subr.mxu0 %v2431
        %2475 = vmatpush1.msra.mxu0 %v2430
        %2476 = vmatprep.subr.mxu0 %v2433
        %2477 = vmatpush1.msra.mxu0 %v2432
        %2478 = vmatprep.subr.mxu0 %v2435
        %2479 = vmatpush1.msra.mxu0 %v2434
        %2480 = vmatprep.subr.mxu0 %v2437
        %2481 = vmatpush1.msra.mxu0 %v2436
        %2482 = vmatprep.subr.mxu0 %v2439
        %2483 = vmatpush1.msra.mxu0 %v2438
        %2484 = vmatprep.subr.mxu0 %v2441
        %2485 = vmatpush1.msra.mxu0 %v2440
        %2486 = vmatprep.subr.mxu0 %v2443
        %2487 = vmatpush1.msra.mxu0 %v2442
        %2488 = vmatprep.subr.mxu0 0.0
        %2489 = vmatpush1.msra.mxu0 0.0
        %2490 = vmatprep.subr.mxu0 0.0
        %2491 = vmatpush1.msra.mxu0 0.0
        %2492 = vmatprep.subr.mxu0 0.0
        %2493 = vmatpush1.msra.mxu0 0.0
        %2494 = vmatprep.subr.mxu0 0.0
        %2495 = vmatpush1.msra.mxu0 0.0
        %2496 = vmatprep.subr.mxu0 0.0
        %2497 = vmatpush1.msra.mxu0 0.0
        %2498 = vmatprep.subr.mxu0 0.0
        %2499 = vmatpush1.msra.mxu0 0.0
        %2500 = vmatprep.subr.mxu0 0.0
        %2501 = vmatpush1.msra.mxu0 0.0
        %2502 = vmatprep.subr.mxu0 0.0
        %2503 = vmatpush1.msra.mxu0 0.0
        %2504 = vmatprep.subr.mxu0 0.0
        %2505 = vmatpush1.msra.mxu0 0.0
        %2506 = vmatprep.subr.mxu0 0.0
        %2507 = vmatpush1.msra.mxu0 0.0
        %2508 = vmatprep.subr.mxu0 0.0
        %2509 = vmatpush1.msra.mxu0 0.0
        %2510 = vmatprep.subr.mxu0 0.0
        %2511 = vmatpush1.msra.mxu0 0.0
        %2512 = vmatprep.subr.mxu0 0.0
        %2513 = vmatpush1.msra.mxu0 0.0
        %2514 = vmatprep.subr.mxu0 0.0
        %2515 = vmatpush1.msra.mxu0 0.0
        %2516 = vmatprep.subr.mxu0 0.0
        %2517 = vmatpush1.msra.mxu0 0.0
        %2518 = vmatprep.subr.mxu0 0.0
        %2519 = vmatpush1.msra.mxu0 0.0
        %2520 = vmatprep.mubr.f32.mxu0 0.0
        %2521 = vmatmul.mubr.f32.gmra.mrb[0].mxu0 %v2396
        %v2522 = vpop.f32.mrb[0].mxu0
        %v2523 = vadd.f32 %v2449, %v2522
        %v2524 = vpop.f32.mrb[0].mxu0
        %v2525 = vadd.f32 %v2453, %v2524
        %2526 = vmatprep.mubr.f32.mxu0 0.0
        %2527 = vmatmul.mubr.f32.gmra.mrb[0].mxu0 %v2397
        %v2528 = vpop.f32.mrb[0].mxu0
        %v2529 = vadd.f32 %v2449, %v2528
        %v2530 = vpop.f32.mrb[0].mxu0
        %v2531 = vadd.f32 %v2453, %v2530
        %2532 = vmatprep.mubr.f32.mxu0 0.0
        %2533 = vmatmul.mubr.f32.gmra.mrb[0].mxu0 %v2398
        %v2534 = vpop.f32.mrb[0].mxu0
        %v2535 = vadd.f32 %v2449, %v2534
        %v2536 = vpop.f32.mrb[0].mxu0
        %v2537 = vadd.f32 %v2453, %v2536
        %2538 = vmatprep.mubr.f32.mxu0 0.0
        %2539 = vmatmul.mubr.f32.gmra.mrb[0].mxu0 %v2399
        %v2540 = vpop.f32.mrb[0].mxu0
        %v2541 = vadd.f32 %v2449, %v2540
        %v2542 = vpop.f32.mrb[0].mxu0
        %v2543 = vadd.f32 %v2453, %v2542
        %2544 = vmatprep.mubr.f32.mxu0 0.0
        %2545 = vmatmul.mubr.f32.gmra.mrb[0].mxu0 %v2400
        %v2546 = vpop.f32.mrb[0].mxu0
        %v2547 = vadd.f32 %v2449, %v2546
        %v2548 = vpop.f32.mrb[0].mxu0
        %v2549 = vadd.f32 %v2453, %v2548
        %2550 = vmatprep.mubr.f32.mxu0 0.0
        %2551 = vmatmul.mubr.f32.gmra.mrb[0].mxu0 %v2401
        %v2552 = vpop.f32.mrb[0].mxu0
        %v2553 = vadd.f32 %v2449, %v2552
        %v2554 = vpop.f32.mrb[0].mxu0
        %v2555 = vadd.f32 %v2453, %v2554
        %2556 = vmatprep.mubr.f32.mxu0 0.0
        %2557 = vmatmul.mubr.f32.gmra.mrb[0].mxu0 %v2402
        %v2558 = vpop.f32.mrb[0].mxu0
        %v2559 = vadd.f32 %v2449, %v2558
        %v2560 = vpop.f32.mrb[0].mxu0
        %v2561 = vadd.f32 %v2453, %v2560
        %2562 = vmatprep.mubr.f32.mxu0 0.0
        %2563 = vmatmul.mubr.f32.gmra.mrb[0].mxu0 %v2403
        %v2564 = vpop.f32.mrb[0].mxu0
        %v2565 = vadd.f32 %v2449, %v2564
        %v2566 = vpop.f32.mrb[0].mxu0
        %v2567 = vadd.f32 %v2453, %v2566
        %2568 = vmatprep.mubr.f32.mxu0 0.0
        %2569 = vmatmul.mubr.f32.gmra.mrb[0].mxu0 %v2404
        %v2570 = vpop.f32.mrb[0].mxu0
        %v2571 = vadd.f32 %v2449, %v2570
        %v2572 = vpop.f32.mrb[0].mxu0
        %v2573 = vadd.f32 %v2453, %v2572
        %2574 = vmatprep.mubr.f32.mxu0 0.0
        %2575 = vmatmul.mubr.f32.gmra.mrb[0].mxu0 %v2405
        %v2576 = vpop.f32.mrb[0].mxu0
        %v2577 = vadd.f32 %v2449, %v2576
        %v2578 = vpop.f32.mrb[0].mxu0
        %v2579 = vadd.f32 %v2453, %v2578
        %2580 = vmatprep.mubr.f32.mxu0 0.0
        %2581 = vmatmul.mubr.f32.gmra.mrb[0].mxu0 %v2406
        %v2582 = vpop.f32.mrb[0].mxu0
        %v2583 = vadd.f32 %v2449, %v2582
        %v2584 = vpop.f32.mrb[0].mxu0
        %v2585 = vadd.f32 %v2453, %v2584
        %2586 = vmatprep.mubr.f32.mxu0 0.0
        %2587 = vmatmul.mubr.f32.gmra.mrb[0].mxu0 %v2407
        %v2588 = vpop.f32.mrb[0].mxu0
        %v2589 = vadd.f32 %v2449, %v2588
        %v2590 = vpop.f32.mrb[0].mxu0
        %v2591 = vadd.f32 %v2453, %v2590
        %2592 = vmatprep.mubr.f32.mxu0 0.0
        %2593 = vmatmul.mubr.f32.gmra.mrb[0].mxu0 %v2408
        %v2594 = vpop.f32.mrb[0].mxu0
        %v2595 = vadd.f32 %v2449, %v2594
        %v2596 = vpop.f32.mrb[0].mxu0
        %v2597 = vadd.f32 %v2453, %v2596
        %2598 = vmatprep.mubr.f32.mxu0 0.0
        %2599 = vmatmul.mubr.f32.gmra.mrb[0].mxu0 %v2409
        %v2600 = vpop.f32.mrb[0].mxu0
        %v2601 = vadd.f32 %v2449, %v2600
        %v2602 = vpop.f32.mrb[0].mxu0
        %v2603 = vadd.f32 %v2453, %v2602
        %2604 = vmatprep.mubr.f32.mxu0 0.0
        %2605 = vmatmul.mubr.f32.gmra.mrb[0].mxu0 %v2410
        %v2606 = vpop.f32.mrb[0].mxu0
        %v2607 = vadd.f32 %v2449, %v2606
        %v2608 = vpop.f32.mrb[0].mxu0
        %v2609 = vadd.f32 %v2453, %v2608
        %2610 = vmatprep.mubr.f32.mxu0 0.0
        %2611 = vmatmul.mubr.f32.gmra.mrb[0].mxu0 %v2411
        %v2612 = vpop.f32.mrb[0].mxu0
        %v2613 = vadd.f32 %v2449, %v2612
        %v2614 = vpop.f32.mrb[0].mxu0
        %v2615 = vadd.f32 %v2453, %v2614
        %2616 = vdwg.mxu0
        %2617 = vst [vmem:[%s641] sm:$0xff] %v2523
        %2618 = vst [vmem:[%s641 + $0x8] sm:$0xff] %v2525
        %2619 = vst [vmem:[%s641 + $0x10] sm:$0xff] %v2529
        %2620 = vst [vmem:[%s641 + $0x18] sm:$0xff] %v2531
        %2621 = vst [vmem:[%s641 + $0x20] sm:$0xff] %v2535
        %2622 = vst [vmem:[%s641 + $0x28] sm:$0xff] %v2537
        %2623 = vst [vmem:[%s641 + $0x30] sm:$0xff] %v2541
        %2624 = vst [vmem:[%s641 + $0x38] sm:$0xff] %v2543
        %2625 = vst [vmem:[%s641 + $0x40] sm:$0xff] %v2547
        %2626 = vst [vmem:[%s641 + $0x48] sm:$0xff] %v2549
        %2627 = vst [vmem:[%s641 + $0x50] sm:$0xff] %v2553
        %2628 = vst [vmem:[%s641 + $0x58] sm:$0xff] %v2555
        %2629 = vst [vmem:[%s641 + $0x60] sm:$0xff] %v2559
        %2630 = vst [vmem:[%s641 + $0x68] sm:$0xff] %v2561
        %2631 = vst [vmem:[%s641 + $0x70] sm:$0xff] %v2565
        %2632 = vst [vmem:[%s641 + $0x78] sm:$0xff] %v2567
        %2633 = vst [vmem:[%s641 + $0x80] sm:$0xff] %v2571
        %2634 = vst [vmem:[%s641 + $0x88] sm:$0xff] %v2573
        %2635 = vst [vmem:[%s641 + $0x90] sm:$0xff] %v2577
        %2636 = vst [vmem:[%s641 + $0x98] sm:$0xff] %v2579
        %2637 = vst [vmem:[%s641 + $0xa0] sm:$0xff] %v2583
        %2638 = vst [vmem:[%s641 + $0xa8] sm:$0xff] %v2585
        %2639 = vst [vmem:[%s641 + $0xb0] sm:$0xff] %v2589
        %2640 = vst [vmem:[%s641 + $0xb8] sm:$0xff] %v2591
        %2641 = vst [vmem:[%s641 + $0xc0] sm:$0xff] %v2595
        %2642 = vst [vmem:[%s641 + $0xc8] sm:$0xff] %v2597
        %2643 = vst [vmem:[%s641 + $0xd0] sm:$0xff] %v2601
        %2644 = vst [vmem:[%s641 + $0xd8] sm:$0xff] %v2603
        %2645 = vst [vmem:[%s641 + $0xe0] sm:$0xff] %v2607
        %2646 = vst [vmem:[%s641 + $0xe8] sm:$0xff] %v2609
        %2647 = vst [vmem:[%s641 + $0xf0] sm:$0xff] %v2613
        %2648 = vst [vmem:[%s641 + $0xf8] sm:$0xff] %v2615
        %s2649 = sand.u32 %s411, 1
        %s2650 = scalar_lea.sflag [#allocation4], %s2649
        %s2651 = sand.u32 %s411, 1
        %s2652 = smul.addr %s2651, 256
        %s2653 = scalar_lea.vmem [#allocation11], %s2652
        // Predicated region
        $region109: #{tpu_custom_call.1} parent=87 // pred_check
          %p2654 = pneg %p421
        $region110: #{tpu_custom_call.1} parent=87 // pred_check_branch
          %2656 = sbr.rel (%p2654) target = $region112
        $region111: #{tpu_custom_call.1} parent=87 // pred_region
          %s2657 = smul.u32 16, %s36
          %s2659 = ssub.s32 4096, 4096
          %2660 = vsyncadd %s2650, %s2659
          %s2661 = smul.addr %s2657, 2
          %s2662 = smul.addr %s2661, 128
          %s2663 = scalar_lea.hbm %s17, %s2662
          %s2664 = sshll.u32 %s2653, 4
          %s2665 = int_to_ptr.vmem [resolvable:$true] %s2664
          %2670 = dma.vmem_to_hbm [thread:$0]  %s2665, 4096, %s2663, %s2650, 256, 256, 16
        $region112: #{tpu_custom_call.1} parent=87 // pred_fallthru
          _
      $region88: #{tpu_custom_call.1} parent=5 // pred_fallthru
        _
      %p2671 = scmp.le.s32.totalorder 2, %s31
      // Predicated region
      $region113: #{tpu_custom_call.1} parent=5 // pred_check
        %p2672 = pneg %p2671
      $region114: #{tpu_custom_call.1} parent=5 // pred_check_branch
        %2674 = sbr.rel (%p2672) target = $region116
      $region115: #{tpu_custom_call.1} parent=5 // pred_region
        %s2675 = ssub.s32 %s31, 2
        // Predicated region
        $region117: #{tpu_custom_call.1} parent=115 // pred_check
          %p2676 = pneg %p427
        $region118: #{tpu_custom_call.1} parent=115 // pred_check_branch
          %2678 = sbr.rel (%p2676) target = $region120
        $region119: #{tpu_custom_call.1} parent=115 // pred_region
          %s2679 = sand.u32 %s412, 1
          %s2680 = scalar_lea.sflag [#allocation4], %s2679
          %s2681 = sand.u32 %s412, 1
          %s2682 = smul.addr %s2681, 256
          %s2683 = scalar_lea.vmem [#allocation11], %s2682
          %2684 = dma.done %s2680, 4096
        $region120: #{tpu_custom_call.1} parent=115 // pred_fallthru
          _
      $region116: #{tpu_custom_call.1} parent=5 // pred_fallthru
        _
    $region6: #{tpu_custom_call.1} parent=1 // loop_footer
      %s35 = sadd.s32 1, %s31
    $region7: #{tpu_custom_call.1} parent=1 // loop_footer_branch
      %30 = sbr.rel target = $region3
    $region8: #{tpu_custom_call.1} parent=1 // loop_exit
      _
    %2685 = vsyncpa [#allocation3], 1
    %s2686 = scalar_lea.sflag [#allocation3], 1
    %2687 = vsyncpa %s2686, 1
    %2688 = vsyncpa [#allocation6], 1
    %2689 = vsyncpa [#allocation9], 1
    %2690 = vsyncpa [#allocation4], 1
    %s2691 = scalar_lea.sflag [#allocation4], 1
    %2692 = vsyncpa %s2691, 1

// kernel: tpu_custom_call.1
$region0: #{tpu_custom_call.1}
  #allocation0 [shape = 'u32[]', space=smem, size = 0x4, offset = 0x4, fixed_abs, tag = 'smem constant byte address 0x4 - core index']
  #allocation1 [shape = 'u32[144,128]{1,0:T(1,128)}', space=vmem, size = 0x12000, scoped, tag = 'internal scratch']
  %s0 = inlined_call_operand.hbm [shape: f32[256,256], index: 0, kind: input, shape index: {}]
  %s1 = inlined_call_operand.vmem [shape: f32[256,1], index: 1, kind: input, shape index: {}]
  %s2 = inlined_call_operand.vmem [shape: f32[1,32], index: 2, kind: input, shape index: {}]
  %s3 = inlined_call_operand.vmem [shape: f32[1,32], index: 3, kind: input, shape index: {}]
  %s4 = inlined_call_operand.hbm [shape: f32[32,64], index: 4, kind: input, shape index: {}]
  %s5 = inlined_call_operand.vmem [shape: f32[1,64], index: 5, kind: input, shape index: {}]
  %s6 = inlined_call_operand.vmem [shape: f32[256,128], index: 6, kind: input, shape index: {}]
  %s7 = inlined_call_operand.hbm [shape: f32[64,128], index: 7, kind: input, shape index: {}]
  %s8 = inlined_call_operand.vmem [shape: f32[1,128], index: 8, kind: input, shape index: {}]
  %s9 = inlined_call_operand.vmem [shape: f32[1,128], index: 9, kind: input, shape index: {}]
  %s10 = inlined_call_operand.vmem [shape: f32[1,128], index: 10, kind: input, shape index: {}]
  %s11 = inlined_call_operand.hbm [shape: f32[128,128], index: 11, kind: input, shape index: {}]
  %s12 = inlined_call_operand.vmem [shape: f32[1,128], index: 12, kind: input, shape index: {}]
  %s13 = inlined_call_operand.vmem [shape: f32[1,128], index: 13, kind: input, shape index: {}]
  %s14 = inlined_call_operand.vmem [shape: f32[1,128], index: 14, kind: input, shape index: {}]
  %s15 = inlined_call_operand.hbm [shape: f32[128,256], index: 15, kind: input, shape index: {}]
  %s16 = inlined_call_operand.vmem [shape: f32[1,256], index: 16, kind: input, shape index: {}]
  %s17 = inlined_call_operand.hbm [shape: f32[256,256], index: 17, kind: output, shape index: {}]
  %s18 = sld [smem:[#allocation0]]
  $region121: #{tpu_custom_call.1} parent=0
    _
  %s20 = ssub.s32 1, %s18
  %s21 = scalar_select 0, %s20, %s18
  $region1: #{tpu_custom_call.1} parent=0
    #allocation2 [shape = 'u8[262144]{0}', space=vmem, size = 0x40000, scoped, tag = 'input window, operand 0']
    #allocation3 [shape = 's32[2]{0}', space=sflag, size = 0x8, scoped, tag = 'scoped memory for tpu_custom_call.1']
    #allocation4 [shape = 's32[2]{0}', space=sflag, size = 0x8, scoped, tag = 'scoped memory for tpu_custom_call.1']
    #allocation5 [shape = 'u8[16384]{0}', space=vmem, size = 0x4000, scoped, tag = 'input window, operand 4, single buffered']
    #allocation6 [shape = 's32[1]{0}', space=sflag, size = 0x4, scoped, tag = 'scoped memory for tpu_custom_call.1']
    #allocation7 [shape = 'u8[32768]{0}', space=vmem, size = 0x8000, scoped, tag = 'input window, operand 7, single buffered']
    #allocation8 [shape = 'u8[65536]{0}', space=vmem, size = 0x10000, scoped, tag = 'input window, operand 11, single buffered']
    #allocation9 [shape = 's32[1]{0}', space=sflag, size = 0x4, scoped, tag = 'scoped memory for tpu_custom_call.1']
    #allocation10 [shape = 'u8[131072]{0}', space=vmem, size = 0x20000, scoped, tag = 'input window, operand 15, single buffered']
    #allocation11 [shape = 'u8[262144]{0}', space=vmem, size = 0x40000, scoped, tag = 'output window, operand 0']
    %22 = vsyncpa [#allocation3], 0
    %s23 = scalar_lea.sflag [#allocation3], 1
    %24 = vsyncpa %s23, 0
    %25 = vsyncpa [#allocation6], 0
    %26 = vsyncpa [#allocation9], 0
    %27 = vsyncpa [#allocation4], 0
    %s28 = scalar_lea.sflag [#allocation4], 1
    %29 = vsyncpa %s28, 0
    loop: start=0, step=1, limit=4
    $region2: #{tpu_custom_call.1} parent=1 // loop_pre_header
      _
    $region3: #{tpu_custom_call.1} parent=1 // loop_header
      %s31 = sphi 0, %s35
      %p32 = scmp.ge.s32.totalorder %s31, 4
      %s41 = sphi 0, %s43
      %s44 = sphi 0, %s41
      %s45 = sphi 0, %s44
      %s61 = sphi 0, %s45
      %s67 = sphi 0, %s69
      %s70 = sphi 0, %s67
      %s71 = sphi 0, %s70
      %s87 = sphi 0, %s71
      %s91 = sphi 0, %s91
      %s93 = sphi 0, %s91
      %s94 = sphi 0, %s93
      %s108 = sphi 0, %s94
      %s112 = sphi 0, %s112
      %s114 = sphi 0, %s112
      %s115 = sphi 0, %s114
      %s129 = sphi 0, %s115
      %s133 = sphi 0, %s133
      %s135 = sphi 0, %s133
      %s136 = sphi 0, %s135
      %s150 = sphi 0, %s136
      %s154 = sphi 0, %s154
      %s156 = sphi 0, %s154
      %s157 = sphi 0, %s156
      %s171 = sphi 0, %s157
      %s175 = sphi 0, %s175
      %s177 = sphi 0, %s175
      %s178 = sphi 0, %s177
      %s192 = sphi 0, %s178
      %s196 = sphi 0, %s196
      %s198 = sphi 0, %s196
      %s199 = sphi 0, %s198
      %s213 = sphi 0, %s199
      %s217 = sphi 0, %s217
      %s219 = sphi 0, %s217
      %s220 = sphi 0, %s219
      %s234 = sphi 0, %s220
      %s238 = sphi 0, %s238
      %s240 = sphi 0, %s238
      %s241 = sphi 0, %s240
      %s255 = sphi 0, %s241
      %s259 = sphi 0, %s259
      %s261 = sphi 0, %s259
      %s262 = sphi 0, %s261
      %s276 = sphi 0, %s262
      %s280 = sphi 0, %s280
      %s282 = sphi 0, %s280
      %s283 = sphi 0, %s282
      %s297 = sphi 0, %s283
      %s301 = sphi 0, %s301
      %s303 = sphi 0, %s301
      %s304 = sphi 0, %s303
      %s318 = sphi 0, %s304
      %s322 = sphi 0, %s322
      %s324 = sphi 0, %s322
      %s325 = sphi 0, %s324
      %s339 = sphi 0, %s325
      %s343 = sphi 0, %s343
      %s345 = sphi 0, %s343
      %s346 = sphi 0, %s345
      %s360 = sphi 0, %s346
      %s364 = sphi 0, %s364
      %s366 = sphi 0, %s364
      %s367 = sphi 0, %s366
      %s381 = sphi 0, %s367
      %s385 = sphi 0, %s385
      %s387 = sphi 0, %s385
      %s388 = sphi 0, %s387
      %s402 = sphi 0, %s388
      %s408 = sphi 0, %s410
      %s411 = sphi 0, %s408
      %s412 = sphi 0, %s411
      %s428 = sphi 0, %s412
    $region4: #{tpu_custom_call.1} parent=1 // loop_header_branch
      %34 = sbr.rel (%p32) target = $region8
    $region5: #{tpu_custom_call.1} parent=1 // loop_body
      %s36 = ssub.s32 %s31, 1
      %s37 = ssub.s32 %s31, 2
      %s38 = sadd.s32 %s31, 1
      %s39 = ssub.s32 %s31, %s38
      %p40 = scmp.eq.s32.totalorder %s39, 0
      %s42 = sadd.s32 %s41, 1
      %s43 = scalar_select %p40, %s41, %s42
      %p46 = pneg %p40
      %p47 = scmp.eq.s32.totalorder %s31, 1
      %p48 = por %p46, %p47
      %p49 = scmp.ne.s32.totalorder %s41, %s44
      %p50 = scmp.eq.s32.totalorder %s31, 0
      %p51 = por %p49, %p50
      %p52 = scmp.ne.s32.totalorder %s41, %s44
      %p53 = scmp.eq.s32.totalorder %s36, 1
      %p54 = por %p52, %p53
      %p55 = scmp.ne.s32.totalorder %s44, %s45
      %p56 = scmp.eq.s32.totalorder %s36, 0
      %p57 = por %p55, %p56
      %p58 = scmp.ne.s32.totalorder %s44, %s45
      %p59 = scmp.eq.s32.totalorder %s37, 1
      %p60 = por %p58, %p59
      %p62 = scmp.ne.s32.totalorder %s45, %s61
      %p63 = scmp.eq.s32.totalorder %s37, 0
      %p64 = por %p62, %p63
      %s65 = ssub.s32 %s31, %s38
      %p66 = scmp.eq.s32.totalorder %s65, 0
      %s68 = sadd.s32 %s67, 1
      %s69 = scalar_select %p66, %s67, %s68
      %p72 = pneg %p66
      %p73 = scmp.eq.s32.totalorder %s31, 1
      %p74 = por %p72, %p73
      %p75 = scmp.ne.s32.totalorder %s67, %s70
      %p76 = scmp.eq.s32.totalorder %s31, 0
      %p77 = por %p75, %p76
      %p78 = scmp.ne.s32.totalorder %s67, %s70
      %p79 = scmp.eq.s32.totalorder %s36, 1
      %p80 = por %p78, %p79
      %p81 = scmp.ne.s32.totalorder %s70, %s71
      %p82 = scmp.eq.s32.totalorder %s36, 0
      %p83 = por %p81, %p82
      %p84 = scmp.ne.s32.totalorder %s70, %s71
      %p85 = scmp.eq.s32.totalorder %s37, 1
      %p86 = por %p84, %p85
      %p88 = scmp.ne.s32.totalorder %s71, %s87
      %p89 = scmp.eq.s32.totalorder %s37, 0
      %p90 = por %p88, %p89
      %s92 = sadd.s32 %s91, 1
      %p95 = scmp.eq.s32.totalorder %s31, 1
      %p96 = scmp.ne.s32.totalorder %s91, %s93
      %p97 = scmp.eq.s32.totalorder %s31, 0
      %p98 = por %p96, %p97
      %p99 = scmp.ne.s32.totalorder %s91, %s93
      %p100 = scmp.eq.s32.totalorder %s36, 1
      %p101 = por %p99, %p100
      %p102 = scmp.ne.s32.totalorder %s93, %s94
      %p103 = scmp.eq.s32.totalorder %s36, 0
      %p104 = por %p102, %p103
      %p105 = scmp.ne.s32.totalorder %s93, %s94
      %p106 = scmp.eq.s32.totalorder %s37, 1
      %p107 = por %p105, %p106
      %p109 = scmp.ne.s32.totalorder %s94, %s108
      %p110 = scmp.eq.s32.totalorder %s37, 0
      %p111 = por %p109, %p110
      %s113 = sadd.s32 %s112, 1
      %p116 = scmp.eq.s32.totalorder %s31, 1
      %p117 = scmp.ne.s32.totalorder %s112, %s114
      %p118 = scmp.eq.s32.totalorder %s31, 0
      %p119 = por %p117, %p118
      %p120 = scmp.ne.s32.totalorder %s112, %s114
      %p121 = scmp.eq.s32.totalorder %s36, 1
      %p122 = por %p120, %p121
      %p123 = scmp.ne.s32.totalorder %s114, %s115
      %p124 = scmp.eq.s32.totalorder %s36, 0
      %p125 = por %p123, %p124
      %p126 = scmp.ne.s32.totalorder %s114, %s115
      %p127 = scmp.eq.s32.totalorder %s37, 1
      %p128 = por %p126, %p127
      %p130 = scmp.ne.s32.totalorder %s115, %s129
      %p131 = scmp.eq.s32.totalorder %s37, 0
      %p132 = por %p130, %p131
      %s134 = sadd.s32 %s133, 1
      %p137 = scmp.eq.s32.totalorder %s31, 1
      %p138 = scmp.ne.s32.totalorder %s133, %s135
      %p139 = scmp.eq.s32.totalorder %s31, 0
      %p140 = por %p138, %p139
      %p141 = scmp.ne.s32.totalorder %s133, %s135
      %p142 = scmp.eq.s32.totalorder %s36, 1
      %p143 = por %p141, %p142
      %p144 = scmp.ne.s32.totalorder %s135, %s136
      %p145 = scmp.eq.s32.totalorder %s36, 0
      %p146 = por %p144, %p145
      %p147 = scmp.ne.s32.totalorder %s135, %s136
      %p148 = scmp.eq.s32.totalorder %s37, 1
      %p149 = por %p147, %p148
      %p151 = scmp.ne.s32.totalorder %s136, %s150
      %p152 = scmp.eq.s32.totalorder %s37, 0
      %p153 = por %p151, %p152
      %s155 = sadd.s32 %s154, 1
      %p158 = scmp.eq.s32.totalorder %s31, 1
      %p159 = scmp.ne.s32.totalorder %s154, %s156
      %p160 = scmp.eq.s32.totalorder %s31, 0
      %p161 = por %p159, %p160
      %p162 = scmp.ne.s32.totalorder %s154, %s156
      %p163 = scmp.eq.s32.totalorder %s36, 1
      %p164 = por %p162, %p163
      %p165 = scmp.ne.s32.totalorder %s156, %s157
      %p166 = scmp.eq.s32.totalorder %s36, 0
      %p167 = por %p165, %p166
      %p168 = scmp.ne.s32.totalorder %s156, %s157
      %p169 = scmp.eq.s32.totalorder %s37, 1
      %p170 = por %p168, %p169
      %p172 = scmp.ne.s32.totalorder %s157, %s171
      %p173 = scmp.eq.s32.totalorder %s37, 0
      %p174 = por %p172, %p173
      %s176 = sadd.s32 %s175, 1
      %p179 = scmp.eq.s32.totalorder %s31, 1
      %p180 = scmp.ne.s32.totalorder %s175, %s177
      %p181 = scmp.eq.s32.totalorder %s31, 0
      %p182 = por %p180, %p181
      %p183 = scmp.ne.s32.totalorder %s175, %s177
      %p184 = scmp.eq.s32.totalorder %s36, 1
      %p185 = por %p183, %p184
      %p186 = scmp.ne.s32.totalorder %s177, %s178
      %p187 = scmp.eq.s32.totalorder %s36, 0
      %p188 = por %p186, %p187
      %p189 = scmp.ne.s32.totalorder %s177, %s178
      %p190 = scmp.eq.s32.totalorder %s37, 1
      %p191 = por %p189, %p190
      %p193 = scmp.ne.s32.totalorder %s178, %s192
      %p194 = scmp.eq.s32.totalorder %s37, 0
      %p195 = por %p193, %p194
      %s197 = sadd.s32 %s196, 1
      %p200 = scmp.eq.s32.totalorder %s31, 1
      %p201 = scmp.ne.s32.totalorder %s196, %s198
      %p202 = scmp.eq.s32.totalorder %s31, 0
      %p203 = por %p201, %p202
      %p204 = scmp.ne.s32.totalorder %s196, %s198
      %p205 = scmp.eq.s32.totalorder %s36, 1
      %p206 = por %p204, %p205
      %p207 = scmp.ne.s32.totalorder %s198, %s199
      %p208 = scmp.eq.s32.totalorder %s36, 0
      %p209 = por %p207, %p208
      %p210 = scmp.ne.s32.totalorder %s198, %s199
      %p211 = scmp.eq.s32.totalorder %s37, 1
      %p212 = por %p210, %p211
      %p214 = scmp.ne.s32.totalorder %s199, %s213
      %p215 = scmp.eq.s32.totalorder %s37, 0
      %p216 = por %p214, %p215
      %s218 = sadd.s32 %s217, 1
      %p221 = scmp.eq.s32.totalorder %s31, 1
      %p222 = scmp.ne.s32.totalorder %s217, %s219
      %p223 = scmp.eq.s32.totalorder %s31, 0
      %p224 = por %p222, %p223
      %p225 = scmp.ne.s32.totalorder %s217, %s219
      %p226 = scmp.eq.s32.totalorder %s36, 1
      %p227 = por %p225, %p226
      %p228 = scmp.ne.s32.totalorder %s219, %s220
      %p229 = scmp.eq.s32.totalorder %s36, 0
      %p230 = por %p228, %p229
      %p231 = scmp.ne.s32.totalorder %s219, %s220
      %p232 = scmp.eq.s32.totalorder %s37, 1
      %p233 = por %p231, %p232
      %p235 = scmp.ne.s32.totalorder %s220, %s234
      %p236 = scmp.eq.s32.totalorder %s37, 0
      %p237 = por %p235, %p236
      %s239 = sadd.s32 %s238, 1
      %p242 = scmp.eq.s32.totalorder %s31, 1
      %p243 = scmp.ne.s32.totalorder %s238, %s240
      %p244 = scmp.eq.s32.totalorder %s31, 0
      %p245 = por %p243, %p244
      %p246 = scmp.ne.s32.totalorder %s238, %s240
      %p247 = scmp.eq.s32.totalorder %s36, 1
      %p248 = por %p246, %p247
      %p249 = scmp.ne.s32.totalorder %s240, %s241
      %p250 = scmp.eq.s32.totalorder %s36, 0
      %p251 = por %p249, %p250
      %p252 = scmp.ne.s32.totalorder %s240, %s241
      %p253 = scmp.eq.s32.totalorder %s37, 1
      %p254 = por %p252, %p253
      %p256 = scmp.ne.s32.totalorder %s241, %s255
      %p257 = scmp.eq.s32.totalorder %s37, 0
      %p258 = por %p256, %p257
      %s260 = sadd.s32 %s259, 1
      %p263 = scmp.eq.s32.totalorder %s31, 1
      %p264 = scmp.ne.s32.totalorder %s259, %s261
      %p265 = scmp.eq.s32.totalorder %s31, 0
      %p266 = por %p264, %p265
      %p267 = scmp.ne.s32.totalorder %s259, %s261
      %p268 = scmp.eq.s32.totalorder %s36, 1
      %p269 = por %p267, %p268
      %p270 = scmp.ne.s32.totalorder %s261, %s262
      %p271 = scmp.eq.s32.totalorder %s36, 0
      %p272 = por %p270, %p271
      %p273 = scmp.ne.s32.totalorder %s261, %s262
      %p274 = scmp.eq.s32.totalorder %s37, 1
      %p275 = por %p273, %p274
      %p277 = scmp.ne.s32.totalorder %s262, %s276
      %p278 = scmp.eq.s32.totalorder %s37, 0
      %p279 = por %p277, %p278
      %s281 = sadd.s32 %s280, 1
      %p284 = scmp.eq.s32.totalorder %s31, 1
      %p285 = scmp.ne.s32.totalorder %s280, %s282
      %p286 = scmp.eq.s32.totalorder %s31, 0
      %p287 = por %p285, %p286
      %p288 = scmp.ne.s32.totalorder %s280, %s282
      %p289 = scmp.eq.s32.totalorder %s36, 1
      %p290 = por %p288, %p289
      %p291 = scmp.ne.s32.totalorder %s282, %s283
      %p292 = scmp.eq.s32.totalorder %s36, 0
      %p293 = por %p291, %p292
      %p294 = scmp.ne.s32.totalorder %s282, %s283
      %p295 = scmp.eq.s32.totalorder %s37, 1
      %p296 = por %p294, %p295
      %p298 = scmp.ne.s32.totalorder %s283, %s297
      %p299 = scmp.eq.s32.totalorder %s37, 0
      %p300 = por %p298, %p299
      %s302 = sadd.s32 %s301, 1
      %p305 = scmp.eq.s32.totalorder %s31, 1
      %p306 = scmp.ne.s32.totalorder %s301, %s303
      %p307 = scmp.eq.s32.totalorder %s31, 0
      %p308 = por %p306, %p307
      %p309 = scmp.ne.s32.totalorder %s301, %s303
      %p310 = scmp.eq.s32.totalorder %s36, 1
      %p311 = por %p309, %p310
      %p312 = scmp.ne.s32.totalorder %s303, %s304
      %p313 = scmp.eq.s32.totalorder %s36, 0
      %p314 = por %p312, %p313
      %p315 = scmp.ne.s32.totalorder %s303, %s304
      %p316 = scmp.eq.s32.totalorder %s37, 1
      %p317 = por %p315, %p316
      %p319 = scmp.ne.s32.totalorder %s304, %s318
      %p320 = scmp.eq.s32.totalorder %s37, 0
      %p321 = por %p319, %p320
      %s323 = sadd.s32 %s322, 1
      %p326 = scmp.eq.s32.totalorder %s31, 1
      %p327 = scmp.ne.s32.totalorder %s322, %s324
      %p328 = scmp.eq.s32.totalorder %s31, 0
      %p329 = por %p327, %p328
      %p330 = scmp.ne.s32.totalorder %s322, %s324
      %p331 = scmp.eq.s32.totalorder %s36, 1
      %p332 = por %p330, %p331
      %p333 = scmp.ne.s32.totalorder %s324, %s325
      %p334 = scmp.eq.s32.totalorder %s36, 0
      %p335 = por %p333, %p334
      %p336 = scmp.ne.s32.totalorder %s324, %s325
      %p337 = scmp.eq.s32.totalorder %s37, 1
      %p338 = por %p336, %p337
      %p340 = scmp.ne.s32.totalorder %s325, %s339
      %p341 = scmp.eq.s32.totalorder %s37, 0
      %p342 = por %p340, %p341
      %s344 = sadd.s32 %s343, 1
      %p347 = scmp.eq.s32.totalorder %s31, 1
      %p348 = scmp.ne.s32.totalorder %s343, %s345
      %p349 = scmp.eq.s32.totalorder %s31, 0
      %p350 = por %p348, %p349
      %p351 = scmp.ne.s32.totalorder %s343, %s345
      %p352 = scmp.eq.s32.totalorder %s36, 1
      %p353 = por %p351, %p352
      %p354 = scmp.ne.s32.totalorder %s345, %s346
      %p355 = scmp.eq.s32.totalorder %s36, 0
      %p356 = por %p354, %p355
      %p357 = scmp.ne.s32.totalorder %s345, %s346
      %p358 = scmp.eq.s32.totalorder %s37, 1
      %p359 = por %p357, %p358
      %p361 = scmp.ne.s32.totalorder %s346, %s360
      %p362 = scmp.eq.s32.totalorder %s37, 0
      %p363 = por %p361, %p362
      %s365 = sadd.s32 %s364, 1
      %p368 = scmp.eq.s32.totalorder %s31, 1
      %p369 = scmp.ne.s32.totalorder %s364, %s366
      %p370 = scmp.eq.s32.totalorder %s31, 0
      %p371 = por %p369, %p370
      %p372 = scmp.ne.s32.totalorder %s364, %s366
      %p373 = scmp.eq.s32.totalorder %s36, 1
      %p374 = por %p372, %p373
      %p375 = scmp.ne.s32.totalorder %s366, %s367
      %p376 = scmp.eq.s32.totalorder %s36, 0
      %p377 = por %p375, %p376
      %p378 = scmp.ne.s32.totalorder %s366, %s367
      %p379 = scmp.eq.s32.totalorder %s37, 1
      %p380 = por %p378, %p379
      %p382 = scmp.ne.s32.totalorder %s367, %s381
      %p383 = scmp.eq.s32.totalorder %s37, 0
      %p384 = por %p382, %p383
      %s386 = sadd.s32 %s385, 1
      %p389 = scmp.eq.s32.totalorder %s31, 1
      %p390 = scmp.ne.s32.totalorder %s385, %s387
      %p391 = scmp.eq.s32.totalorder %s31, 0
      %p392 = por %p390, %p391
      %p393 = scmp.ne.s32.totalorder %s385, %s387
      %p394 = scmp.eq.s32.totalorder %s36, 1
      %p395 = por %p393, %p394
      %p396 = scmp.ne.s32.totalorder %s387, %s388
      %p397 = scmp.eq.s32.totalorder %s36, 0
      %p398 = por %p396, %p397
      %p399 = scmp.ne.s32.totalorder %s387, %s388
      %p400 = scmp.eq.s32.totalorder %s37, 1
      %p401 = por %p399, %p400
      %p403 = scmp.ne.s32.totalorder %s388, %s402
      %p404 = scmp.eq.s32.totalorder %s37, 0
      %p405 = por %p403, %p404
      %s406 = ssub.s32 %s31, %s38
      %p407 = scmp.eq.s32.totalorder %s406, 0
      %s409 = sadd.s32 %s408, 1
      %s410 = scalar_select %p407, %s408, %s409
      %p413 = pneg %p407
      %p414 = scmp.eq.s32.totalorder %s31, 1
      %p415 = por %p413, %p414
      %p416 = scmp.ne.s32.totalorder %s408, %s411
      %p417 = scmp.eq.s32.totalorder %s31, 0
      %p418 = por %p416, %p417
      %p419 = scmp.ne.s32.totalorder %s408, %s411
      %p420 = scmp.eq.s32.totalorder %s36, 1
      %p421 = por %p419, %p420
      %p422 = scmp.ne.s32.totalorder %s411, %s412
      %p423 = scmp.eq.s32.totalorder %s36, 0
      %p424 = por %p422, %p423
      %p425 = scmp.ne.s32.totalorder %s411, %s412
      %p426 = scmp.eq.s32.totalorder %s37, 1
      %p427 = por %p425, %p426
      %p429 = scmp.ne.s32.totalorder %s412, %s428
      %p430 = scmp.eq.s32.totalorder %s37, 0
      %p431 = por %p429, %p430
      %p432 = scmp.le.s32.totalorder 1, %s31
      %p433 = scmp.lt.s32.totalorder %s31, 3
      %p434 = pnand %p432, %p433
      %p435 = pneg %p434
      // Predicated region
      $region9: #{tpu_custom_call.1} parent=5 // pred_check
        _
      $region10: #{tpu_custom_call.1} parent=5 // pred_check_branch
        %437 = sbr.rel (%p434) target = $region12
      $region11: #{tpu_custom_call.1} parent=5 // pred_region
        %s438 = ssub.s32 %s31, 1
        // Predicated region
        $region13: #{tpu_custom_call.1} parent=11 // pred_check
          %p439 = pneg %p104
        $region14: #{tpu_custom_call.1} parent=11 // pred_check_branch
          %441 = sbr.rel (%p439) target = $region16
        $region15: #{tpu_custom_call.1} parent=11 // pred_region
          _
        $region16: #{tpu_custom_call.1} parent=11 // pred_fallthru
          _
        // Predicated region
        $region17: #{tpu_custom_call.1} parent=11 // pred_check
          %p442 = pneg %p125
        $region18: #{tpu_custom_call.1} parent=11 // pred_check_branch
          %444 = sbr.rel (%p442) target = $region20
        $region19: #{tpu_custom_call.1} parent=11 // pred_region
          _
        $region20: #{tpu_custom_call.1} parent=11 // pred_fallthru
          _
        // Predicated region
        $region21: #{tpu_custom_call.1} parent=11 // pred_check
          %p445 = pneg %p146
        $region22: #{tpu_custom_call.1} parent=11 // pred_check_branch
          %447 = sbr.rel (%p445) target = $region24
        $region23: #{tpu_custom_call.1} parent=11 // pred_region
          %s449 = ssub.s32 512, 512
          %450 = vsyncadd [#allocation6], %s449
          %s451 = sshll.u32 [#allocation5], 4
          %s452 = int_to_ptr.vmem [resolvable:$true] %s451
          %457 = dma.hbm_to_vmem [thread:$0]  %s4, 512, %s452, [#allocation6], 128, 128, 8
        $region24: #{tpu_custom_call.1} parent=11 // pred_fallthru
          _
        // Predicated region
        $region25: #{tpu_custom_call.1} parent=11 // pred_check
          %p458 = pneg %p167
        $region26: #{tpu_custom_call.1} parent=11 // pred_check_branch
          %460 = sbr.rel (%p458) target = $region28
        $region27: #{tpu_custom_call.1} parent=11 // pred_region
          _
        $region28: #{tpu_custom_call.1} parent=11 // pred_fallthru
          _
        // Predicated region
        $region29: #{tpu_custom_call.1} parent=11 // pred_check
          %p461 = pneg %p188
        $region30: #{tpu_custom_call.1} parent=11 // pred_check_branch
          %463 = sbr.rel (%p461) target = $region32
        $region31: #{tpu_custom_call.1} parent=11 // pred_region
          _
        $region32: #{tpu_custom_call.1} parent=11 // pred_fallthru
          _
        // Predicated region
        $region33: #{tpu_custom_call.1} parent=11 // pred_check
          %p464 = pneg %p209
        $region34: #{tpu_custom_call.1} parent=11 // pred_check_branch
          %466 = sbr.rel (%p464) target = $region36
        $region35: #{tpu_custom_call.1} parent=11 // pred_region
          %s468 = ssub.s32 1024, 1024
          %469 = vsyncadd [#allocation6], %s468
          %s470 = sshll.u32 [#allocation7], 4
          %s471 = int_to_ptr.vmem [resolvable:$true] %s470
          %476 = dma.hbm_to_vmem [thread:$0]  %s7, 1024, %s471, [#allocation6], 128, 128, 8
        $region36: #{tpu_custom_call.1} parent=11 // pred_fallthru
          _
        // Predicated region
        $region37: #{tpu_custom_call.1} parent=11 // pred_check
          %p477 = pneg %p230
        $region38: #{tpu_custom_call.1} parent=11 // pred_check_branch
          %479 = sbr.rel (%p477) target = $region40
        $region39: #{tpu_custom_call.1} parent=11 // pred_region
          _
        $region40: #{tpu_custom_call.1} parent=11 // pred_fallthru
          _
        // Predicated region
        $region41: #{tpu_custom_call.1} parent=11 // pred_check
          %p480 = pneg %p251
        $region42: #{tpu_custom_call.1} parent=11 // pred_check_branch
          %482 = sbr.rel (%p480) target = $region44
        $region43: #{tpu_custom_call.1} parent=11 // pred_region
          _
        $region44: #{tpu_custom_call.1} parent=11 // pred_fallthru
          _
        // Predicated region
        $region45: #{tpu_custom_call.1} parent=11 // pred_check
          %p483 = pneg %p272
        $region46: #{tpu_custom_call.1} parent=11 // pred_check_branch
          %485 = sbr.rel (%p483) target = $region48
        $region47: #{tpu_custom_call.1} parent=11 // pred_region
          _
        $region48: #{tpu_custom_call.1} parent=11 // pred_fallthru
          _
        // Predicated region
        $region49: #{tpu_custom_call.1} parent=11 // pred_check
          %p486 = pneg %p293
        $region50: #{tpu_custom_call.1} parent=11 // pred_check_branch
          %488 = sbr.rel (%p486) target = $region52
        $region51: #{tpu_custom_call.1} parent=11 // pred_region
          %s490 = ssub.s32 2048, 2048
          %491 = vsyncadd [#allocation9], %s490
          %s492 = sshll.u32 [#allocation8], 4
          %s493 = int_to_ptr.vmem [resolvable:$true] %s492
          %498 = dma.hbm_to_vmem [thread:$0]  %s11, 2048, %s493, [#allocation9], 128, 128, 8
        $region52: #{tpu_custom_call.1} parent=11 // pred_fallthru
          _
        // Predicated region
        $region53: #{tpu_custom_call.1} parent=11 // pred_check
          %p499 = pneg %p314
        $region54: #{tpu_custom_call.1} parent=11 // pred_check_branch
          %501 = sbr.rel (%p499) target = $region56
        $region55: #{tpu_custom_call.1} parent=11 // pred_region
          _
        $region56: #{tpu_custom_call.1} parent=11 // pred_fallthru
          _
        // Predicated region
        $region57: #{tpu_custom_call.1} parent=11 // pred_check
          %p502 = pneg %p335
        $region58: #{tpu_custom_call.1} parent=11 // pred_check_branch
          %504 = sbr.rel (%p502) target = $region60
        $region59: #{tpu_custom_call.1} parent=11 // pred_region
          _
        $region60: #{tpu_custom_call.1} parent=11 // pred_fallthru
          _
        // Predicated region
        $region61: #{tpu_custom_call.1} parent=11 // pred_check
          %p505 = pneg %p356
        $region62: #{tpu_custom_call.1} parent=11 // pred_check_branch
          %507 = sbr.rel (%p505) target = $region64
        $region63: #{tpu_custom_call.1} parent=11 // pred_region
          _
        $region64: #{tpu_custom_call.1} parent=11 // pred_fallthru
          _
        // Predicated region
        $region65: #{tpu_custom_call.1} parent=11 // pred_check
          %p508 = pneg %p377
        $region66: #{tpu_custom_call.1} parent=11 // pred_check_branch
          %510 = sbr.rel (%p508) target = $region68
        $region67: #{tpu_custom_call.1} parent=11 // pred_region
          %s512 = ssub.s32 4096, 4096
          %513 = vsyncadd [#allocation9], %s512
          %s514 = sshll.u32 [#allocation10], 4
          %s515 = int_to_ptr.vmem [resolvable:$true] %s514
          %520 = dma.hbm_to_vmem [thread:$0]  %s15, 4096, %s515, [#allocation9], 256, 256, 16
        $region68: #{tpu_custom_call.1} parent=11 // pred_fallthru
          _
        // Predicated region
        $region69: #{tpu_custom_call.1} parent=11 // pred_check
          %p521 = pneg %p398
        $region70: #{tpu_custom_call.1} parent=11 // pred_check_branch
          %523 = sbr.rel (%p521) target = $region72
        $region71: #{tpu_custom_call.1} parent=11 // pred_region
          _
        $region72: #{tpu_custom_call.1} parent=11 // pred_fallthru
          _
      $region12: #{tpu_custom_call.1} parent=5 // pred_fallthru
        _
      %p524 = scmp.lt.s32.totalorder %s31, 2
      // Predicated region
      $region73: #{tpu_custom_call.1} parent=5 // pred_check
        %p525 = pneg %p524
      $region74: #{tpu_custom_call.1} parent=5 // pred_check_branch
        %527 = sbr.rel (%p525) target = $region76
      $region75: #{tpu_custom_call.1} parent=5 // pred_region
        // Predicated region
        $region77: #{tpu_custom_call.1} parent=75 // pred_check
          %p528 = pneg %p51
        $region78: #{tpu_custom_call.1} parent=75 // pred_check_branch
          %530 = sbr.rel (%p528) target = $region80
        $region79: #{tpu_custom_call.1} parent=75 // pred_region
          %s531 = sand.u32 %s41, 1
          %s532 = scalar_lea.sflag [#allocation3], %s531
          %s533 = sand.u32 %s41, 1
          %s534 = smul.addr %s533, 256
          %s535 = scalar_lea.vmem [#allocation2], %s534
          %s536 = smul.u32 16, %s31
          %s538 = ssub.s32 4096, 4096
          %539 = vsyncadd %s532, %s538
          %s540 = smul.addr %s536, 2
          %s541 = smul.addr %s540, 128
          %s542 = scalar_lea.hbm %s0, %s541
          %s543 = sshll.u32 %s535, 4
          %s544 = int_to_ptr.vmem [resolvable:$true] %s543
          %549 = dma.hbm_to_vmem [thread:$0]  %s542, 4096, %s544, %s532, 256, 256, 16
        $region80: #{tpu_custom_call.1} parent=75 // pred_fallthru
          _
        // Predicated region
        $region81: #{tpu_custom_call.1} parent=75 // pred_check
          %p550 = pneg %p77
        $region82: #{tpu_custom_call.1} parent=75 // pred_check_branch
          %552 = sbr.rel (%p550) target = $region84
        $region83: #{tpu_custom_call.1} parent=75 // pred_region
          %s553 = smul.u32 16, %s31
          %p554 = scmp.lt.s32.totalorder %s553, 31
          %s555 = scalar_select %p554, %s553, 31
          %s556 = smul.addr %s555, 8
          %s557 = scalar_lea.vmem %s1, %s556
          %s558 = smul.u32 16, %s31
        $region84: #{tpu_custom_call.1} parent=75 // pred_fallthru
          _
      $region76: #{tpu_custom_call.1} parent=5 // pred_fallthru
        _
      %p559 = scmp.le.s32.totalorder 1, %s31
      %p560 = scmp.lt.s32.totalorder %s31, 3
      %p561 = pnand %p559, %p560
      %p562 = pneg %p561
      // Predicated region
      $region85: #{tpu_custom_call.1} parent=5 // pred_check
        _
      $region86: #{tpu_custom_call.1} parent=5 // pred_check_branch
        %564 = sbr.rel (%p561) target = $region88
      $region87: #{tpu_custom_call.1} parent=5 // pred_region
        %s565 = ssub.s32 %s31, 1
        %s566 = sand.u32 %s44, 1
        %s567 = scalar_lea.sflag [#allocation3], %s566
        %s568 = sand.u32 %s44, 1
        %s569 = smul.addr %s568, 256
        %s570 = scalar_lea.vmem [#allocation2], %s569
        // Predicated region
        $region89: #{tpu_custom_call.1} parent=87 // pred_check
          %p571 = pneg %p57
        $region90: #{tpu_custom_call.1} parent=87 // pred_check_branch
          %573 = sbr.rel (%p571) target = $region92
        $region91: #{tpu_custom_call.1} parent=87 // pred_region
          %574 = dma.done %s567, 4096
        $region92: #{tpu_custom_call.1} parent=87 // pred_fallthru
          _
        // Predicated region
        $region93: #{tpu_custom_call.1} parent=87 // pred_check
          %p575 = pneg %p146
        $region94: #{tpu_custom_call.1} parent=87 // pred_check_branch
          %577 = sbr.rel (%p575) target = $region96
        $region95: #{tpu_custom_call.1} parent=87 // pred_region
          %578 = dma.done [#allocation6], 512
        $region96: #{tpu_custom_call.1} parent=87 // pred_fallthru
          _
        // Predicated region
        $region97: #{tpu_custom_call.1} parent=87 // pred_check
          %p579 = pneg %p209
        $region98: #{tpu_custom_call.1} parent=87 // pred_check_branch
          %581 = sbr.rel (%p579) target = $region100
        $region99: #{tpu_custom_call.1} parent=87 // pred_region
          %582 = dma.done [#allocation6], 1024
        $region100: #{tpu_custom_call.1} parent=87 // pred_fallthru
          _
        // Predicated region
        $region101: #{tpu_custom_call.1} parent=87 // pred_check
          %p583 = pneg %p293
        $region102: #{tpu_custom_call.1} parent=87 // pred_check_branch
          %585 = sbr.rel (%p583) target = $region104
        $region103: #{tpu_custom_call.1} parent=87 // pred_region
          %586 = dma.done [#allocation9], 2048
        $region104: #{tpu_custom_call.1} parent=87 // pred_fallthru
          _
        // Predicated region
        $region105: #{tpu_custom_call.1} parent=87 // pred_check
          %p587 = pneg %p377
        $region106: #{tpu_custom_call.1} parent=87 // pred_check_branch
          %589 = sbr.rel (%p587) target = $region108
        $region107: #{tpu_custom_call.1} parent=87 // pred_region
          %590 = dma.done [#allocation9], 4096
        $region108: #{tpu_custom_call.1} parent=87 // pred_fallthru
          _
        %s591 = sand.u32 %s44, 1
        %s592 = scalar_lea.sflag [#allocation3], %s591
        %s593 = sand.u32 %s44, 1
        %s594 = smul.addr %s593, 256
        %s595 = scalar_lea.vmem [#allocation2], %s594
        %p596 = pneg %p57
        %p597 = pneg %p54
        %s598 = smul.u32 16, %s36
        %p599 = scmp.lt.s32.totalorder %s598, 31
        %s600 = scalar_select %p599, %s598, 31
        %s601 = smul.addr %s600, 8
        %s602 = scalar_lea.vmem %s1, %s601
        %p603 = pneg %p83
        %p604 = pneg %p80
        %p605 = pneg %p104
        %p606 = pneg %p101
        %p607 = pneg %p125
        %p608 = pneg %p122
        %p609 = pneg %p146
        %p610 = pneg %p143
        %p611 = pneg %p167
        %p612 = pneg %p164
        %p613 = pneg %p188
        %p614 = pneg %p185
        %p615 = pneg %p209
        %p616 = pneg %p206
        %p617 = pneg %p230
        %p618 = pneg %p227
        %p619 = pneg %p251
        %p620 = pneg %p248
        %p621 = pneg %p272
        %p622 = pneg %p269
        %p623 = pneg %p293
        %p624 = pneg %p290
        %p625 = pneg %p314
        %p626 = pneg %p311
        %p627 = pneg %p335
        %p628 = pneg %p332
        %p629 = pneg %p356
        %p630 = pneg %p353
        %p631 = pneg %p377
        %p632 = pneg %p374
        %p633 = pneg %p398
        %p634 = pneg %p395
        %p635 = pneg %p424
        %p636 = pneg %p421
        %s637 = sand.u32 %s411, 1
        %s638 = scalar_lea.sflag [#allocation4], %s637
        %s639 = sand.u32 %s411, 1
        %s640 = smul.addr %s639, 256
        %s641 = scalar_lea.vmem [#allocation11], %s640
        %s642 = smul.u32 16, %s36
        %s643 = smul.u32 16, %s36
        %p644 = scmp.lt.s32.totalorder %s643, 31
        %s645 = scalar_select %p644, %s643, 31
        %s646 = smul.addr %s645, 8
        %s647 = scalar_lea.vmem %s1, %s646
        %s648 = smul.u32 16, %s36
        %s649 = smul.u32 16, %s36
        %v650 = vld [vmem:[%s570] sm:$0xff]
        %v651 = vld [vmem:[%s570 + $0x8] sm:$0xff]
        %v652 = vld [vmem:[%s570 + $0x10] sm:$0xff]
        %v653 = vld [vmem:[%s570 + $0x18] sm:$0xff]
        %v654 = vld [vmem:[%s570 + $0x20] sm:$0xff]
        %v655 = vld [vmem:[%s570 + $0x28] sm:$0xff]
        %v656 = vld [vmem:[%s570 + $0x30] sm:$0xff]
        %v657 = vld [vmem:[%s570 + $0x38] sm:$0xff]
        %v658 = vld [vmem:[%s570 + $0x40] sm:$0xff]
        %v659 = vld [vmem:[%s570 + $0x48] sm:$0xff]
        %v660 = vld [vmem:[%s570 + $0x50] sm:$0xff]
        %v661 = vld [vmem:[%s570 + $0x58] sm:$0xff]
        %v662 = vld [vmem:[%s570 + $0x60] sm:$0xff]
        %v663 = vld [vmem:[%s570 + $0x68] sm:$0xff]
        %v664 = vld [vmem:[%s570 + $0x70] sm:$0xff]
        %v665 = vld [vmem:[%s570 + $0x78] sm:$0xff]
        %v666 = vld [vmem:[%s570 + $0x80] sm:$0xff]
        %v667 = vld [vmem:[%s570 + $0x88] sm:$0xff]
        %v668 = vld [vmem:[%s570 + $0x90] sm:$0xff]
        %v669 = vld [vmem:[%s570 + $0x98] sm:$0xff]
        %v670 = vld [vmem:[%s570 + $0xa0] sm:$0xff]
        %v671 = vld [vmem:[%s570 + $0xa8] sm:$0xff]
        %v672 = vld [vmem:[%s570 + $0xb0] sm:$0xff]
        %v673 = vld [vmem:[%s570 + $0xb8] sm:$0xff]
        %v674 = vld [vmem:[%s570 + $0xc0] sm:$0xff]
        %v675 = vld [vmem:[%s570 + $0xc8] sm:$0xff]
        %v676 = vld [vmem:[%s570 + $0xd0] sm:$0xff]
        %v677 = vld [vmem:[%s570 + $0xd8] sm:$0xff]
        %v678 = vld [vmem:[%s570 + $0xe0] sm:$0xff]
        %v679 = vld [vmem:[%s570 + $0xe8] sm:$0xff]
        %v680 = vld [vmem:[%s570 + $0xf0] sm:$0xff]
        %v681 = vld [vmem:[%s570 + $0xf8] sm:$0xff]
        %v682 = vld [vmem:[%s647] sm:$0xff]
        %v683 = vld [vmem:[%s647 + $0x8] sm:$0xff]
        %v684 = vld [vmem:[%s647 + $0x10] sm:$0xff]
        %v685 = vld [vmem:[%s647 + $0x18] sm:$0xff]
        %v686 = vld [vmem:[%s647 + $0x20] sm:$0xff]
        %v687 = vld [vmem:[%s647 + $0x28] sm:$0xff]
        %v688 = vld [vmem:[%s647 + $0x30] sm:$0xff]
        %v689 = vld [vmem:[%s647 + $0x38] sm:$0xff]
        %v690 = vld [vmem:[%s647 + $0x40] sm:$0xff]
        %v691 = vld [vmem:[%s647 + $0x48] sm:$0xff]
        %v692 = vld [vmem:[%s647 + $0x50] sm:$0xff]
        %v693 = vld [vmem:[%s647 + $0x58] sm:$0xff]
        %v694 = vld [vmem:[%s647 + $0x60] sm:$0xff]
        %v695 = vld [vmem:[%s647 + $0x68] sm:$0xff]
        %v696 = vld [vmem:[%s647 + $0x70] sm:$0xff]
        %v697 = vld [vmem:[%s647 + $0x78] sm:$0xff]
        %v698 = vld [vmem:[%s2] sm:$0x1]
        %700 = vset.pattern.permute.xlu0 0
        %701 = vperm.xlu0 %700, %v682
        %v702 = vpop.permute.xlu0 %701
        %705 = vset.pattern.permute.xlu0 0
        %706 = vperm.xlu0 %705, %v683
        %v707 = vpop.permute.xlu0 %706
        %710 = vset.pattern.permute.xlu0 0
        %711 = vperm.xlu0 %710, %v684
        %v712 = vpop.permute.xlu0 %711
        %715 = vset.pattern.permute.xlu0 0
        %716 = vperm.xlu0 %715, %v685
        %v717 = vpop.permute.xlu0 %716
        %720 = vset.pattern.permute.xlu0 0
        %721 = vperm.xlu0 %720, %v686
        %v722 = vpop.permute.xlu0 %721
        %725 = vset.pattern.permute.xlu0 0
        %726 = vperm.xlu0 %725, %v687
        %v727 = vpop.permute.xlu0 %726
        %730 = vset.pattern.permute.xlu0 0
        %731 = vperm.xlu0 %730, %v688
        %v732 = vpop.permute.xlu0 %731
        %735 = vset.pattern.permute.xlu0 0
        %736 = vperm.xlu0 %735, %v689
        %v737 = vpop.permute.xlu0 %736
        %740 = vset.pattern.permute.xlu0 0
        %741 = vperm.xlu0 %740, %v690
        %v742 = vpop.permute.xlu0 %741
        %745 = vset.pattern.permute.xlu0 0
        %746 = vperm.xlu0 %745, %v691
        %v747 = vpop.permute.xlu0 %746
        %750 = vset.pattern.permute.xlu0 0
        %751 = vperm.xlu0 %750, %v692
        %v752 = vpop.permute.xlu0 %751
        %755 = vset.pattern.permute.xlu0 0
        %756 = vperm.xlu0 %755, %v693
        %v757 = vpop.permute.xlu0 %756
        %760 = vset.pattern.permute.xlu0 0
        %761 = vperm.xlu0 %760, %v694
        %v762 = vpop.permute.xlu0 %761
        %765 = vset.pattern.permute.xlu0 0
        %766 = vperm.xlu0 %765, %v695
        %v767 = vpop.permute.xlu0 %766
        %770 = vset.pattern.permute.xlu0 0
        %771 = vperm.xlu0 %770, %v696
        %v772 = vpop.permute.xlu0 %771
        %775 = vset.pattern.permute.xlu0 0
        %776 = vperm.xlu0 %775, %v697
        %v777 = vpop.permute.xlu0 %776
        %v780 = vlaneseq
        %v781 = vshrl.u32 %v780, 7
        %v782 = vsub.s32 0, %v781
        %v783 = vrot.slane %v698, %v782
        %v785 = vmul.f32 %v702, %v783
        %v786 = vmul.f32 %v707, %v783
        %v787 = vmul.f32 %v712, %v783
        %v788 = vmul.f32 %v717, %v783
        %v789 = vmul.f32 %v722, %v783
        %v790 = vmul.f32 %v727, %v783
        %v791 = vmul.f32 %v732, %v783
        %v792 = vmul.f32 %v737, %v783
        %v793 = vmul.f32 %v742, %v783
        %v794 = vmul.f32 %v747, %v783
        %v795 = vmul.f32 %v752, %v783
        %v796 = vmul.f32 %v757, %v783
        %v797 = vmul.f32 %v762, %v783
        %v798 = vmul.f32 %v767, %v783
        %v799 = vmul.f32 %v772, %v783
        %v800 = vmul.f32 %v777, %v783
        %v801 = vld [vmem:[%s3] sm:$0x1]
        %v803 = vlaneseq
        %v804 = vshrl.u32 %v803, 7
        %v805 = vsub.s32 0, %v804
        %v806 = vrot.slane %v801, %v805
        %v808 = vadd.f32 %v785, %v806
        %v809 = vadd.f32 %v786, %v806
        %v810 = vadd.f32 %v787, %v806
        %v811 = vadd.f32 %v788, %v806
        %v812 = vadd.f32 %v789, %v806
        %v813 = vadd.f32 %v790, %v806
        %v814 = vadd.f32 %v791, %v806
        %v815 = vadd.f32 %v792, %v806
        %v816 = vadd.f32 %v793, %v806
        %v817 = vadd.f32 %v794, %v806
        %v818 = vadd.f32 %v795, %v806
        %v819 = vadd.f32 %v796, %v806
        %v820 = vadd.f32 %v797, %v806
        %v821 = vadd.f32 %v798, %v806
        %v822 = vadd.f32 %v799, %v806
        %v823 = vadd.f32 %v800, %v806
        %v824 = vxor.u32 %v808, 2147483648
        %v825 = vxor.u32 %v809, 2147483648
        %v826 = vxor.u32 %v810, 2147483648
        %v827 = vxor.u32 %v811, 2147483648
        %v828 = vxor.u32 %v812, 2147483648
        %v829 = vxor.u32 %v813, 2147483648
        %v830 = vxor.u32 %v814, 2147483648
        %v831 = vxor.u32 %v815, 2147483648
        %v832 = vxor.u32 %v816, 2147483648
        %v833 = vxor.u32 %v817, 2147483648
        %v834 = vxor.u32 %v818, 2147483648
        %v835 = vxor.u32 %v819, 2147483648
        %v836 = vxor.u32 %v820, 2147483648
        %v837 = vxor.u32 %v821, 2147483648
        %v838 = vxor.u32 %v822, 2147483648
        %v839 = vxor.u32 %v823, 2147483648
        %v840 = vmul.f32 %v824, 1.442695
        %v841 = vpow.pop %v840
        %v842 = vmul.f32 %v825, 1.442695
        %v843 = vpow.pop %v842
        %v844 = vmul.f32 %v826, 1.442695
        %v845 = vpow.pop %v844
        %v846 = vmul.f32 %v827, 1.442695
        %v847 = vpow.pop %v846
        %v848 = vmul.f32 %v828, 1.442695
        %v849 = vpow.pop %v848
        %v850 = vmul.f32 %v829, 1.442695
        %v851 = vpow.pop %v850
        %v852 = vmul.f32 %v830, 1.442695
        %v853 = vpow.pop %v852
        %v854 = vmul.f32 %v831, 1.442695
        %v855 = vpow.pop %v854
        %v856 = vmul.f32 %v832, 1.442695
        %v857 = vpow.pop %v856
        %v858 = vmul.f32 %v833, 1.442695
        %v859 = vpow.pop %v858
        %v860 = vmul.f32 %v834, 1.442695
        %v861 = vpow.pop %v860
        %v862 = vmul.f32 %v835, 1.442695
        %v863 = vpow.pop %v862
        %v864 = vmul.f32 %v836, 1.442695
        %v865 = vpow.pop %v864
        %v866 = vmul.f32 %v837, 1.442695
        %v867 = vpow.pop %v866
        %v868 = vmul.f32 %v838, 1.442695
        %v869 = vpow.pop %v868
        %v870 = vmul.f32 %v839, 1.442695
        %v871 = vpow.pop %v870
        %v872 = vadd.f32 %v841, 1.0
        %v873 = vadd.f32 %v843, 1.0
        %v874 = vadd.f32 %v845, 1.0
        %v875 = vadd.f32 %v847, 1.0
        %v876 = vadd.f32 %v849, 1.0
        %v877 = vadd.f32 %v851, 1.0
        %v878 = vadd.f32 %v853, 1.0
        %v879 = vadd.f32 %v855, 1.0
        %v880 = vadd.f32 %v857, 1.0
        %v881 = vadd.f32 %v859, 1.0
        %v882 = vadd.f32 %v861, 1.0
        %v883 = vadd.f32 %v863, 1.0
        %v884 = vadd.f32 %v865, 1.0
        %v885 = vadd.f32 %v867, 1.0
        %v886 = vadd.f32 %v869, 1.0
        %v887 = vadd.f32 %v871, 1.0
        %v888 = vrcp.pop %v872
        %v889 = vmul.f32 1.0, %v888
        %v890 = vrcp.pop %v873
        %v891 = vmul.f32 1.0, %v890
        %v892 = vrcp.pop %v874
        %v893 = vmul.f32 1.0, %v892
        %v894 = vrcp.pop %v875
        %v895 = vmul.f32 1.0, %v894
        %v896 = vrcp.pop %v876
        %v897 = vmul.f32 1.0, %v896
        %v898 = vrcp.pop %v877
        %v899 = vmul.f32 1.0, %v898
        %v900 = vrcp.pop %v878
        %v901 = vmul.f32 1.0, %v900
        %v902 = vrcp.pop %v879
        %v903 = vmul.f32 1.0, %v902
        %v904 = vrcp.pop %v880
        %v905 = vmul.f32 1.0, %v904
        %v906 = vrcp.pop %v881
        %v907 = vmul.f32 1.0, %v906
        %v908 = vrcp.pop %v882
        %v909 = vmul.f32 1.0, %v908
        %v910 = vrcp.pop %v883
        %v911 = vmul.f32 1.0, %v910
        %v912 = vrcp.pop %v884
        %v913 = vmul.f32 1.0, %v912
        %v914 = vrcp.pop %v885
        %v915 = vmul.f32 1.0, %v914
        %v916 = vrcp.pop %v886
        %v917 = vmul.f32 1.0, %v916
        %v918 = vrcp.pop %v887
        %v919 = vmul.f32 1.0, %v918
        %v920 = vmul.f32 %v808, %v889
        %v921 = vmul.f32 %v809, %v891
        %v922 = vmul.f32 %v810, %v893
        %v923 = vmul.f32 %v811, %v895
        %v924 = vmul.f32 %v812, %v897
        %v925 = vmul.f32 %v813, %v899
        %v926 = vmul.f32 %v814, %v901
        %v927 = vmul.f32 %v815, %v903
        %v928 = vmul.f32 %v816, %v905
        %v929 = vmul.f32 %v817, %v907
        %v930 = vmul.f32 %v818, %v909
        %v931 = vmul.f32 %v819, %v911
        %v932 = vmul.f32 %v820, %v913
        %v933 = vmul.f32 %v821, %v915
        %v934 = vmul.f32 %v822, %v917
        %v935 = vmul.f32 %v823, %v919
        %v936 = vld [vmem:[#allocation5] sm:$0xff]
        %v937 = vld [vmem:[#allocation5 + $0x8] sm:$0xff]
        %v938 = vld [vmem:[#allocation5 + $0x10] sm:$0xff]
        %v939 = vld [vmem:[#allocation5 + $0x18] sm:$0xff]
        %v940 = vld [vmem:[%s5] sm:$0x1]
        %v942 = vlaneseq
        %v943 = vshrl.u32 %v942, 7
        %v944 = vsub.s32 0, %v943
        %v945 = vrot.slane %v940, %v944
        %vm947 = vcmask 261120
        %v949 = vsel %vm947, %v920, 0
        %v952 = vsel %vm947, %v921, 0
        %v955 = vsel %vm947, %v922, 0
        %v958 = vsel %vm947, %v923, 0
        %v961 = vsel %vm947, %v924, 0
        %v964 = vsel %vm947, %v925, 0
        %v967 = vsel %vm947, %v926, 0
        %v970 = vsel %vm947, %v927, 0
        %v973 = vsel %vm947, %v928, 0
        %v976 = vsel %vm947, %v929, 0
        %v979 = vsel %vm947, %v930, 0
        %v982 = vsel %vm947, %v931, 0
        %v985 = vsel %vm947, %v932, 0
        %v988 = vsel %vm947, %v933, 0
        %v991 = vsel %vm947, %v934, 0
        %v994 = vsel %vm947, %v935, 0
        %996 = vmatprep.subr.mxu0 0.0
        %997 = vmatpush1.msra.mxu0 %v936
        %998 = vmatprep.subr.mxu0 0.0
        %999 = vmatpush1.msra.mxu0 %v937
        %1000 = vmatprep.subr.mxu0 0.0
        %1001 = vmatpush1.msra.mxu0 %v938
        %1002 = vmatprep.subr.mxu0 0.0
        %1003 = vmatpush1.msra.mxu0 %v939
        %1004 = vmatprep.subr.mxu0 0.0
        %1005 = vmatpush1.msra.mxu0 0.0
        %1006 = vmatprep.subr.mxu0 0.0
        %1007 = vmatpush1.msra.mxu0 0.0
        %1008 = vmatprep.subr.mxu0 0.0
        %1009 = vmatpush1.msra.mxu0 0.0
        %1010 = vmatprep.subr.mxu0 0.0
        %1011 = vmatpush1.msra.mxu0 0.0
        %1012 = vmatprep.subr.mxu0 0.0
        %1013 = vmatpush1.msra.mxu0 0.0
        %1014 = vmatprep.subr.mxu0 0.0
        %1015 = vmatpush1.msra.mxu0 0.0
        %1016 = vmatprep.subr.mxu0 0.0
        %1017 = vmatpush1.msra.mxu0 0.0
        %1018 = vmatprep.subr.mxu0 0.0
        %1019 = vmatpush1.msra.mxu0 0.0
        %1020 = vmatprep.subr.mxu0 0.0
        %1021 = vmatpush1.msra.mxu0 0.0
        %1022 = vmatprep.subr.mxu0 0.0
        %1023 = vmatpush1.msra.mxu0 0.0
        %1024 = vmatprep.subr.mxu0 0.0
        %1025 = vmatpush1.msra.mxu0 0.0
        %1026 = vmatprep.subr.mxu0 0.0
        %1027 = vmatpush1.msra.mxu0 0.0
        %1028 = vmatprep.subr.mxu0 0.0
        %1029 = vmatpush1.msra.mxu0 0.0
        %1030 = vmatprep.subr.mxu0 0.0
        %1031 = vmatpush1.msra.mxu0 0.0
        %1032 = vmatprep.subr.mxu0 0.0
        %1033 = vmatpush1.msra.mxu0 0.0
        %1034 = vmatprep.subr.mxu0 0.0
        %1035 = vmatpush1.msra.mxu0 0.0
        %1036 = vmatprep.subr.mxu0 0.0
        %1037 = vmatpush1.msra.mxu0 0.0
        %1038 = vmatprep.subr.mxu0 0.0
        %1039 = vmatpush1.msra.mxu0 0.0
        %1040 = vmatprep.subr.mxu0 0.0
        %1041 = vmatpush1.msra.mxu0 0.0
        %1042 = vmatprep.subr.mxu0 0.0
        %1043 = vmatpush1.msra.mxu0 0.0
        %1044 = vmatprep.subr.mxu0 0.0
        %1045 = vmatpush1.msra.mxu0 0.0
        %1046 = vmatprep.subr.mxu0 0.0
        %1047 = vmatpush1.msra.mxu0 0.0
        %1048 = vmatprep.subr.mxu0 0.0
        %1049 = vmatpush1.msra.mxu0 0.0
        %1050 = vmatprep.subr.mxu0 0.0
        %1051 = vmatpush1.msra.mxu0 0.0
        %1052 = vmatprep.subr.mxu0 0.0
        %1053 = vmatpush1.msra.mxu0 0.0
        %1054 = vmatprep.subr.mxu0 0.0
        %1055 = vmatpush1.msra.mxu0 0.0
        %1056 = vmatprep.subr.mxu0 0.0
        %1057 = vmatpush1.msra.mxu0 0.0
        %1058 = vmatprep.subr.mxu0 0.0
        %1059 = vmatpush1.msra.mxu0 0.0
        %1060 = vmatprep.mubr.f32.mxu0 0.0
        %1061 = vmatmul.mubr.f32.gmra.mrb[0].mxu0 %v949
        %v1062 = vpop.f32.mrb[0].mxu0
        %v1063 = vadd.f32 %v945, %v1062
        %v1064 = vpop.f32.mrb[0].mxu0
        %1065 = vmatprep.mubr.f32.mxu0 0.0
        %1066 = vmatmul.mubr.f32.gmra.mrb[0].mxu0 %v952
        %v1067 = vpop.f32.mrb[0].mxu0
        %v1068 = vadd.f32 %v945, %v1067
        %v1069 = vpop.f32.mrb[0].mxu0
        %1070 = vmatprep.mubr.f32.mxu0 0.0
        %1071 = vmatmul.mubr.f32.gmra.mrb[0].mxu0 %v955
        %v1072 = vpop.f32.mrb[0].mxu0
        %v1073 = vadd.f32 %v945, %v1072
        %v1074 = vpop.f32.mrb[0].mxu0
        %1075 = vmatprep.mubr.f32.mxu0 0.0
        %1076 = vmatmul.mubr.f32.gmra.mrb[0].mxu0 %v958
        %v1077 = vpop.f32.mrb[0].mxu0
        %v1078 = vadd.f32 %v945, %v1077
        %v1079 = vpop.f32.mrb[0].mxu0
        %1080 = vmatprep.mubr.f32.mxu0 0.0
        %1081 = vmatmul.mubr.f32.gmra.mrb[0].mxu0 %v961
        %v1082 = vpop.f32.mrb[0].mxu0
        %v1083 = vadd.f32 %v945, %v1082
        %v1084 = vpop.f32.mrb[0].mxu0
        %1085 = vmatprep.mubr.f32.mxu0 0.0
        %1086 = vmatmul.mubr.f32.gmra.mrb[0].mxu0 %v964
        %v1087 = vpop.f32.mrb[0].mxu0
        %v1088 = vadd.f32 %v945, %v1087
        %v1089 = vpop.f32.mrb[0].mxu0
        %1090 = vmatprep.mubr.f32.mxu0 0.0
        %1091 = vmatmul.mubr.f32.gmra.mrb[0].mxu0 %v967
        %v1092 = vpop.f32.mrb[0].mxu0
        %v1093 = vadd.f32 %v945, %v1092
        %v1094 = vpop.f32.mrb[0].mxu0
        %1095 = vmatprep.mubr.f32.mxu0 0.0
        %1096 = vmatmul.mubr.f32.gmra.mrb[0].mxu0 %v970
        %v1097 = vpop.f32.mrb[0].mxu0
        %v1098 = vadd.f32 %v945, %v1097
        %v1099 = vpop.f32.mrb[0].mxu0
        %1100 = vmatprep.mubr.f32.mxu0 0.0
        %1101 = vmatmul.mubr.f32.gmra.mrb[0].mxu0 %v973
        %v1102 = vpop.f32.mrb[0].mxu0
        %v1103 = vadd.f32 %v945, %v1102
        %v1104 = vpop.f32.mrb[0].mxu0
        %1105 = vmatprep.mubr.f32.mxu0 0.0
        %1106 = vmatmul.mubr.f32.gmra.mrb[0].mxu0 %v976
        %v1107 = vpop.f32.mrb[0].mxu0
        %v1108 = vadd.f32 %v945, %v1107
        %v1109 = vpop.f32.mrb[0].mxu0
        %1110 = vmatprep.mubr.f32.mxu0 0.0
        %1111 = vmatmul.mubr.f32.gmra.mrb[0].mxu0 %v979
        %v1112 = vpop.f32.mrb[0].mxu0
        %v1113 = vadd.f32 %v945, %v1112
        %v1114 = vpop.f32.mrb[0].mxu0
        %1115 = vmatprep.mubr.f32.mxu0 0.0
        %1116 = vmatmul.mubr.f32.gmra.mrb[0].mxu0 %v982
        %v1117 = vpop.f32.mrb[0].mxu0
        %v1118 = vadd.f32 %v945, %v1117
        %v1119 = vpop.f32.mrb[0].mxu0
        %1120 = vmatprep.mubr.f32.mxu0 0.0
        %1121 = vmatmul.mubr.f32.gmra.mrb[0].mxu0 %v985
        %v1122 = vpop.f32.mrb[0].mxu0
        %v1123 = vadd.f32 %v945, %v1122
        %v1124 = vpop.f32.mrb[0].mxu0
        %1125 = vmatprep.mubr.f32.mxu0 0.0
        %1126 = vmatmul.mubr.f32.gmra.mrb[0].mxu0 %v988
        %v1127 = vpop.f32.mrb[0].mxu0
        %v1128 = vadd.f32 %v945, %v1127
        %v1129 = vpop.f32.mrb[0].mxu0
        %1130 = vmatprep.mubr.f32.mxu0 0.0
        %1131 = vmatmul.mubr.f32.gmra.mrb[0].mxu0 %v991
        %v1132 = vpop.f32.mrb[0].mxu0
        %v1133 = vadd.f32 %v945, %v1132
        %v1134 = vpop.f32.mrb[0].mxu0
        %1135 = vmatprep.mubr.f32.mxu0 0.0
        %1136 = vmatmul.mubr.f32.gmra.mrb[0].mxu0 %v994
        %v1137 = vpop.f32.mrb[0].mxu0
        %v1138 = vadd.f32 %v945, %v1137
        %v1139 = vpop.f32.mrb[0].mxu0
        %1140 = vdwg.mxu0
        %v1141 = vld [vmem:[%s6] sm:$0xff]
        %v1142 = vld [vmem:[%s6 + $0x8] sm:$0xff]
        %v1143 = vld [vmem:[%s6 + $0x10] sm:$0xff]
        %v1144 = vld [vmem:[%s6 + $0x18] sm:$0xff]
        %v1145 = vld [vmem:[%s6 + $0x20] sm:$0xff]
        %v1146 = vld [vmem:[%s6 + $0x28] sm:$0xff]
        %v1147 = vld [vmem:[%s6 + $0x30] sm:$0xff]
        %v1148 = vld [vmem:[%s6 + $0x38] sm:$0xff]
        %v1149 = vld [vmem:[%s6 + $0x40] sm:$0xff]
        %v1150 = vld [vmem:[%s6 + $0x48] sm:$0xff]
        %v1151 = vld [vmem:[%s6 + $0x50] sm:$0xff]
        %v1152 = vld [vmem:[%s6 + $0x58] sm:$0xff]
        %v1153 = vld [vmem:[%s6 + $0x60] sm:$0xff]
        %v1154 = vld [vmem:[%s6 + $0x68] sm:$0xff]
        %v1155 = vld [vmem:[%s6 + $0x70] sm:$0xff]
        %v1156 = vld [vmem:[%s6 + $0x78] sm:$0xff]
        %v1157 = vld [vmem:[%s6 + $0x80] sm:$0xff]
        %v1158 = vld [vmem:[%s6 + $0x88] sm:$0xff]
        %v1159 = vld [vmem:[%s6 + $0x90] sm:$0xff]
        %v1160 = vld [vmem:[%s6 + $0x98] sm:$0xff]
        %v1161 = vld [vmem:[%s6 + $0xa0] sm:$0xff]
        %v1162 = vld [vmem:[%s6 + $0xa8] sm:$0xff]
        %v1163 = vld [vmem:[%s6 + $0xb0] sm:$0xff]
        %v1164 = vld [vmem:[%s6 + $0xb8] sm:$0xff]
        %v1165 = vld [vmem:[%s6 + $0xc0] sm:$0xff]
        %v1166 = vld [vmem:[%s6 + $0xc8] sm:$0xff]
        %v1167 = vld [vmem:[%s6 + $0xd0] sm:$0xff]
        %v1168 = vld [vmem:[%s6 + $0xd8] sm:$0xff]
        %v1169 = vld [vmem:[%s6 + $0xe0] sm:$0xff]
        %v1170 = vld [vmem:[%s6 + $0xe8] sm:$0xff]
        %v1171 = vld [vmem:[%s6 + $0xf0] sm:$0xff]
        %v1172 = vld [vmem:[%s6 + $0xf8] sm:$0xff]
        %v1173 = vld [vmem:[#allocation7] sm:$0xff]
        %v1174 = vld [vmem:[#allocation7 + $0x8] sm:$0xff]
        %v1175 = vld [vmem:[#allocation7 + $0x10] sm:$0xff]
        %v1176 = vld [vmem:[#allocation7 + $0x18] sm:$0xff]
        %v1177 = vld [vmem:[#allocation7 + $0x20] sm:$0xff]
        %v1178 = vld [vmem:[#allocation7 + $0x28] sm:$0xff]
        %v1179 = vld [vmem:[#allocation7 + $0x30] sm:$0xff]
        %v1180 = vld [vmem:[#allocation7 + $0x38] sm:$0xff]
        %vm1181 = vcmask 523264
        %v1183 = vsel %vm1181, %v1063, 0
        %v1186 = vsel %vm1181, %v1068, 0
        %v1189 = vsel %vm1181, %v1073, 0
        %v1192 = vsel %vm1181, %v1078, 0
        %v1195 = vsel %vm1181, %v1083, 0
        %v1198 = vsel %vm1181, %v1088, 0
        %v1201 = vsel %vm1181, %v1093, 0
        %v1204 = vsel %vm1181, %v1098, 0
        %v1207 = vsel %vm1181, %v1103, 0
        %v1210 = vsel %vm1181, %v1108, 0
        %v1213 = vsel %vm1181, %v1113, 0
        %v1216 = vsel %vm1181, %v1118, 0
        %v1219 = vsel %vm1181, %v1123, 0
        %v1222 = vsel %vm1181, %v1128, 0
        %v1225 = vsel %vm1181, %v1133, 0
        %v1228 = vsel %vm1181, %v1138, 0
        %1230 = vmatprep.subr.mxu0 0.0
        %1231 = vmatpush1.msra.mxu0 %v1173
        %1232 = vmatprep.subr.mxu0 0.0
        %1233 = vmatpush1.msra.mxu0 %v1174
        %1234 = vmatprep.subr.mxu0 0.0
        %1235 = vmatpush1.msra.mxu0 %v1175
        %1236 = vmatprep.subr.mxu0 0.0
        %1237 = vmatpush1.msra.mxu0 %v1176
        %1238 = vmatprep.subr.mxu0 0.0
        %1239 = vmatpush1.msra.mxu0 %v1177
        %1240 = vmatprep.subr.mxu0 0.0
        %1241 = vmatpush1.msra.mxu0 %v1178
        %1242 = vmatprep.subr.mxu0 0.0
        %1243 = vmatpush1.msra.mxu0 %v1179
        %1244 = vmatprep.subr.mxu0 0.0
        %1245 = vmatpush1.msra.mxu0 %v1180
        %1246 = vmatprep.subr.mxu0 0.0
        %1247 = vmatpush1.msra.mxu0 0.0
        %1248 = vmatprep.subr.mxu0 0.0
        %1249 = vmatpush1.msra.mxu0 0.0
        %1250 = vmatprep.subr.mxu0 0.0
        %1251 = vmatpush1.msra.mxu0 0.0
        %1252 = vmatprep.subr.mxu0 0.0
        %1253 = vmatpush1.msra.mxu0 0.0
        %1254 = vmatprep.subr.mxu0 0.0
        %1255 = vmatpush1.msra.mxu0 0.0
        %1256 = vmatprep.subr.mxu0 0.0
        %1257 = vmatpush1.msra.mxu0 0.0
        %1258 = vmatprep.subr.mxu0 0.0
        %1259 = vmatpush1.msra.mxu0 0.0
        %1260 = vmatprep.subr.mxu0 0.0
        %1261 = vmatpush1.msra.mxu0 0.0
        %1262 = vmatprep.subr.mxu0 0.0
        %1263 = vmatpush1.msra.mxu0 0.0
        %1264 = vmatprep.subr.mxu0 0.0
        %1265 = vmatpush1.msra.mxu0 0.0
        %1266 = vmatprep.subr.mxu0 0.0
        %1267 = vmatpush1.msra.mxu0 0.0
        %1268 = vmatprep.subr.mxu0 0.0
        %1269 = vmatpush1.msra.mxu0 0.0
        %1270 = vmatprep.subr.mxu0 0.0
        %1271 = vmatpush1.msra.mxu0 0.0
        %1272 = vmatprep.subr.mxu0 0.0
        %1273 = vmatpush1.msra.mxu0 0.0
        %1274 = vmatprep.subr.mxu0 0.0
        %1275 = vmatpush1.msra.mxu0 0.0
        %1276 = vmatprep.subr.mxu0 0.0
        %1277 = vmatpush1.msra.mxu0 0.0
        %1278 = vmatprep.subr.mxu0 0.0
        %1279 = vmatpush1.msra.mxu0 0.0
        %1280 = vmatprep.subr.mxu0 0.0
        %1281 = vmatpush1.msra.mxu0 0.0
        %1282 = vmatprep.subr.mxu0 0.0
        %1283 = vmatpush1.msra.mxu0 0.0
        %1284 = vmatprep.subr.mxu0 0.0
        %1285 = vmatpush1.msra.mxu0 0.0
        %1286 = vmatprep.subr.mxu0 0.0
        %1287 = vmatpush1.msra.mxu0 0.0
        %1288 = vmatprep.subr.mxu0 0.0
        %1289 = vmatpush1.msra.mxu0 0.0
        %1290 = vmatprep.subr.mxu0 0.0
        %1291 = vmatpush1.msra.mxu0 0.0
        %1292 = vmatprep.subr.mxu0 0.0
        %1293 = vmatpush1.msra.mxu0 0.0
        %1294 = vmatprep.mubr.f32.mxu0 0.0
        %1295 = vmatmul.mubr.f32.gmra.mrb[0].mxu0 %v1183
        %v1296 = vpop.f32.mrb[0].mxu0
        %v1297 = vadd.f32 0.0, %v1296
        %v1298 = vpop.f32.mrb[0].mxu0
        %1299 = vmatprep.mubr.f32.mxu0 0.0
        %1300 = vmatmul.mubr.f32.gmra.mrb[0].mxu0 %v1186
        %v1301 = vpop.f32.mrb[0].mxu0
        %v1302 = vadd.f32 0.0, %v1301
        %v1303 = vpop.f32.mrb[0].mxu0
        %1304 = vmatprep.mubr.f32.mxu0 0.0
        %1305 = vmatmul.mubr.f32.gmra.mrb[0].mxu0 %v1189
        %v1306 = vpop.f32.mrb[0].mxu0
        %v1307 = vadd.f32 0.0, %v1306
        %v1308 = vpop.f32.mrb[0].mxu0
        %1309 = vmatprep.mubr.f32.mxu0 0.0
        %1310 = vmatmul.mubr.f32.gmra.mrb[0].mxu0 %v1192
        %v1311 = vpop.f32.mrb[0].mxu0
        %v1312 = vadd.f32 0.0, %v1311
        %v1313 = vpop.f32.mrb[0].mxu0
        %1314 = vmatprep.mubr.f32.mxu0 0.0
        %1315 = vmatmul.mubr.f32.gmra.mrb[0].mxu0 %v1195
        %v1316 = vpop.f32.mrb[0].mxu0
        %v1317 = vadd.f32 0.0, %v1316
        %v1318 = vpop.f32.mrb[0].mxu0
        %1319 = vmatprep.mubr.f32.mxu0 0.0
        %1320 = vmatmul.mubr.f32.gmra.mrb[0].mxu0 %v1198
        %v1321 = vpop.f32.mrb[0].mxu0
        %v1322 = vadd.f32 0.0, %v1321
        %v1323 = vpop.f32.mrb[0].mxu0
        %1324 = vmatprep.mubr.f32.mxu0 0.0
        %1325 = vmatmul.mubr.f32.gmra.mrb[0].mxu0 %v1201
        %v1326 = vpop.f32.mrb[0].mxu0
        %v1327 = vadd.f32 0.0, %v1326
        %v1328 = vpop.f32.mrb[0].mxu0
        %1329 = vmatprep.mubr.f32.mxu0 0.0
        %1330 = vmatmul.mubr.f32.gmra.mrb[0].mxu0 %v1204
        %v1331 = vpop.f32.mrb[0].mxu0
        %v1332 = vadd.f32 0.0, %v1331
        %v1333 = vpop.f32.mrb[0].mxu0
        %1334 = vmatprep.mubr.f32.mxu0 0.0
        %1335 = vmatmul.mubr.f32.gmra.mrb[0].mxu0 %v1207
        %v1336 = vpop.f32.mrb[0].mxu0
        %v1337 = vadd.f32 0.0, %v1336
        %v1338 = vpop.f32.mrb[0].mxu0
        %1339 = vmatprep.mubr.f32.mxu0 0.0
        %1340 = vmatmul.mubr.f32.gmra.mrb[0].mxu0 %v1210
        %v1341 = vpop.f32.mrb[0].mxu0
        %v1342 = vadd.f32 0.0, %v1341
        %v1343 = vpop.f32.mrb[0].mxu0
        %1344 = vmatprep.mubr.f32.mxu0 0.0
        %1345 = vmatmul.mubr.f32.gmra.mrb[0].mxu0 %v1213
        %v1346 = vpop.f32.mrb[0].mxu0
        %v1347 = vadd.f32 0.0, %v1346
        %v1348 = vpop.f32.mrb[0].mxu0
        %1349 = vmatprep.mubr.f32.mxu0 0.0
        %1350 = vmatmul.mubr.f32.gmra.mrb[0].mxu0 %v1216
        %v1351 = vpop.f32.mrb[0].mxu0
        %v1352 = vadd.f32 0.0, %v1351
        %v1353 = vpop.f32.mrb[0].mxu0
        %1354 = vmatprep.mubr.f32.mxu0 0.0
        %1355 = vmatmul.mubr.f32.gmra.mrb[0].mxu0 %v1219
        %v1356 = vpop.f32.mrb[0].mxu0
        %v1357 = vadd.f32 0.0, %v1356
        %v1358 = vpop.f32.mrb[0].mxu0
        %1359 = vmatprep.mubr.f32.mxu0 0.0
        %1360 = vmatmul.mubr.f32.gmra.mrb[0].mxu0 %v1222
        %v1361 = vpop.f32.mrb[0].mxu0
        %v1362 = vadd.f32 0.0, %v1361
        %v1363 = vpop.f32.mrb[0].mxu0
        %1364 = vmatprep.mubr.f32.mxu0 0.0
        %1365 = vmatmul.mubr.f32.gmra.mrb[0].mxu0 %v1225
        %v1366 = vpop.f32.mrb[0].mxu0
        %v1367 = vadd.f32 0.0, %v1366
        %v1368 = vpop.f32.mrb[0].mxu0
        %1369 = vmatprep.mubr.f32.mxu0 0.0
        %1370 = vmatmul.mubr.f32.gmra.mrb[0].mxu0 %v1228
        %v1371 = vpop.f32.mrb[0].mxu0
        %v1372 = vadd.f32 0.0, %v1371
        %v1373 = vpop.f32.mrb[0].mxu0
        %1374 = vdwg.mxu0
        %1375 = vmatprep.subr.mxu0 0.0
        %1376 = vmatpush1.msra.mxu0 %v1141
        %1377 = vmatprep.subr.mxu0 0.0
        %1378 = vmatpush1.msra.mxu0 %v1142
        %1379 = vmatprep.subr.mxu0 0.0
        %1380 = vmatpush1.msra.mxu0 %v1143
        %1381 = vmatprep.subr.mxu0 0.0
        %1382 = vmatpush1.msra.mxu0 %v1144
        %1383 = vmatprep.subr.mxu0 0.0
        %1384 = vmatpush1.msra.mxu0 %v1145
        %1385 = vmatprep.subr.mxu0 0.0
        %1386 = vmatpush1.msra.mxu0 %v1146
        %1387 = vmatprep.subr.mxu0 0.0
        %1388 = vmatpush1.msra.mxu0 %v1147
        %1389 = vmatprep.subr.mxu0 0.0
        %1390 = vmatpush1.msra.mxu0 %v1148
        %1391 = vmatprep.subr.mxu0 0.0
        %1392 = vmatpush1.msra.mxu0 %v1149
        %1393 = vmatprep.subr.mxu0 0.0
        %1394 = vmatpush1.msra.mxu0 %v1150
        %1395 = vmatprep.subr.mxu0 0.0
        %1396 = vmatpush1.msra.mxu0 %v1151
        %1397 = vmatprep.subr.mxu0 0.0
        %1398 = vmatpush1.msra.mxu0 %v1152
        %1399 = vmatprep.subr.mxu0 0.0
        %1400 = vmatpush1.msra.mxu0 %v1153
        %1401 = vmatprep.subr.mxu0 0.0
        %1402 = vmatpush1.msra.mxu0 %v1154
        %1403 = vmatprep.subr.mxu0 0.0
        %1404 = vmatpush1.msra.mxu0 %v1155
        %1405 = vmatprep.subr.mxu0 0.0
        %1406 = vmatpush1.msra.mxu0 %v1156
        %1407 = vmatprep.subr.mxu0 0.0
        %1408 = vmatpush1.msra.mxu0 %v1157
        %1409 = vmatprep.subr.mxu0 0.0
        %1410 = vmatpush1.msra.mxu0 %v1158
        %1411 = vmatprep.subr.mxu0 0.0
        %1412 = vmatpush1.msra.mxu0 %v1159
        %1413 = vmatprep.subr.mxu0 0.0
        %1414 = vmatpush1.msra.mxu0 %v1160
        %1415 = vmatprep.subr.mxu0 0.0
        %1416 = vmatpush1.msra.mxu0 %v1161
        %1417 = vmatprep.subr.mxu0 0.0
        %1418 = vmatpush1.msra.mxu0 %v1162
        %1419 = vmatprep.subr.mxu0 0.0
        %1420 = vmatpush1.msra.mxu0 %v1163
        %1421 = vmatprep.subr.mxu0 0.0
        %1422 = vmatpush1.msra.mxu0 %v1164
        %1423 = vmatprep.subr.mxu0 0.0
        %1424 = vmatpush1.msra.mxu0 %v1165
        %1425 = vmatprep.subr.mxu0 0.0
        %1426 = vmatpush1.msra.mxu0 %v1166
        %1427 = vmatprep.subr.mxu0 0.0
        %1428 = vmatpush1.msra.mxu0 %v1167
        %1429 = vmatprep.subr.mxu0 0.0
        %1430 = vmatpush1.msra.mxu0 %v1168
        %1431 = vmatprep.subr.mxu0 0.0
        %1432 = vmatpush1.msra.mxu0 %v1169
        %1433 = vmatprep.subr.mxu0 0.0
        %1434 = vmatpush1.msra.mxu0 %v1170
        %1435 = vmatprep.subr.mxu0 0.0
        %1436 = vmatpush1.msra.mxu0 %v1171
        %1437 = vmatprep.subr.mxu0 0.0
        %1438 = vmatpush1.msra.mxu0 %v1172
        %1439 = vmatprep.mubr.f32.mxu0 %v651
        %1440 = vmatmul.mubr.f32.gmra.mrb[0].mxu0 %v650
        %v1441 = vpop.f32.mrb[0].mxu0
        %v1442 = vadd.f32 %v1297, %v1441
        %v1443 = vpop.f32.mrb[0].mxu0
        %1444 = vmatprep.mubr.f32.mxu0 %v653
        %1445 = vmatmul.mubr.f32.gmra.mrb[0].mxu0 %v652
        %v1446 = vpop.f32.mrb[0].mxu0
        %v1447 = vadd.f32 %v1302, %v1446
        %v1448 = vpop.f32.mrb[0].mxu0
        %1449 = vmatprep.mubr.f32.mxu0 %v655
        %1450 = vmatmul.mubr.f32.gmra.mrb[0].mxu0 %v654
        %v1451 = vpop.f32.mrb[0].mxu0
        %v1452 = vadd.f32 %v1307, %v1451
        %v1453 = vpop.f32.mrb[0].mxu0
        %1454 = vmatprep.mubr.f32.mxu0 %v657
        %1455 = vmatmul.mubr.f32.gmra.mrb[0].mxu0 %v656
        %v1456 = vpop.f32.mrb[0].mxu0
        %v1457 = vadd.f32 %v1312, %v1456
        %v1458 = vpop.f32.mrb[0].mxu0
        %1459 = vmatprep.mubr.f32.mxu0 %v659
        %1460 = vmatmul.mubr.f32.gmra.mrb[0].mxu0 %v658
        %v1461 = vpop.f32.mrb[0].mxu0
        %v1462 = vadd.f32 %v1317, %v1461
        %v1463 = vpop.f32.mrb[0].mxu0
        %1464 = vmatprep.mubr.f32.mxu0 %v661
        %1465 = vmatmul.mubr.f32.gmra.mrb[0].mxu0 %v660
        %v1466 = vpop.f32.mrb[0].mxu0
        %v1467 = vadd.f32 %v1322, %v1466
        %v1468 = vpop.f32.mrb[0].mxu0
        %1469 = vmatprep.mubr.f32.mxu0 %v663
        %1470 = vmatmul.mubr.f32.gmra.mrb[0].mxu0 %v662
        %v1471 = vpop.f32.mrb[0].mxu0
        %v1472 = vadd.f32 %v1327, %v1471
        %v1473 = vpop.f32.mrb[0].mxu0
        %1474 = vmatprep.mubr.f32.mxu0 %v665
        %1475 = vmatmul.mubr.f32.gmra.mrb[0].mxu0 %v664
        %v1476 = vpop.f32.mrb[0].mxu0
        %v1477 = vadd.f32 %v1332, %v1476
        %v1478 = vpop.f32.mrb[0].mxu0
        %1479 = vmatprep.mubr.f32.mxu0 %v667
        %1480 = vmatmul.mubr.f32.gmra.mrb[0].mxu0 %v666
        %v1481 = vpop.f32.mrb[0].mxu0
        %v1482 = vadd.f32 %v1337, %v1481
        %v1483 = vpop.f32.mrb[0].mxu0
        %1484 = vmatprep.mubr.f32.mxu0 %v669
        %1485 = vmatmul.mubr.f32.gmra.mrb[0].mxu0 %v668
        %v1486 = vpop.f32.mrb[0].mxu0
        %v1487 = vadd.f32 %v1342, %v1486
        %v1488 = vpop.f32.mrb[0].mxu0
        %1489 = vmatprep.mubr.f32.mxu0 %v671
        %1490 = vmatmul.mubr.f32.gmra.mrb[0].mxu0 %v670
        %v1491 = vpop.f32.mrb[0].mxu0
        %v1492 = vadd.f32 %v1347, %v1491
        %v1493 = vpop.f32.mrb[0].mxu0
        %1494 = vmatprep.mubr.f32.mxu0 %v673
        %1495 = vmatmul.mubr.f32.gmra.mrb[0].mxu0 %v672
        %v1496 = vpop.f32.mrb[0].mxu0
        %v1497 = vadd.f32 %v1352, %v1496
        %v1498 = vpop.f32.mrb[0].mxu0
        %1499 = vmatprep.mubr.f32.mxu0 %v675
        %1500 = vmatmul.mubr.f32.gmra.mrb[0].mxu0 %v674
        %v1501 = vpop.f32.mrb[0].mxu0
        %v1502 = vadd.f32 %v1357, %v1501
        %v1503 = vpop.f32.mrb[0].mxu0
        %1504 = vmatprep.mubr.f32.mxu0 %v677
        %1505 = vmatmul.mubr.f32.gmra.mrb[0].mxu0 %v676
        %v1506 = vpop.f32.mrb[0].mxu0
        %v1507 = vadd.f32 %v1362, %v1506
        %v1508 = vpop.f32.mrb[0].mxu0
        %1509 = vmatprep.mubr.f32.mxu0 %v679
        %1510 = vmatmul.mubr.f32.gmra.mrb[0].mxu0 %v678
        %v1511 = vpop.f32.mrb[0].mxu0
        %v1512 = vadd.f32 %v1367, %v1511
        %v1513 = vpop.f32.mrb[0].mxu0
        %1514 = vmatprep.mubr.f32.mxu0 %v681
        %1515 = vmatmul.mubr.f32.gmra.mrb[0].mxu0 %v680
        %v1516 = vpop.f32.mrb[0].mxu0
        %v1517 = vadd.f32 %v1372, %v1516
        %v1518 = vpop.f32.mrb[0].mxu0
        %1519 = vdwg.mxu0
        %v1520 = vld [vmem:[%s8] sm:$0x1]
        %v1522 = vlaneseq
        %v1523 = vshrl.u32 %v1522, 7
        %v1524 = vsub.s32 0, %v1523
        %v1525 = vrot.slane %v1520, %v1524
        %v1527 = vadd.f32 %v1442, %v1525
        %v1528 = vadd.f32 %v1447, %v1525
        %v1529 = vadd.f32 %v1452, %v1525
        %v1530 = vadd.f32 %v1457, %v1525
        %v1531 = vadd.f32 %v1462, %v1525
        %v1532 = vadd.f32 %v1467, %v1525
        %v1533 = vadd.f32 %v1472, %v1525
        %v1534 = vadd.f32 %v1477, %v1525
        %v1535 = vadd.f32 %v1482, %v1525
        %v1536 = vadd.f32 %v1487, %v1525
        %v1537 = vadd.f32 %v1492, %v1525
        %v1538 = vadd.f32 %v1497, %v1525
        %v1539 = vadd.f32 %v1502, %v1525
        %v1540 = vadd.f32 %v1507, %v1525
        %v1541 = vadd.f32 %v1512, %v1525
        %v1542 = vadd.f32 %v1517, %v1525
        %v1543 = vld [vmem:[%s9] sm:$0x1]
        %v1544 = vld [vmem:[%s10] sm:$0x1]
        %1545 = vadd.xlane.f32.xlu0 %v1527
        %v1546 = vpop.xlane.xlu0 %1545
        %1547 = vadd.xlane.f32.xlu0 %v1528
        %v1548 = vpop.xlane.xlu0 %1547
        %1549 = vadd.xlane.f32.xlu0 %v1529
        %v1550 = vpop.xlane.xlu0 %1549
        %1551 = vadd.xlane.f32.xlu0 %v1530
        %v1552 = vpop.xlane.xlu0 %1551
        %1553 = vadd.xlane.f32.xlu0 %v1531
        %v1554 = vpop.xlane.xlu0 %1553
        %1555 = vadd.xlane.f32.xlu0 %v1532
        %v1556 = vpop.xlane.xlu0 %1555
        %1557 = vadd.xlane.f32.xlu0 %v1533
        %v1558 = vpop.xlane.xlu0 %1557
        %1559 = vadd.xlane.f32.xlu0 %v1534
        %v1560 = vpop.xlane.xlu0 %1559
        %1561 = vadd.xlane.f32.xlu0 %v1535
        %v1562 = vpop.xlane.xlu0 %1561
        %1563 = vadd.xlane.f32.xlu0 %v1536
        %v1564 = vpop.xlane.xlu0 %1563
        %1565 = vadd.xlane.f32.xlu0 %v1537
        %v1566 = vpop.xlane.xlu0 %1565
        %1567 = vadd.xlane.f32.xlu0 %v1538
        %v1568 = vpop.xlane.xlu0 %1567
        %1569 = vadd.xlane.f32.xlu0 %v1539
        %v1570 = vpop.xlane.xlu0 %1569
        %1571 = vadd.xlane.f32.xlu0 %v1540
        %v1572 = vpop.xlane.xlu0 %1571
        %1573 = vadd.xlane.f32.xlu0 %v1541
        %v1574 = vpop.xlane.xlu0 %1573
        %1575 = vadd.xlane.f32.xlu0 %v1542
        %v1576 = vpop.xlane.xlu0 %1575
        %v1577 = vrcp.pop 128.0
        %v1578 = vmul.f32 %v1546, %v1577
        %v1579 = vmul.f32 %v1548, %v1577
        %v1580 = vmul.f32 %v1550, %v1577
        %v1581 = vmul.f32 %v1552, %v1577
        %v1582 = vmul.f32 %v1554, %v1577
        %v1583 = vmul.f32 %v1556, %v1577
        %v1584 = vmul.f32 %v1558, %v1577
        %v1585 = vmul.f32 %v1560, %v1577
        %v1586 = vmul.f32 %v1562, %v1577
        %v1587 = vmul.f32 %v1564, %v1577
        %v1588 = vmul.f32 %v1566, %v1577
        %v1589 = vmul.f32 %v1568, %v1577
        %v1590 = vmul.f32 %v1570, %v1577
        %v1591 = vmul.f32 %v1572, %v1577
        %v1592 = vmul.f32 %v1574, %v1577
        %v1593 = vmul.f32 %v1576, %v1577
        %v1594 = vmul.f32 %v1527, %v1527
        %v1595 = vmul.f32 %v1528, %v1528
        %v1596 = vmul.f32 %v1529, %v1529
        %v1597 = vmul.f32 %v1530, %v1530
        %v1598 = vmul.f32 %v1531, %v1531
        %v1599 = vmul.f32 %v1532, %v1532
        %v1600 = vmul.f32 %v1533, %v1533
        %v1601 = vmul.f32 %v1534, %v1534
        %v1602 = vmul.f32 %v1535, %v1535
        %v1603 = vmul.f32 %v1536, %v1536
        %v1604 = vmul.f32 %v1537, %v1537
        %v1605 = vmul.f32 %v1538, %v1538
        %v1606 = vmul.f32 %v1539, %v1539
        %v1607 = vmul.f32 %v1540, %v1540
        %v1608 = vmul.f32 %v1541, %v1541
        %v1609 = vmul.f32 %v1542, %v1542
        %1610 = vadd.xlane.f32.xlu0 %v1594
        %v1611 = vpop.xlane.xlu0 %1610
        %1612 = vadd.xlane.f32.xlu0 %v1595
        %v1613 = vpop.xlane.xlu0 %1612
        %1614 = vadd.xlane.f32.xlu0 %v1596
        %v1615 = vpop.xlane.xlu0 %1614
        %1616 = vadd.xlane.f32.xlu0 %v1597
        %v1617 = vpop.xlane.xlu0 %1616
        %1618 = vadd.xlane.f32.xlu0 %v1598
        %v1619 = vpop.xlane.xlu0 %1618
        %1620 = vadd.xlane.f32.xlu0 %v1599
        %v1621 = vpop.xlane.xlu0 %1620
        %1622 = vadd.xlane.f32.xlu0 %v1600
        %v1623 = vpop.xlane.xlu0 %1622
        %1624 = vadd.xlane.f32.xlu0 %v1601
        %v1625 = vpop.xlane.xlu0 %1624
        %1626 = vadd.xlane.f32.xlu0 %v1602
        %v1627 = vpop.xlane.xlu0 %1626
        %1628 = vadd.xlane.f32.xlu0 %v1603
        %v1629 = vpop.xlane.xlu0 %1628
        %1630 = vadd.xlane.f32.xlu0 %v1604
        %v1631 = vpop.xlane.xlu0 %1630
        %1632 = vadd.xlane.f32.xlu0 %v1605
        %v1633 = vpop.xlane.xlu0 %1632
        %1634 = vadd.xlane.f32.xlu0 %v1606
        %v1635 = vpop.xlane.xlu0 %1634
        %1636 = vadd.xlane.f32.xlu0 %v1607
        %v1637 = vpop.xlane.xlu0 %1636
        %1638 = vadd.xlane.f32.xlu0 %v1608
        %v1639 = vpop.xlane.xlu0 %1638
        %1640 = vadd.xlane.f32.xlu0 %v1609
        %v1641 = vpop.xlane.xlu0 %1640
        %v1642 = vmul.f32 %v1611, %v1577
        %v1643 = vmul.f32 %v1613, %v1577
        %v1644 = vmul.f32 %v1615, %v1577
        %v1645 = vmul.f32 %v1617, %v1577
        %v1646 = vmul.f32 %v1619, %v1577
        %v1647 = vmul.f32 %v1621, %v1577
        %v1648 = vmul.f32 %v1623, %v1577
        %v1649 = vmul.f32 %v1625, %v1577
        %v1650 = vmul.f32 %v1627, %v1577
        %v1651 = vmul.f32 %v1629, %v1577
        %v1652 = vmul.f32 %v1631, %v1577
        %v1653 = vmul.f32 %v1633, %v1577
        %v1654 = vmul.f32 %v1635, %v1577
        %v1655 = vmul.f32 %v1637, %v1577
        %v1656 = vmul.f32 %v1639, %v1577
        %v1657 = vmul.f32 %v1641, %v1577
        %v1658 = vmul.f32 %v1578, %v1578
        %v1659 = vmul.f32 %v1579, %v1579
        %v1660 = vmul.f32 %v1580, %v1580
        %v1661 = vmul.f32 %v1581, %v1581
        %v1662 = vmul.f32 %v1582, %v1582
        %v1663 = vmul.f32 %v1583, %v1583
        %v1664 = vmul.f32 %v1584, %v1584
        %v1665 = vmul.f32 %v1585, %v1585
        %v1666 = vmul.f32 %v1586, %v1586
        %v1667 = vmul.f32 %v1587, %v1587
        %v1668 = vmul.f32 %v1588, %v1588
        %v1669 = vmul.f32 %v1589, %v1589
        %v1670 = vmul.f32 %v1590, %v1590
        %v1671 = vmul.f32 %v1591, %v1591
        %v1672 = vmul.f32 %v1592, %v1592
        %v1673 = vmul.f32 %v1593, %v1593
        %v1674 = vsub.f32 %v1642, %v1658
        %v1675 = vsub.f32 %v1643, %v1659
        %v1676 = vsub.f32 %v1644, %v1660
        %v1677 = vsub.f32 %v1645, %v1661
        %v1678 = vsub.f32 %v1646, %v1662
        %v1679 = vsub.f32 %v1647, %v1663
        %v1680 = vsub.f32 %v1648, %v1664
        %v1681 = vsub.f32 %v1649, %v1665
        %v1682 = vsub.f32 %v1650, %v1666
        %v1683 = vsub.f32 %v1651, %v1667
        %v1684 = vsub.f32 %v1652, %v1668
        %v1685 = vsub.f32 %v1653, %v1669
        %v1686 = vsub.f32 %v1654, %v1670
        %v1687 = vsub.f32 %v1655, %v1671
        %v1688 = vsub.f32 %v1656, %v1672
        %v1689 = vsub.f32 %v1657, %v1673
        %v1690 = vmax.f32 %v1674, 0.0
        %v1691 = vmax.f32 %v1675, 0.0
        %v1692 = vmax.f32 %v1676, 0.0
        %v1693 = vmax.f32 %v1677, 0.0
        %v1694 = vmax.f32 %v1678, 0.0
        %v1695 = vmax.f32 %v1679, 0.0
        %v1696 = vmax.f32 %v1680, 0.0
        %v1697 = vmax.f32 %v1681, 0.0
        %v1698 = vmax.f32 %v1682, 0.0
        %v1699 = vmax.f32 %v1683, 0.0
        %v1700 = vmax.f32 %v1684, 0.0
        %v1701 = vmax.f32 %v1685, 0.0
        %v1702 = vmax.f32 %v1686, 0.0
        %v1703 = vmax.f32 %v1687, 0.0
        %v1704 = vmax.f32 %v1688, 0.0
        %v1705 = vmax.f32 %v1689, 0.0
        %v1706 = vsub.f32 %v1527, %v1578
        %v1707 = vsub.f32 %v1528, %v1579
        %v1708 = vsub.f32 %v1529, %v1580
        %v1709 = vsub.f32 %v1530, %v1581
        %v1710 = vsub.f32 %v1531, %v1582
        %v1711 = vsub.f32 %v1532, %v1583
        %v1712 = vsub.f32 %v1533, %v1584
        %v1713 = vsub.f32 %v1534, %v1585
        %v1714 = vsub.f32 %v1535, %v1586
        %v1715 = vsub.f32 %v1536, %v1587
        %v1716 = vsub.f32 %v1537, %v1588
        %v1717 = vsub.f32 %v1538, %v1589
        %v1718 = vsub.f32 %v1539, %v1590
        %v1719 = vsub.f32 %v1540, %v1591
        %v1720 = vsub.f32 %v1541, %v1592
        %v1721 = vsub.f32 %v1542, %v1593
        %v1722 = vadd.f32 %v1690, 1e-05
        %v1723 = vadd.f32 %v1691, 1e-05
        %v1724 = vadd.f32 %v1692, 1e-05
        %v1725 = vadd.f32 %v1693, 1e-05
        %v1726 = vadd.f32 %v1694, 1e-05
        %v1727 = vadd.f32 %v1695, 1e-05
        %v1728 = vadd.f32 %v1696, 1e-05
        %v1729 = vadd.f32 %v1697, 1e-05
        %v1730 = vadd.f32 %v1698, 1e-05
        %v1731 = vadd.f32 %v1699, 1e-05
        %v1732 = vadd.f32 %v1700, 1e-05
        %v1733 = vadd.f32 %v1701, 1e-05
        %v1734 = vadd.f32 %v1702, 1e-05
        %v1735 = vadd.f32 %v1703, 1e-05
        %v1736 = vadd.f32 %v1704, 1e-05
        %v1737 = vadd.f32 %v1705, 1e-05
        %v1738 = vrsqrt.pop %v1722
        %v1739 = vrsqrt.pop %v1723
        %v1740 = vrsqrt.pop %v1724
        %v1741 = vrsqrt.pop %v1725
        %v1742 = vrsqrt.pop %v1726
        %v1743 = vrsqrt.pop %v1727
        %v1744 = vrsqrt.pop %v1728
        %v1745 = vrsqrt.pop %v1729
        %v1746 = vrsqrt.pop %v1730
        %v1747 = vrsqrt.pop %v1731
        %v1748 = vrsqrt.pop %v1732
        %v1749 = vrsqrt.pop %v1733
        %v1750 = vrsqrt.pop %v1734
        %v1751 = vrsqrt.pop %v1735
        %v1752 = vrsqrt.pop %v1736
        %v1753 = vrsqrt.pop %v1737
        %v1754 = vmul.f32 %v1706, %v1738
        %v1755 = vmul.f32 %v1707, %v1739
        %v1756 = vmul.f32 %v1708, %v1740
        %v1757 = vmul.f32 %v1709, %v1741
        %v1758 = vmul.f32 %v1710, %v1742
        %v1759 = vmul.f32 %v1711, %v1743
        %v1760 = vmul.f32 %v1712, %v1744
        %v1761 = vmul.f32 %v1713, %v1745
        %v1762 = vmul.f32 %v1714, %v1746
        %v1763 = vmul.f32 %v1715, %v1747
        %v1764 = vmul.f32 %v1716, %v1748
        %v1765 = vmul.f32 %v1717, %v1749
        %v1766 = vmul.f32 %v1718, %v1750
        %v1767 = vmul.f32 %v1719, %v1751
        %v1768 = vmul.f32 %v1720, %v1752
        %v1769 = vmul.f32 %v1721, %v1753
        %v1771 = vlaneseq
        %v1772 = vshrl.u32 %v1771, 7
        %v1773 = vsub.s32 0, %v1772
        %v1774 = vrot.slane %v1543, %v1773
        %v1776 = vmul.f32 %v1754, %v1774
        %v1777 = vmul.f32 %v1755, %v1774
        %v1778 = vmul.f32 %v1756, %v1774
        %v1779 = vmul.f32 %v1757, %v1774
        %v1780 = vmul.f32 %v1758, %v1774
        %v1781 = vmul.f32 %v1759, %v1774
        %v1782 = vmul.f32 %v1760, %v1774
        %v1783 = vmul.f32 %v1761, %v1774
        %v1784 = vmul.f32 %v1762, %v1774
        %v1785 = vmul.f32 %v1763, %v1774
        %v1786 = vmul.f32 %v1764, %v1774
        %v1787 = vmul.f32 %v1765, %v1774
        %v1788 = vmul.f32 %v1766, %v1774
        %v1789 = vmul.f32 %v1767, %v1774
        %v1790 = vmul.f32 %v1768, %v1774
        %v1791 = vmul.f32 %v1769, %v1774
        %v1793 = vlaneseq
        %v1794 = vshrl.u32 %v1793, 7
        %v1795 = vsub.s32 0, %v1794
        %v1796 = vrot.slane %v1544, %v1795
        %v1798 = vadd.f32 %v1776, %v1796
        %v1799 = vadd.f32 %v1777, %v1796
        %v1800 = vadd.f32 %v1778, %v1796
        %v1801 = vadd.f32 %v1779, %v1796
        %v1802 = vadd.f32 %v1780, %v1796
        %v1803 = vadd.f32 %v1781, %v1796
        %v1804 = vadd.f32 %v1782, %v1796
        %v1805 = vadd.f32 %v1783, %v1796
        %v1806 = vadd.f32 %v1784, %v1796
        %v1807 = vadd.f32 %v1785, %v1796
        %v1808 = vadd.f32 %v1786, %v1796
        %v1809 = vadd.f32 %v1787, %v1796
        %v1810 = vadd.f32 %v1788, %v1796
        %v1811 = vadd.f32 %v1789, %v1796
        %v1812 = vadd.f32 %v1790, %v1796
        %v1813 = vadd.f32 %v1791, %v1796
        %v1814 = vmul.f32 %v1798, 0.5
        %v1815 = vmul.f32 %v1799, 0.5
        %v1816 = vmul.f32 %v1800, 0.5
        %v1817 = vmul.f32 %v1801, 0.5
        %v1818 = vmul.f32 %v1802, 0.5
        %v1819 = vmul.f32 %v1803, 0.5
        %v1820 = vmul.f32 %v1804, 0.5
        %v1821 = vmul.f32 %v1805, 0.5
        %v1822 = vmul.f32 %v1806, 0.5
        %v1823 = vmul.f32 %v1807, 0.5
        %v1824 = vmul.f32 %v1808, 0.5
        %v1825 = vmul.f32 %v1809, 0.5
        %v1826 = vmul.f32 %v1810, 0.5
        %v1827 = vmul.f32 %v1811, 0.5
        %v1828 = vmul.f32 %v1812, 0.5
        %v1829 = vmul.f32 %v1813, 0.5
        %v1830 = vmul.f32 %v1798, 0.70710677
        %v1831 = vmul.f32 %v1799, 0.70710677
        %v1832 = vmul.f32 %v1800, 0.70710677
        %v1833 = vmul.f32 %v1801, 0.70710677
        %v1834 = vmul.f32 %v1802, 0.70710677
        %v1835 = vmul.f32 %v1803, 0.70710677
        %v1836 = vmul.f32 %v1804, 0.70710677
        %v1837 = vmul.f32 %v1805, 0.70710677
        %v1838 = vmul.f32 %v1806, 0.70710677
        %v1839 = vmul.f32 %v1807, 0.70710677
        %v1840 = vmul.f32 %v1808, 0.70710677
        %v1841 = vmul.f32 %v1809, 0.70710677
        %v1842 = vmul.f32 %v1810, 0.70710677
        %v1843 = vmul.f32 %v1811, 0.70710677
        %v1844 = vmul.f32 %v1812, 0.70710677
        %v1845 = vmul.f32 %v1813, 0.70710677
        %v1846 = verf.f32.pop %v1830
        %v1847 = verf.f32.pop %v1831
        %v1848 = verf.f32.pop %v1832
        %v1849 = verf.f32.pop %v1833
        %v1850 = verf.f32.pop %v1834
        %v1851 = verf.f32.pop %v1835
        %v1852 = verf.f32.pop %v1836
        %v1853 = verf.f32.pop %v1837
        %v1854 = verf.f32.pop %v1838
        %v1855 = verf.f32.pop %v1839
        %v1856 = verf.f32.pop %v1840
        %v1857 = verf.f32.pop %v1841
        %v1858 = verf.f32.pop %v1842
        %v1859 = verf.f32.pop %v1843
        %v1860 = verf.f32.pop %v1844
        %v1861 = verf.f32.pop %v1845
        %v1862 = vadd.f32 %v1846, 1.0
        %v1863 = vadd.f32 %v1847, 1.0
        %v1864 = vadd.f32 %v1848, 1.0
        %v1865 = vadd.f32 %v1849, 1.0
        %v1866 = vadd.f32 %v1850, 1.0
        %v1867 = vadd.f32 %v1851, 1.0
        %v1868 = vadd.f32 %v1852, 1.0
        %v1869 = vadd.f32 %v1853, 1.0
        %v1870 = vadd.f32 %v1854, 1.0
        %v1871 = vadd.f32 %v1855, 1.0
        %v1872 = vadd.f32 %v1856, 1.0
        %v1873 = vadd.f32 %v1857, 1.0
        %v1874 = vadd.f32 %v1858, 1.0
        %v1875 = vadd.f32 %v1859, 1.0
        %v1876 = vadd.f32 %v1860, 1.0
        %v1877 = vadd.f32 %v1861, 1.0
        %v1878 = vmul.f32 %v1814, %v1862
        %v1879 = vmul.f32 %v1815, %v1863
        %v1880 = vmul.f32 %v1816, %v1864
        %v1881 = vmul.f32 %v1817, %v1865
        %v1882 = vmul.f32 %v1818, %v1866
        %v1883 = vmul.f32 %v1819, %v1867
        %v1884 = vmul.f32 %v1820, %v1868
        %v1885 = vmul.f32 %v1821, %v1869
        %v1886 = vmul.f32 %v1822, %v1870
        %v1887 = vmul.f32 %v1823, %v1871
        %v1888 = vmul.f32 %v1824, %v1872
        %v1889 = vmul.f32 %v1825, %v1873
        %v1890 = vmul.f32 %v1826, %v1874
        %v1891 = vmul.f32 %v1827, %v1875
        %v1892 = vmul.f32 %v1828, %v1876
        %v1893 = vmul.f32 %v1829, %v1877
        %v1894 = vld [vmem:[#allocation8] sm:$0xff]
        %v1895 = vld [vmem:[#allocation8 + $0x8] sm:$0xff]
        %v1896 = vld [vmem:[#allocation8 + $0x10] sm:$0xff]
        %v1897 = vld [vmem:[#allocation8 + $0x18] sm:$0xff]
        %v1898 = vld [vmem:[#allocation8 + $0x20] sm:$0xff]
        %v1899 = vld [vmem:[#allocation8 + $0x28] sm:$0xff]
        %v1900 = vld [vmem:[#allocation8 + $0x30] sm:$0xff]
        %v1901 = vld [vmem:[#allocation8 + $0x38] sm:$0xff]
        %v1902 = vld [vmem:[#allocation8 + $0x40] sm:$0xff]
        %v1903 = vld [vmem:[#allocation8 + $0x48] sm:$0xff]
        %v1904 = vld [vmem:[#allocation8 + $0x50] sm:$0xff]
        %v1905 = vld [vmem:[#allocation8 + $0x58] sm:$0xff]
        %v1906 = vld [vmem:[#allocation8 + $0x60] sm:$0xff]
        %v1907 = vld [vmem:[#allocation8 + $0x68] sm:$0xff]
        %v1908 = vld [vmem:[#allocation8 + $0x70] sm:$0xff]
        %v1909 = vld [vmem:[#allocation8 + $0x78] sm:$0xff]
        %v1910 = vld [vmem:[%s12] sm:$0x1]
        %v1912 = vlaneseq
        %v1913 = vshrl.u32 %v1912, 7
        %v1914 = vsub.s32 0, %v1913
        %v1915 = vrot.slane %v1910, %v1914
        %1917 = vmatprep.subr.mxu0 0.0
        %1918 = vmatpush1.msra.mxu0 %v1894
        %1919 = vmatprep.subr.mxu0 0.0
        %1920 = vmatpush1.msra.mxu0 %v1895
        %1921 = vmatprep.subr.mxu0 0.0
        %1922 = vmatpush1.msra.mxu0 %v1896
        %1923 = vmatprep.subr.mxu0 0.0
        %1924 = vmatpush1.msra.mxu0 %v1897
        %1925 = vmatprep.subr.mxu0 0.0
        %1926 = vmatpush1.msra.mxu0 %v1898
        %1927 = vmatprep.subr.mxu0 0.0
        %1928 = vmatpush1.msra.mxu0 %v1899
        %1929 = vmatprep.subr.mxu0 0.0
        %1930 = vmatpush1.msra.mxu0 %v1900
        %1931 = vmatprep.subr.mxu0 0.0
        %1932 = vmatpush1.msra.mxu0 %v1901
        %1933 = vmatprep.subr.mxu0 0.0
        %1934 = vmatpush1.msra.mxu0 %v1902
        %1935 = vmatprep.subr.mxu0 0.0
        %1936 = vmatpush1.msra.mxu0 %v1903
        %1937 = vmatprep.subr.mxu0 0.0
        %1938 = vmatpush1.msra.mxu0 %v1904
        %1939 = vmatprep.subr.mxu0 0.0
        %1940 = vmatpush1.msra.mxu0 %v1905
        %1941 = vmatprep.subr.mxu0 0.0
        %1942 = vmatpush1.msra.mxu0 %v1906
        %1943 = vmatprep.subr.mxu0 0.0
        %1944 = vmatpush1.msra.mxu0 %v1907
        %1945 = vmatprep.subr.mxu0 0.0
        %1946 = vmatpush1.msra.mxu0 %v1908
        %1947 = vmatprep.subr.mxu0 0.0
        %1948 = vmatpush1.msra.mxu0 %v1909
        %1949 = vmatprep.subr.mxu0 0.0
        %1950 = vmatpush1.msra.mxu0 0.0
        %1951 = vmatprep.subr.mxu0 0.0
        %1952 = vmatpush1.msra.mxu0 0.0
        %1953 = vmatprep.subr.mxu0 0.0
        %1954 = vmatpush1.msra.mxu0 0.0
        %1955 = vmatprep.subr.mxu0 0.0
        %1956 = vmatpush1.msra.mxu0 0.0
        %1957 = vmatprep.subr.mxu0 0.0
        %1958 = vmatpush1.msra.mxu0 0.0
        %1959 = vmatprep.subr.mxu0 0.0
        %1960 = vmatpush1.msra.mxu0 0.0
        %1961 = vmatprep.subr.mxu0 0.0
        %1962 = vmatpush1.msra.mxu0 0.0
        %1963 = vmatprep.subr.mxu0 0.0
        %1964 = vmatpush1.msra.mxu0 0.0
        %1965 = vmatprep.subr.mxu0 0.0
        %1966 = vmatpush1.msra.mxu0 0.0
        %1967 = vmatprep.subr.mxu0 0.0
        %1968 = vmatpush1.msra.mxu0 0.0
        %1969 = vmatprep.subr.mxu0 0.0
        %1970 = vmatpush1.msra.mxu0 0.0
        %1971 = vmatprep.subr.mxu0 0.0
        %1972 = vmatpush1.msra.mxu0 0.0
        %1973 = vmatprep.subr.mxu0 0.0
        %1974 = vmatpush1.msra.mxu0 0.0
        %1975 = vmatprep.subr.mxu0 0.0
        %1976 = vmatpush1.msra.mxu0 0.0
        %1977 = vmatprep.subr.mxu0 0.0
        %1978 = vmatpush1.msra.mxu0 0.0
        %1979 = vmatprep.subr.mxu0 0.0
        %1980 = vmatpush1.msra.mxu0 0.0
        %1981 = vmatprep.mubr.f32.mxu0 0.0
        %1982 = vmatmul.mubr.f32.gmra.mrb[0].mxu0 %v1878
        %v1983 = vpop.f32.mrb[0].mxu0
        %v1984 = vadd.f32 %v1915, %v1983
        %v1985 = vpop.f32.mrb[0].mxu0
        %1986 = vmatprep.mubr.f32.mxu0 0.0
        %1987 = vmatmul.mubr.f32.gmra.mrb[0].mxu0 %v1879
        %v1988 = vpop.f32.mrb[0].mxu0
        %v1989 = vadd.f32 %v1915, %v1988
        %v1990 = vpop.f32.mrb[0].mxu0
        %1991 = vmatprep.mubr.f32.mxu0 0.0
        %1992 = vmatmul.mubr.f32.gmra.mrb[0].mxu0 %v1880
        %v1993 = vpop.f32.mrb[0].mxu0
        %v1994 = vadd.f32 %v1915, %v1993
        %v1995 = vpop.f32.mrb[0].mxu0
        %1996 = vmatprep.mubr.f32.mxu0 0.0
        %1997 = vmatmul.mubr.f32.gmra.mrb[0].mxu0 %v1881
        %v1998 = vpop.f32.mrb[0].mxu0
        %v1999 = vadd.f32 %v1915, %v1998
        %v2000 = vpop.f32.mrb[0].mxu0
        %2001 = vmatprep.mubr.f32.mxu0 0.0
        %2002 = vmatmul.mubr.f32.gmra.mrb[0].mxu0 %v1882
        %v2003 = vpop.f32.mrb[0].mxu0
        %v2004 = vadd.f32 %v1915, %v2003
        %v2005 = vpop.f32.mrb[0].mxu0
        %2006 = vmatprep.mubr.f32.mxu0 0.0
        %2007 = vmatmul.mubr.f32.gmra.mrb[0].mxu0 %v1883
        %v2008 = vpop.f32.mrb[0].mxu0
        %v2009 = vadd.f32 %v1915, %v2008
        %v2010 = vpop.f32.mrb[0].mxu0
        %2011 = vmatprep.mubr.f32.mxu0 0.0
        %2012 = vmatmul.mubr.f32.gmra.mrb[0].mxu0 %v1884
        %v2013 = vpop.f32.mrb[0].mxu0
        %v2014 = vadd.f32 %v1915, %v2013
        %v2015 = vpop.f32.mrb[0].mxu0
        %2016 = vmatprep.mubr.f32.mxu0 0.0
        %2017 = vmatmul.mubr.f32.gmra.mrb[0].mxu0 %v1885
        %v2018 = vpop.f32.mrb[0].mxu0
        %v2019 = vadd.f32 %v1915, %v2018
        %v2020 = vpop.f32.mrb[0].mxu0
        %2021 = vmatprep.mubr.f32.mxu0 0.0
        %2022 = vmatmul.mubr.f32.gmra.mrb[0].mxu0 %v1886
        %v2023 = vpop.f32.mrb[0].mxu0
        %v2024 = vadd.f32 %v1915, %v2023
        %v2025 = vpop.f32.mrb[0].mxu0
        %2026 = vmatprep.mubr.f32.mxu0 0.0
        %2027 = vmatmul.mubr.f32.gmra.mrb[0].mxu0 %v1887
        %v2028 = vpop.f32.mrb[0].mxu0
        %v2029 = vadd.f32 %v1915, %v2028
        %v2030 = vpop.f32.mrb[0].mxu0
        %2031 = vmatprep.mubr.f32.mxu0 0.0
        %2032 = vmatmul.mubr.f32.gmra.mrb[0].mxu0 %v1888
        %v2033 = vpop.f32.mrb[0].mxu0
        %v2034 = vadd.f32 %v1915, %v2033
        %v2035 = vpop.f32.mrb[0].mxu0
        %2036 = vmatprep.mubr.f32.mxu0 0.0
        %2037 = vmatmul.mubr.f32.gmra.mrb[0].mxu0 %v1889
        %v2038 = vpop.f32.mrb[0].mxu0
        %v2039 = vadd.f32 %v1915, %v2038
        %v2040 = vpop.f32.mrb[0].mxu0
        %2041 = vmatprep.mubr.f32.mxu0 0.0
        %2042 = vmatmul.mubr.f32.gmra.mrb[0].mxu0 %v1890
        %v2043 = vpop.f32.mrb[0].mxu0
        %v2044 = vadd.f32 %v1915, %v2043
        %v2045 = vpop.f32.mrb[0].mxu0
        %2046 = vmatprep.mubr.f32.mxu0 0.0
        %2047 = vmatmul.mubr.f32.gmra.mrb[0].mxu0 %v1891
        %v2048 = vpop.f32.mrb[0].mxu0
        %v2049 = vadd.f32 %v1915, %v2048
        %v2050 = vpop.f32.mrb[0].mxu0
        %2051 = vmatprep.mubr.f32.mxu0 0.0
        %2052 = vmatmul.mubr.f32.gmra.mrb[0].mxu0 %v1892
        %v2053 = vpop.f32.mrb[0].mxu0
        %v2054 = vadd.f32 %v1915, %v2053
        %v2055 = vpop.f32.mrb[0].mxu0
        %2056 = vmatprep.mubr.f32.mxu0 0.0
        %2057 = vmatmul.mubr.f32.gmra.mrb[0].mxu0 %v1893
        %v2058 = vpop.f32.mrb[0].mxu0
        %v2059 = vadd.f32 %v1915, %v2058
        %v2060 = vpop.f32.mrb[0].mxu0
        %2061 = vdwg.mxu0
        %v2062 = vld [vmem:[%s13] sm:$0x1]
        %v2063 = vld [vmem:[%s14] sm:$0x1]
        %2064 = vadd.xlane.f32.xlu0 %v1984
        %v2065 = vpop.xlane.xlu0 %2064
        %2066 = vadd.xlane.f32.xlu0 %v1989
        %v2067 = vpop.xlane.xlu0 %2066
        %2068 = vadd.xlane.f32.xlu0 %v1994
        %v2069 = vpop.xlane.xlu0 %2068
        %2070 = vadd.xlane.f32.xlu0 %v1999
        %v2071 = vpop.xlane.xlu0 %2070
        %2072 = vadd.xlane.f32.xlu0 %v2004
        %v2073 = vpop.xlane.xlu0 %2072
        %2074 = vadd.xlane.f32.xlu0 %v2009
        %v2075 = vpop.xlane.xlu0 %2074
        %2076 = vadd.xlane.f32.xlu0 %v2014
        %v2077 = vpop.xlane.xlu0 %2076
        %2078 = vadd.xlane.f32.xlu0 %v2019
        %v2079 = vpop.xlane.xlu0 %2078
        %2080 = vadd.xlane.f32.xlu0 %v2024
        %v2081 = vpop.xlane.xlu0 %2080
        %2082 = vadd.xlane.f32.xlu0 %v2029
        %v2083 = vpop.xlane.xlu0 %2082
        %2084 = vadd.xlane.f32.xlu0 %v2034
        %v2085 = vpop.xlane.xlu0 %2084
        %2086 = vadd.xlane.f32.xlu0 %v2039
        %v2087 = vpop.xlane.xlu0 %2086
        %2088 = vadd.xlane.f32.xlu0 %v2044
        %v2089 = vpop.xlane.xlu0 %2088
        %2090 = vadd.xlane.f32.xlu0 %v2049
        %v2091 = vpop.xlane.xlu0 %2090
        %2092 = vadd.xlane.f32.xlu0 %v2054
        %v2093 = vpop.xlane.xlu0 %2092
        %2094 = vadd.xlane.f32.xlu0 %v2059
        %v2095 = vpop.xlane.xlu0 %2094
        %v2096 = vmul.f32 %v2065, %v1577
        %v2097 = vmul.f32 %v2067, %v1577
        %v2098 = vmul.f32 %v2069, %v1577
        %v2099 = vmul.f32 %v2071, %v1577
        %v2100 = vmul.f32 %v2073, %v1577
        %v2101 = vmul.f32 %v2075, %v1577
        %v2102 = vmul.f32 %v2077, %v1577
        %v2103 = vmul.f32 %v2079, %v1577
        %v2104 = vmul.f32 %v2081, %v1577
        %v2105 = vmul.f32 %v2083, %v1577
        %v2106 = vmul.f32 %v2085, %v1577
        %v2107 = vmul.f32 %v2087, %v1577
        %v2108 = vmul.f32 %v2089, %v1577
        %v2109 = vmul.f32 %v2091, %v1577
        %v2110 = vmul.f32 %v2093, %v1577
        %v2111 = vmul.f32 %v2095, %v1577
        %v2112 = vmul.f32 %v1984, %v1984
        %v2113 = vmul.f32 %v1989, %v1989
        %v2114 = vmul.f32 %v1994, %v1994
        %v2115 = vmul.f32 %v1999, %v1999
        %v2116 = vmul.f32 %v2004, %v2004
        %v2117 = vmul.f32 %v2009, %v2009
        %v2118 = vmul.f32 %v2014, %v2014
        %v2119 = vmul.f32 %v2019, %v2019
        %v2120 = vmul.f32 %v2024, %v2024
        %v2121 = vmul.f32 %v2029, %v2029
        %v2122 = vmul.f32 %v2034, %v2034
        %v2123 = vmul.f32 %v2039, %v2039
        %v2124 = vmul.f32 %v2044, %v2044
        %v2125 = vmul.f32 %v2049, %v2049
        %v2126 = vmul.f32 %v2054, %v2054
        %v2127 = vmul.f32 %v2059, %v2059
        %2128 = vadd.xlane.f32.xlu0 %v2112
        %v2129 = vpop.xlane.xlu0 %2128
        %2130 = vadd.xlane.f32.xlu0 %v2113
        %v2131 = vpop.xlane.xlu0 %2130
        %2132 = vadd.xlane.f32.xlu0 %v2114
        %v2133 = vpop.xlane.xlu0 %2132
        %2134 = vadd.xlane.f32.xlu0 %v2115
        %v2135 = vpop.xlane.xlu0 %2134
        %2136 = vadd.xlane.f32.xlu0 %v2116
        %v2137 = vpop.xlane.xlu0 %2136
        %2138 = vadd.xlane.f32.xlu0 %v2117
        %v2139 = vpop.xlane.xlu0 %2138
        %2140 = vadd.xlane.f32.xlu0 %v2118
        %v2141 = vpop.xlane.xlu0 %2140
        %2142 = vadd.xlane.f32.xlu0 %v2119
        %v2143 = vpop.xlane.xlu0 %2142
        %2144 = vadd.xlane.f32.xlu0 %v2120
        %v2145 = vpop.xlane.xlu0 %2144
        %2146 = vadd.xlane.f32.xlu0 %v2121
        %v2147 = vpop.xlane.xlu0 %2146
        %2148 = vadd.xlane.f32.xlu0 %v2122
        %v2149 = vpop.xlane.xlu0 %2148
        %2150 = vadd.xlane.f32.xlu0 %v2123
        %v2151 = vpop.xlane.xlu0 %2150
        %2152 = vadd.xlane.f32.xlu0 %v2124
        %v2153 = vpop.xlane.xlu0 %2152
        %2154 = vadd.xlane.f32.xlu0 %v2125
        %v2155 = vpop.xlane.xlu0 %2154
        %2156 = vadd.xlane.f32.xlu0 %v2126
        %v2157 = vpop.xlane.xlu0 %2156
        %2158 = vadd.xlane.f32.xlu0 %v2127
        %v2159 = vpop.xlane.xlu0 %2158
        %v2160 = vmul.f32 %v2129, %v1577
        %v2161 = vmul.f32 %v2131, %v1577
        %v2162 = vmul.f32 %v2133, %v1577
        %v2163 = vmul.f32 %v2135, %v1577
        %v2164 = vmul.f32 %v2137, %v1577
        %v2165 = vmul.f32 %v2139, %v1577
        %v2166 = vmul.f32 %v2141, %v1577
        %v2167 = vmul.f32 %v2143, %v1577
        %v2168 = vmul.f32 %v2145, %v1577
        %v2169 = vmul.f32 %v2147, %v1577
        %v2170 = vmul.f32 %v2149, %v1577
        %v2171 = vmul.f32 %v2151, %v1577
        %v2172 = vmul.f32 %v2153, %v1577
        %v2173 = vmul.f32 %v2155, %v1577
        %v2174 = vmul.f32 %v2157, %v1577
        %v2175 = vmul.f32 %v2159, %v1577
        %v2176 = vmul.f32 %v2096, %v2096
        %v2177 = vmul.f32 %v2097, %v2097
        %v2178 = vmul.f32 %v2098, %v2098
        %v2179 = vmul.f32 %v2099, %v2099
        %v2180 = vmul.f32 %v2100, %v2100
        %v2181 = vmul.f32 %v2101, %v2101
        %v2182 = vmul.f32 %v2102, %v2102
        %v2183 = vmul.f32 %v2103, %v2103
        %v2184 = vmul.f32 %v2104, %v2104
        %v2185 = vmul.f32 %v2105, %v2105
        %v2186 = vmul.f32 %v2106, %v2106
        %v2187 = vmul.f32 %v2107, %v2107
        %v2188 = vmul.f32 %v2108, %v2108
        %v2189 = vmul.f32 %v2109, %v2109
        %v2190 = vmul.f32 %v2110, %v2110
        %v2191 = vmul.f32 %v2111, %v2111
        %v2192 = vsub.f32 %v2160, %v2176
        %v2193 = vsub.f32 %v2161, %v2177
        %v2194 = vsub.f32 %v2162, %v2178
        %v2195 = vsub.f32 %v2163, %v2179
        %v2196 = vsub.f32 %v2164, %v2180
        %v2197 = vsub.f32 %v2165, %v2181
        %v2198 = vsub.f32 %v2166, %v2182
        %v2199 = vsub.f32 %v2167, %v2183
        %v2200 = vsub.f32 %v2168, %v2184
        %v2201 = vsub.f32 %v2169, %v2185
        %v2202 = vsub.f32 %v2170, %v2186
        %v2203 = vsub.f32 %v2171, %v2187
        %v2204 = vsub.f32 %v2172, %v2188
        %v2205 = vsub.f32 %v2173, %v2189
        %v2206 = vsub.f32 %v2174, %v2190
        %v2207 = vsub.f32 %v2175, %v2191
        %v2208 = vmax.f32 %v2192, 0.0
        %v2209 = vmax.f32 %v2193, 0.0
        %v2210 = vmax.f32 %v2194, 0.0
        %v2211 = vmax.f32 %v2195, 0.0
        %v2212 = vmax.f32 %v2196, 0.0
        %v2213 = vmax.f32 %v2197, 0.0
        %v2214 = vmax.f32 %v2198, 0.0
        %v2215 = vmax.f32 %v2199, 0.0
        %v2216 = vmax.f32 %v2200, 0.0
        %v2217 = vmax.f32 %v2201, 0.0
        %v2218 = vmax.f32 %v2202, 0.0
        %v2219 = vmax.f32 %v2203, 0.0
        %v2220 = vmax.f32 %v2204, 0.0
        %v2221 = vmax.f32 %v2205, 0.0
        %v2222 = vmax.f32 %v2206, 0.0
        %v2223 = vmax.f32 %v2207, 0.0
        %v2224 = vsub.f32 %v1984, %v2096
        %v2225 = vsub.f32 %v1989, %v2097
        %v2226 = vsub.f32 %v1994, %v2098
        %v2227 = vsub.f32 %v1999, %v2099
        %v2228 = vsub.f32 %v2004, %v2100
        %v2229 = vsub.f32 %v2009, %v2101
        %v2230 = vsub.f32 %v2014, %v2102
        %v2231 = vsub.f32 %v2019, %v2103
        %v2232 = vsub.f32 %v2024, %v2104
        %v2233 = vsub.f32 %v2029, %v2105
        %v2234 = vsub.f32 %v2034, %v2106
        %v2235 = vsub.f32 %v2039, %v2107
        %v2236 = vsub.f32 %v2044, %v2108
        %v2237 = vsub.f32 %v2049, %v2109
        %v2238 = vsub.f32 %v2054, %v2110
        %v2239 = vsub.f32 %v2059, %v2111
        %v2240 = vadd.f32 %v2208, 1e-05
        %v2241 = vadd.f32 %v2209, 1e-05
        %v2242 = vadd.f32 %v2210, 1e-05
        %v2243 = vadd.f32 %v2211, 1e-05
        %v2244 = vadd.f32 %v2212, 1e-05
        %v2245 = vadd.f32 %v2213, 1e-05
        %v2246 = vadd.f32 %v2214, 1e-05
        %v2247 = vadd.f32 %v2215, 1e-05
        %v2248 = vadd.f32 %v2216, 1e-05
        %v2249 = vadd.f32 %v2217, 1e-05
        %v2250 = vadd.f32 %v2218, 1e-05
        %v2251 = vadd.f32 %v2219, 1e-05
        %v2252 = vadd.f32 %v2220, 1e-05
        %v2253 = vadd.f32 %v2221, 1e-05
        %v2254 = vadd.f32 %v2222, 1e-05
        %v2255 = vadd.f32 %v2223, 1e-05
        %v2256 = vrsqrt.pop %v2240
        %v2257 = vrsqrt.pop %v2241
        %v2258 = vrsqrt.pop %v2242
        %v2259 = vrsqrt.pop %v2243
        %v2260 = vrsqrt.pop %v2244
        %v2261 = vrsqrt.pop %v2245
        %v2262 = vrsqrt.pop %v2246
        %v2263 = vrsqrt.pop %v2247
        %v2264 = vrsqrt.pop %v2248
        %v2265 = vrsqrt.pop %v2249
        %v2266 = vrsqrt.pop %v2250
        %v2267 = vrsqrt.pop %v2251
        %v2268 = vrsqrt.pop %v2252
        %v2269 = vrsqrt.pop %v2253
        %v2270 = vrsqrt.pop %v2254
        %v2271 = vrsqrt.pop %v2255
        %v2272 = vmul.f32 %v2224, %v2256
        %v2273 = vmul.f32 %v2225, %v2257
        %v2274 = vmul.f32 %v2226, %v2258
        %v2275 = vmul.f32 %v2227, %v2259
        %v2276 = vmul.f32 %v2228, %v2260
        %v2277 = vmul.f32 %v2229, %v2261
        %v2278 = vmul.f32 %v2230, %v2262
        %v2279 = vmul.f32 %v2231, %v2263
        %v2280 = vmul.f32 %v2232, %v2264
        %v2281 = vmul.f32 %v2233, %v2265
        %v2282 = vmul.f32 %v2234, %v2266
        %v2283 = vmul.f32 %v2235, %v2267
        %v2284 = vmul.f32 %v2236, %v2268
        %v2285 = vmul.f32 %v2237, %v2269
        %v2286 = vmul.f32 %v2238, %v2270
        %v2287 = vmul.f32 %v2239, %v2271
        %v2289 = vlaneseq
        %v2290 = vshrl.u32 %v2289, 7
        %v2291 = vsub.s32 0, %v2290
        %v2292 = vrot.slane %v2062, %v2291
        %v2294 = vmul.f32 %v2272, %v2292
        %v2295 = vmul.f32 %v2273, %v2292
        %v2296 = vmul.f32 %v2274, %v2292
        %v2297 = vmul.f32 %v2275, %v2292
        %v2298 = vmul.f32 %v2276, %v2292
        %v2299 = vmul.f32 %v2277, %v2292
        %v2300 = vmul.f32 %v2278, %v2292
        %v2301 = vmul.f32 %v2279, %v2292
        %v2302 = vmul.f32 %v2280, %v2292
        %v2303 = vmul.f32 %v2281, %v2292
        %v2304 = vmul.f32 %v2282, %v2292
        %v2305 = vmul.f32 %v2283, %v2292
        %v2306 = vmul.f32 %v2284, %v2292
        %v2307 = vmul.f32 %v2285, %v2292
        %v2308 = vmul.f32 %v2286, %v2292
        %v2309 = vmul.f32 %v2287, %v2292
        %v2311 = vlaneseq
        %v2312 = vshrl.u32 %v2311, 7
        %v2313 = vsub.s32 0, %v2312
        %v2314 = vrot.slane %v2063, %v2313
        %v2316 = vadd.f32 %v2294, %v2314
        %v2317 = vadd.f32 %v2295, %v2314
        %v2318 = vadd.f32 %v2296, %v2314
        %v2319 = vadd.f32 %v2297, %v2314
        %v2320 = vadd.f32 %v2298, %v2314
        %v2321 = vadd.f32 %v2299, %v2314
        %v2322 = vadd.f32 %v2300, %v2314
        %v2323 = vadd.f32 %v2301, %v2314
        %v2324 = vadd.f32 %v2302, %v2314
        %v2325 = vadd.f32 %v2303, %v2314
        %v2326 = vadd.f32 %v2304, %v2314
        %v2327 = vadd.f32 %v2305, %v2314
        %v2328 = vadd.f32 %v2306, %v2314
        %v2329 = vadd.f32 %v2307, %v2314
        %v2330 = vadd.f32 %v2308, %v2314
        %v2331 = vadd.f32 %v2309, %v2314
        %v2332 = vmul.f32 %v2316, 0.5
        %v2333 = vmul.f32 %v2317, 0.5
        %v2334 = vmul.f32 %v2318, 0.5
        %v2335 = vmul.f32 %v2319, 0.5
        %v2336 = vmul.f32 %v2320, 0.5
        %v2337 = vmul.f32 %v2321, 0.5
        %v2338 = vmul.f32 %v2322, 0.5
        %v2339 = vmul.f32 %v2323, 0.5
        %v2340 = vmul.f32 %v2324, 0.5
        %v2341 = vmul.f32 %v2325, 0.5
        %v2342 = vmul.f32 %v2326, 0.5
        %v2343 = vmul.f32 %v2327, 0.5
        %v2344 = vmul.f32 %v2328, 0.5
        %v2345 = vmul.f32 %v2329, 0.5
        %v2346 = vmul.f32 %v2330, 0.5
        %v2347 = vmul.f32 %v2331, 0.5
        %v2348 = vmul.f32 %v2316, 0.70710677
        %v2349 = vmul.f32 %v2317, 0.70710677
        %v2350 = vmul.f32 %v2318, 0.70710677
        %v2351 = vmul.f32 %v2319, 0.70710677
        %v2352 = vmul.f32 %v2320, 0.70710677
        %v2353 = vmul.f32 %v2321, 0.70710677
        %v2354 = vmul.f32 %v2322, 0.70710677
        %v2355 = vmul.f32 %v2323, 0.70710677
        %v2356 = vmul.f32 %v2324, 0.70710677
        %v2357 = vmul.f32 %v2325, 0.70710677
        %v2358 = vmul.f32 %v2326, 0.70710677
        %v2359 = vmul.f32 %v2327, 0.70710677
        %v2360 = vmul.f32 %v2328, 0.70710677
        %v2361 = vmul.f32 %v2329, 0.70710677
        %v2362 = vmul.f32 %v2330, 0.70710677
        %v2363 = vmul.f32 %v2331, 0.70710677
        %v2364 = verf.f32.pop %v2348
        %v2365 = verf.f32.pop %v2349
        %v2366 = verf.f32.pop %v2350
        %v2367 = verf.f32.pop %v2351
        %v2368 = verf.f32.pop %v2352
        %v2369 = verf.f32.pop %v2353
        %v2370 = verf.f32.pop %v2354
        %v2371 = verf.f32.pop %v2355
        %v2372 = verf.f32.pop %v2356
        %v2373 = verf.f32.pop %v2357
        %v2374 = verf.f32.pop %v2358
        %v2375 = verf.f32.pop %v2359
        %v2376 = verf.f32.pop %v2360
        %v2377 = verf.f32.pop %v2361
        %v2378 = verf.f32.pop %v2362
        %v2379 = verf.f32.pop %v2363
        %v2380 = vadd.f32 %v2364, 1.0
        %v2381 = vadd.f32 %v2365, 1.0
        %v2382 = vadd.f32 %v2366, 1.0
        %v2383 = vadd.f32 %v2367, 1.0
        %v2384 = vadd.f32 %v2368, 1.0
        %v2385 = vadd.f32 %v2369, 1.0
        %v2386 = vadd.f32 %v2370, 1.0
        %v2387 = vadd.f32 %v2371, 1.0
        %v2388 = vadd.f32 %v2372, 1.0
        %v2389 = vadd.f32 %v2373, 1.0
        %v2390 = vadd.f32 %v2374, 1.0
        %v2391 = vadd.f32 %v2375, 1.0
        %v2392 = vadd.f32 %v2376, 1.0
        %v2393 = vadd.f32 %v2377, 1.0
        %v2394 = vadd.f32 %v2378, 1.0
        %v2395 = vadd.f32 %v2379, 1.0
        %v2396 = vmul.f32 %v2332, %v2380
        %v2397 = vmul.f32 %v2333, %v2381
        %v2398 = vmul.f32 %v2334, %v2382
        %v2399 = vmul.f32 %v2335, %v2383
        %v2400 = vmul.f32 %v2336, %v2384
        %v2401 = vmul.f32 %v2337, %v2385
        %v2402 = vmul.f32 %v2338, %v2386
        %v2403 = vmul.f32 %v2339, %v2387
        %v2404 = vmul.f32 %v2340, %v2388
        %v2405 = vmul.f32 %v2341, %v2389
        %v2406 = vmul.f32 %v2342, %v2390
        %v2407 = vmul.f32 %v2343, %v2391
        %v2408 = vmul.f32 %v2344, %v2392
        %v2409 = vmul.f32 %v2345, %v2393
        %v2410 = vmul.f32 %v2346, %v2394
        %v2411 = vmul.f32 %v2347, %v2395
        %v2412 = vld [vmem:[#allocation10] sm:$0xff]
        %v2413 = vld [vmem:[#allocation10 + $0x8] sm:$0xff]
        %v2414 = vld [vmem:[#allocation10 + $0x10] sm:$0xff]
        %v2415 = vld [vmem:[#allocation10 + $0x18] sm:$0xff]
        %v2416 = vld [vmem:[#allocation10 + $0x20] sm:$0xff]
        %v2417 = vld [vmem:[#allocation10 + $0x28] sm:$0xff]
        %v2418 = vld [vmem:[#allocation10 + $0x30] sm:$0xff]
        %v2419 = vld [vmem:[#allocation10 + $0x38] sm:$0xff]
        %v2420 = vld [vmem:[#allocation10 + $0x40] sm:$0xff]
        %v2421 = vld [vmem:[#allocation10 + $0x48] sm:$0xff]
        %v2422 = vld [vmem:[#allocation10 + $0x50] sm:$0xff]
        %v2423 = vld [vmem:[#allocation10 + $0x58] sm:$0xff]
        %v2424 = vld [vmem:[#allocation10 + $0x60] sm:$0xff]
        %v2425 = vld [vmem:[#allocation10 + $0x68] sm:$0xff]
        %v2426 = vld [vmem:[#allocation10 + $0x70] sm:$0xff]
        %v2427 = vld [vmem:[#allocation10 + $0x78] sm:$0xff]
        %v2428 = vld [vmem:[#allocation10 + $0x80] sm:$0xff]
        %v2429 = vld [vmem:[#allocation10 + $0x88] sm:$0xff]
        %v2430 = vld [vmem:[#allocation10 + $0x90] sm:$0xff]
        %v2431 = vld [vmem:[#allocation10 + $0x98] sm:$0xff]
        %v2432 = vld [vmem:[#allocation10 + $0xa0] sm:$0xff]
        %v2433 = vld [vmem:[#allocation10 + $0xa8] sm:$0xff]
        %v2434 = vld [vmem:[#allocation10 + $0xb0] sm:$0xff]
        %v2435 = vld [vmem:[#allocation10 + $0xb8] sm:$0xff]
        %v2436 = vld [vmem:[#allocation10 + $0xc0] sm:$0xff]
        %v2437 = vld [vmem:[#allocation10 + $0xc8] sm:$0xff]
        %v2438 = vld [vmem:[#allocation10 + $0xd0] sm:$0xff]
        %v2439 = vld [vmem:[#allocation10 + $0xd8] sm:$0xff]
        %v2440 = vld [vmem:[#allocation10 + $0xe0] sm:$0xff]
        %v2441 = vld [vmem:[#allocation10 + $0xe8] sm:$0xff]
        %v2442 = vld [vmem:[#allocation10 + $0xf0] sm:$0xff]
        %v2443 = vld [vmem:[#allocation10 + $0xf8] sm:$0xff]
        %v2444 = vld [vmem:[%s16] sm:$0x3]
        %v2446 = vlaneseq
        %v2447 = vshrl.u32 %v2446, 7
        %v2448 = vsub.s32 0, %v2447
        %v2449 = vrot.slane %v2444, %v2448
        %v2450 = vlaneseq
        %v2451 = vshrl.u32 %v2450, 7
        %v2452 = vsub.s32 1, %v2451
        %v2453 = vrot.slane %v2444, %v2452
        %2456 = vmatprep.subr.mxu0 %v2413
        %2457 = vmatpush1.msra.mxu0 %v2412
        %2458 = vmatprep.subr.mxu0 %v2415
        %2459 = vmatpush1.msra.mxu0 %v2414
        %2460 = vmatprep.subr.mxu0 %v2417
        %2461 = vmatpush1.msra.mxu0 %v2416
        %2462 = vmatprep.subr.mxu0 %v2419
        %2463 = vmatpush1.msra.mxu0 %v2418
        %2464 = vmatprep.subr.mxu0 %v2421
        %2465 = vmatpush1.msra.mxu0 %v2420
        %2466 = vmatprep.subr.mxu0 %v2423
        %2467 = vmatpush1.msra.mxu0 %v2422
        %2468 = vmatprep.subr.mxu0 %v2425
        %2469 = vmatpush1.msra.mxu0 %v2424
        %2470 = vmatprep.subr.mxu0 %v2427
        %2471 = vmatpush1.msra.mxu0 %v2426
        %2472 = vmatprep.subr.mxu0 %v2429
        %2473 = vmatpush1.msra.mxu0 %v2428
        %2474 = vmatprep.subr.mxu0 %v2431
        %2475 = vmatpush1.msra.mxu0 %v2430
        %2476 = vmatprep.subr.mxu0 %v2433
        %2477 = vmatpush1.msra.mxu0 %v2432
        %2478 = vmatprep.subr.mxu0 %v2435
        %2479 = vmatpush1.msra.mxu0 %v2434
        %2480 = vmatprep.subr.mxu0 %v2437
        %2481 = vmatpush1.msra.mxu0 %v2436
        %2482 = vmatprep.subr.mxu0 %v2439
        %2483 = vmatpush1.msra.mxu0 %v2438
        %2484 = vmatprep.subr.mxu0 %v2441
        %2485 = vmatpush1.msra.mxu0 %v2440
        %2486 = vmatprep.subr.mxu0 %v2443
        %2487 = vmatpush1.msra.mxu0 %v2442
        %2488 = vmatprep.subr.mxu0 0.0
        %2489 = vmatpush1.msra.mxu0 0.0
        %2490 = vmatprep.subr.mxu0 0.0
        %2491 = vmatpush1.msra.mxu0 0.0
        %2492 = vmatprep.subr.mxu0 0.0
        %2493 = vmatpush1.msra.mxu0 0.0
        %2494 = vmatprep.subr.mxu0 0.0
        %2495 = vmatpush1.msra.mxu0 0.0
        %2496 = vmatprep.subr.mxu0 0.0
        %2497 = vmatpush1.msra.mxu0 0.0
        %2498 = vmatprep.subr.mxu0 0.0
        %2499 = vmatpush1.msra.mxu0 0.0
        %2500 = vmatprep.subr.mxu0 0.0
        %2501 = vmatpush1.msra.mxu0 0.0
        %2502 = vmatprep.subr.mxu0 0.0
        %2503 = vmatpush1.msra.mxu0 0.0
        %2504 = vmatprep.subr.mxu0 0.0
        %2505 = vmatpush1.msra.mxu0 0.0
        %2506 = vmatprep.subr.mxu0 0.0
        %2507 = vmatpush1.msra.mxu0 0.0
        %2508 = vmatprep.subr.mxu0 0.0
        %2509 = vmatpush1.msra.mxu0 0.0
        %2510 = vmatprep.subr.mxu0 0.0
        %2511 = vmatpush1.msra.mxu0 0.0
        %2512 = vmatprep.subr.mxu0 0.0
        %2513 = vmatpush1.msra.mxu0 0.0
        %2514 = vmatprep.subr.mxu0 0.0
        %2515 = vmatpush1.msra.mxu0 0.0
        %2516 = vmatprep.subr.mxu0 0.0
        %2517 = vmatpush1.msra.mxu0 0.0
        %2518 = vmatprep.subr.mxu0 0.0
        %2519 = vmatpush1.msra.mxu0 0.0
        %2520 = vmatprep.mubr.f32.mxu0 0.0
        %2521 = vmatmul.mubr.f32.gmra.mrb[0].mxu0 %v2396
        %v2522 = vpop.f32.mrb[0].mxu0
        %v2523 = vadd.f32 %v2449, %v2522
        %v2524 = vpop.f32.mrb[0].mxu0
        %v2525 = vadd.f32 %v2453, %v2524
        %2526 = vmatprep.mubr.f32.mxu0 0.0
        %2527 = vmatmul.mubr.f32.gmra.mrb[0].mxu0 %v2397
        %v2528 = vpop.f32.mrb[0].mxu0
        %v2529 = vadd.f32 %v2449, %v2528
        %v2530 = vpop.f32.mrb[0].mxu0
        %v2531 = vadd.f32 %v2453, %v2530
        %2532 = vmatprep.mubr.f32.mxu0 0.0
        %2533 = vmatmul.mubr.f32.gmra.mrb[0].mxu0 %v2398
        %v2534 = vpop.f32.mrb[0].mxu0
        %v2535 = vadd.f32 %v2449, %v2534
        %v2536 = vpop.f32.mrb[0].mxu0
        %v2537 = vadd.f32 %v2453, %v2536
        %2538 = vmatprep.mubr.f32.mxu0 0.0
        %2539 = vmatmul.mubr.f32.gmra.mrb[0].mxu0 %v2399
        %v2540 = vpop.f32.mrb[0].mxu0
        %v2541 = vadd.f32 %v2449, %v2540
        %v2542 = vpop.f32.mrb[0].mxu0
        %v2543 = vadd.f32 %v2453, %v2542
        %2544 = vmatprep.mubr.f32.mxu0 0.0
        %2545 = vmatmul.mubr.f32.gmra.mrb[0].mxu0 %v2400
        %v2546 = vpop.f32.mrb[0].mxu0
        %v2547 = vadd.f32 %v2449, %v2546
        %v2548 = vpop.f32.mrb[0].mxu0
        %v2549 = vadd.f32 %v2453, %v2548
        %2550 = vmatprep.mubr.f32.mxu0 0.0
        %2551 = vmatmul.mubr.f32.gmra.mrb[0].mxu0 %v2401
        %v2552 = vpop.f32.mrb[0].mxu0
        %v2553 = vadd.f32 %v2449, %v2552
        %v2554 = vpop.f32.mrb[0].mxu0
        %v2555 = vadd.f32 %v2453, %v2554
        %2556 = vmatprep.mubr.f32.mxu0 0.0
        %2557 = vmatmul.mubr.f32.gmra.mrb[0].mxu0 %v2402
        %v2558 = vpop.f32.mrb[0].mxu0
        %v2559 = vadd.f32 %v2449, %v2558
        %v2560 = vpop.f32.mrb[0].mxu0
        %v2561 = vadd.f32 %v2453, %v2560
        %2562 = vmatprep.mubr.f32.mxu0 0.0
        %2563 = vmatmul.mubr.f32.gmra.mrb[0].mxu0 %v2403
        %v2564 = vpop.f32.mrb[0].mxu0
        %v2565 = vadd.f32 %v2449, %v2564
        %v2566 = vpop.f32.mrb[0].mxu0
        %v2567 = vadd.f32 %v2453, %v2566
        %2568 = vmatprep.mubr.f32.mxu0 0.0
        %2569 = vmatmul.mubr.f32.gmra.mrb[0].mxu0 %v2404
        %v2570 = vpop.f32.mrb[0].mxu0
        %v2571 = vadd.f32 %v2449, %v2570
        %v2572 = vpop.f32.mrb[0].mxu0
        %v2573 = vadd.f32 %v2453, %v2572
        %2574 = vmatprep.mubr.f32.mxu0 0.0
        %2575 = vmatmul.mubr.f32.gmra.mrb[0].mxu0 %v2405
        %v2576 = vpop.f32.mrb[0].mxu0
        %v2577 = vadd.f32 %v2449, %v2576
        %v2578 = vpop.f32.mrb[0].mxu0
        %v2579 = vadd.f32 %v2453, %v2578
        %2580 = vmatprep.mubr.f32.mxu0 0.0
        %2581 = vmatmul.mubr.f32.gmra.mrb[0].mxu0 %v2406
        %v2582 = vpop.f32.mrb[0].mxu0
        %v2583 = vadd.f32 %v2449, %v2582
        %v2584 = vpop.f32.mrb[0].mxu0
        %v2585 = vadd.f32 %v2453, %v2584
        %2586 = vmatprep.mubr.f32.mxu0 0.0
        %2587 = vmatmul.mubr.f32.gmra.mrb[0].mxu0 %v2407
        %v2588 = vpop.f32.mrb[0].mxu0
        %v2589 = vadd.f32 %v2449, %v2588
        %v2590 = vpop.f32.mrb[0].mxu0
        %v2591 = vadd.f32 %v2453, %v2590
        %2592 = vmatprep.mubr.f32.mxu0 0.0
        %2593 = vmatmul.mubr.f32.gmra.mrb[0].mxu0 %v2408
        %v2594 = vpop.f32.mrb[0].mxu0
        %v2595 = vadd.f32 %v2449, %v2594
        %v2596 = vpop.f32.mrb[0].mxu0
        %v2597 = vadd.f32 %v2453, %v2596
        %2598 = vmatprep.mubr.f32.mxu0 0.0
        %2599 = vmatmul.mubr.f32.gmra.mrb[0].mxu0 %v2409
        %v2600 = vpop.f32.mrb[0].mxu0
        %v2601 = vadd.f32 %v2449, %v2600
        %v2602 = vpop.f32.mrb[0].mxu0
        %v2603 = vadd.f32 %v2453, %v2602
        %2604 = vmatprep.mubr.f32.mxu0 0.0
        %2605 = vmatmul.mubr.f32.gmra.mrb[0].mxu0 %v2410
        %v2606 = vpop.f32.mrb[0].mxu0
        %v2607 = vadd.f32 %v2449, %v2606
        %v2608 = vpop.f32.mrb[0].mxu0
        %v2609 = vadd.f32 %v2453, %v2608
        %2610 = vmatprep.mubr.f32.mxu0 0.0
        %2611 = vmatmul.mubr.f32.gmra.mrb[0].mxu0 %v2411
        %v2612 = vpop.f32.mrb[0].mxu0
        %v2613 = vadd.f32 %v2449, %v2612
        %v2614 = vpop.f32.mrb[0].mxu0
        %v2615 = vadd.f32 %v2453, %v2614
        %2616 = vdwg.mxu0
        %2617 = vst [vmem:[%s641] sm:$0xff] %v2523
        %2618 = vst [vmem:[%s641 + $0x8] sm:$0xff] %v2525
        %2619 = vst [vmem:[%s641 + $0x10] sm:$0xff] %v2529
        %2620 = vst [vmem:[%s641 + $0x18] sm:$0xff] %v2531
        %2621 = vst [vmem:[%s641 + $0x20] sm:$0xff] %v2535
        %2622 = vst [vmem:[%s641 + $0x28] sm:$0xff] %v2537
        %2623 = vst [vmem:[%s641 + $0x30] sm:$0xff] %v2541
        %2624 = vst [vmem:[%s641 + $0x38] sm:$0xff] %v2543
        %2625 = vst [vmem:[%s641 + $0x40] sm:$0xff] %v2547
        %2626 = vst [vmem:[%s641 + $0x48] sm:$0xff] %v2549
        %2627 = vst [vmem:[%s641 + $0x50] sm:$0xff] %v2553
        %2628 = vst [vmem:[%s641 + $0x58] sm:$0xff] %v2555
        %2629 = vst [vmem:[%s641 + $0x60] sm:$0xff] %v2559
        %2630 = vst [vmem:[%s641 + $0x68] sm:$0xff] %v2561
        %2631 = vst [vmem:[%s641 + $0x70] sm:$0xff] %v2565
        %2632 = vst [vmem:[%s641 + $0x78] sm:$0xff] %v2567
        %2633 = vst [vmem:[%s641 + $0x80] sm:$0xff] %v2571
        %2634 = vst [vmem:[%s641 + $0x88] sm:$0xff] %v2573
        %2635 = vst [vmem:[%s641 + $0x90] sm:$0xff] %v2577
        %2636 = vst [vmem:[%s641 + $0x98] sm:$0xff] %v2579
        %2637 = vst [vmem:[%s641 + $0xa0] sm:$0xff] %v2583
        %2638 = vst [vmem:[%s641 + $0xa8] sm:$0xff] %v2585
        %2639 = vst [vmem:[%s641 + $0xb0] sm:$0xff] %v2589
        %2640 = vst [vmem:[%s641 + $0xb8] sm:$0xff] %v2591
        %2641 = vst [vmem:[%s641 + $0xc0] sm:$0xff] %v2595
        %2642 = vst [vmem:[%s641 + $0xc8] sm:$0xff] %v2597
        %2643 = vst [vmem:[%s641 + $0xd0] sm:$0xff] %v2601
        %2644 = vst [vmem:[%s641 + $0xd8] sm:$0xff] %v2603
        %2645 = vst [vmem:[%s641 + $0xe0] sm:$0xff] %v2607
        %2646 = vst [vmem:[%s641 + $0xe8] sm:$0xff] %v2609
        %2647 = vst [vmem:[%s641 + $0xf0] sm:$0xff] %v2613
        %2648 = vst [vmem:[%s641 + $0xf8] sm:$0xff] %v2615
        %s2649 = sand.u32 %s411, 1
        %s2650 = scalar_lea.sflag [#allocation4], %s2649
        %s2651 = sand.u32 %s411, 1
        %s2652 = smul.addr %s2651, 256
        %s2653 = scalar_lea.vmem [#allocation11], %s2652
        // Predicated region
        $region109: #{tpu_custom_call.1} parent=87 // pred_check
          %p2654 = pneg %p421
        $region110: #{tpu_custom_call.1} parent=87 // pred_check_branch
          %2656 = sbr.rel (%p2654) target = $region112
        $region111: #{tpu_custom_call.1} parent=87 // pred_region
          %s2657 = smul.u32 16, %s36
          %s2659 = ssub.s32 4096, 4096
          %2660 = vsyncadd %s2650, %s2659
          %s2661 = smul.addr %s2657, 2
          %s2662 = smul.addr %s2661, 128
          %s2663 = scalar_lea.hbm %s17, %s2662
          %s2664 = sshll.u32 %s2653, 4
          %s2665 = int_to_ptr.vmem [resolvable:$true] %s2664
          %2670 = dma.vmem_to_hbm [thread:$0]  %s2665, 4096, %s2663, %s2650, 256, 256, 16
        $region112: #{tpu_custom_call.1} parent=87 // pred_fallthru
          _
      $region88: #{tpu_custom_call.1} parent=5 // pred_fallthru
        _
      %p2671 = scmp.le.s32.totalorder 2, %s31
      // Predicated region
      $region113: #{tpu_custom_call.1} parent=5 // pred_check
        %p2672 = pneg %p2671
      $region114: #{tpu_custom_call.1} parent=5 // pred_check_branch
        %2674 = sbr.rel (%p2672) target = $region116
      $region115: #{tpu_custom_call.1} parent=5 // pred_region
        %s2675 = ssub.s32 %s31, 2
        // Predicated region
        $region117: #{tpu_custom_call.1} parent=115 // pred_check
          %p2676 = pneg %p427
        $region118: #{tpu_custom_call.1} parent=115 // pred_check_branch
          %2678 = sbr.rel (%p2676) target = $region120
        $region119: #{tpu_custom_call.1} parent=115 // pred_region
          %s2679 = sand.u32 %s412, 1
          %s2680 = scalar_lea.sflag [#allocation4], %s2679
          %s2681 = sand.u32 %s412, 1
          %s2682 = smul.addr %s2681, 256
          %s2683 = scalar_lea.vmem [#allocation11], %s2682
          %2684 = dma.done %s2680, 4096
        $region120: #{tpu_custom_call.1} parent=115 // pred_fallthru
          _
      $region116: #{tpu_custom_call.1} parent=5 // pred_fallthru
        _
    $region6: #{tpu_custom_call.1} parent=1 // loop_footer
      %s35 = sadd.s32 1, %s31
    $region7: #{tpu_custom_call.1} parent=1 // loop_footer_branch
      %30 = sbr.rel target = $region3
    $region8: #{tpu_custom_call.1} parent=1 // loop_exit
      _
    %2685 = vsyncpa [#allocation3], 1
    %s2686 = scalar_lea.sflag [#allocation3], 1
    %2687 = vsyncpa %s2686, 1
    %2688 = vsyncpa [#allocation6], 1
    %2689 = vsyncpa [#allocation9], 1
    %2690 = vsyncpa [#allocation4], 1
    %s2691 = scalar_lea.sflag [#allocation4], 1
    %2692 = vsyncpa %s2691, 1

</llo_original>
